<compile_context>
chip_gen: v7x
topology: tpu7x:2x2x1
jax: 0.10.0
libtpu: 0.0.40
codegen_flags: <defaults>
</compile_context>

<pallas_src>
import functools

import jax
import jax.numpy as jnp
from jax.experimental import pallas as pl
from jax.experimental.pallas import tpu as pltpu


# ----------------------------------------------------------------------------
# Fused cross_layer kernel (one grid step == B_blk batch elements)
# ----------------------------------------------------------------------------
def _cross_layer_kernel(
    text_ref, image_ref,
    sa_w_in_ref, sa_b_in_ref, sa_w_out_ref, sa_b_out_ref,
    n1_g_ref, n1_b_ref,
    ca_w_q_ref, ca_b_q_ref, ca_w_kv_ref, ca_b_kv_ref,
    ca_w_out_ref, ca_b_out_ref,
    n2_g_ref, n2_b_ref,
    ffn_w_ref, ffn_b_ref,
    out_ref,
    *, num_heads,
):
    B, Lt, E = text_ref.shape
    Li = image_ref.shape[1]
    H = num_heads
    Dh = E // H
    scale = float(Dh) ** -0.5
    cdt = text_ref.dtype                      # matmul-input (compute) dtype
    f32 = jnp.float32

    def matmul(x, w):
        # x:(M,K) in compute dtype, w:(K,O) in its stored dtype -> f32 accumulate.
        return jnp.dot(x, w, preferred_element_type=f32)

    def layer_norm(x, g_ref, b_ref):          # x: (M, E) float32, eps = 1e-5
        mu = jnp.mean(x, axis=-1, keepdims=True)
        xc = x - mu
        var = jnp.mean(xc * xc, axis=-1, keepdims=True)
        return xc * jax.lax.rsqrt(var + 1e-5) * g_ref[...].astype(f32) \
            + b_ref[...].astype(f32)

    def attention(q, k, v, Lq, Lk, w_out_ref, b_out_ref):
        # q: (B*Lq, E), k/v: (B*Lk, E), all f32 projection accumulators.
        q3 = (q * scale).astype(cdt).reshape(B, Lq, E)
        k3 = k.astype(cdt).reshape(B, Lk, E)
        v3 = v.astype(cdt).reshape(B, Lk, E)
        acc = jnp.zeros((B * Lq, E), f32)
        for h in range(H):                    # static unroll over heads
            sl = slice(h * Dh, (h + 1) * Dh)
            # Batch-blocked bmm over B (supported Mosaic dot_general patterns).
            s = jnp.einsum('bqd,bkd->bqk', q3[..., sl], k3[..., sl],
                           preferred_element_type=f32)            # (B, Lq, Lk)
            s = s - jnp.max(s, axis=-1, keepdims=True)
            p = jnp.exp(s)
            p = p * pl.reciprocal(jnp.sum(p, axis=-1, keepdims=True), approx=True)
            o = jnp.einsum('bqk,bkd->bqd', p.astype(cdt), v3[..., sl],
                           preferred_element_type=f32)            # (B, Lq, Dh)
            # Fold the output projection per head: no concat, no live head list.
            acc = acc + matmul(o.reshape(B * Lq, Dh).astype(cdt),
                               w_out_ref[sl, :])
        return acc + b_out_ref[...].astype(f32)

    # Flatten (B, L, E) -> (B*L, E) for all token-wise work (fills the MXU M-dim).
    x_text = text_ref[...].reshape(B * Lt, E)                      # compute dtype
    x_img = image_ref[...].reshape(B * Li, E)

    # ---- Self-attention (fused QKV projection) + residual + LayerNorm ----
    qkv = matmul(x_text, sa_w_in_ref[...]) + sa_b_in_ref[...].astype(f32)
    sa_out = attention(qkv[:, :E], qkv[:, E:2 * E], qkv[:, 2 * E:],
                       Lt, Lt, sa_w_out_ref, sa_b_out_ref)
    x = layer_norm(x_text.astype(f32) + sa_out, n1_g_ref, n1_b_ref)

    # ---- Cross-attention (q = text, k/v = image) + residual + LayerNorm ----
    q = matmul(x.astype(cdt), ca_w_q_ref[...]) + ca_b_q_ref[...].astype(f32)
    kv = matmul(x_img, ca_w_kv_ref[...]) + ca_b_kv_ref[...].astype(f32)
    ca_out = attention(q, kv[:, :E], kv[:, E:],
                       Lt, Li, ca_w_out_ref, ca_b_out_ref)
    x = layer_norm(x + ca_out, n2_g_ref, n2_b_ref)

    # ---- FFN (single Linear) ----
    y = matmul(x.astype(cdt), ffn_w_ref[...]) + ffn_b_ref[...].astype(f32)
    out_ref[...] = y.reshape(B, Lt, E).astype(out_ref.dtype)

    # TODO(synk): attention-weight dropout (p=0.1) is identity here (eval mode);
    # training parity would need in-kernel pltpu.prng_* dropout.


# ----------------------------------------------------------------------------
# Batch-block sizing: largest batch divisor within a VMEM activation budget,
# stopping once the matmul M-dim (B_blk * L_text) is MXU-filling.
# ----------------------------------------------------------------------------
def _pick_batch_block(n_batch, l_text, l_image, embed_dim,
                      target_rows=256, act_budget_bytes=6 * 1024 * 1024):
    best = 1
    for d in range(1, n_batch + 1):
        if n_batch % d:
            continue
        act = d * (l_text + l_image) * embed_dim * 4 * 10 \
            + d * l_text * max(l_text, l_image) * 4 * 4
        if d > 1 and act > act_budget_bytes:
            break
        best = d
        if d * l_text >= target_rows:
            break
    return best


# ----------------------------------------------------------------------------
# Wrapper: one pallas_call for the whole layer
# ----------------------------------------------------------------------------
@functools.partial(jax.jit, static_argnames=("num_heads",))
def cross_layer_forward(image_features, text_features, params, num_heads):
    Lt, N, E = text_features.shape
    Li = image_features.shape[0]
    assert E % num_heads == 0, "embed_dim must be divisible by num_heads"

    # Batch-first views for the per-batch-block grid (cheap XLA layout ops on
    # the raw inputs/output only; every computed intermediate stays fused).
    text_b = jnp.transpose(text_features, (1, 0, 2))               # (N, Lt, E)
    image_b = jnp.transpose(image_features, (1, 0, 2))             # (N, Li, E)

    sa = params["self_attention"]
    ca = params["cross_attention"]

    def row(v):                                                    # (D,) -> (1, D)
        return v.reshape(1, -1)

    # Pre-transpose weights ONCE (outside the kernel) to (K, O) layout so the
    # in-kernel matmuls contract x's last dim with the weight's first dim.
    sa_w_in = jnp.transpose(sa["in_proj_weight"])                  # (E, 3E)
    sa_w_out = jnp.transpose(sa["out_proj_weight"])                # (E, E)
    ca_w_in_t = jnp.transpose(ca["in_proj_weight"])                # (E, 3E)
    ca_w_q, ca_w_kv = ca_w_in_t[:, :E], ca_w_in_t[:, E:]           # (E,E), (E,2E)
    ca_b_q, ca_b_kv = row(ca["in_proj_bias"][:E]), row(ca["in_proj_bias"][E:])
    ca_w_out = jnp.transpose(ca["out_proj_weight"])                # (E, E)
    ffn_w = jnp.transpose(params["ffn"]["weight"])                 # (E, E)

    operands = (
        text_b, image_b,
        sa_w_in, row(sa["in_proj_bias"]), sa_w_out, row(sa["out_proj_bias"]),
        row(params["norm_1"]["gamma"]), row(params["norm_1"]["beta"]),
        ca_w_q, ca_b_q, ca_w_kv, ca_b_kv, ca_w_out, row(ca["out_proj_bias"]),
        row(params["norm_2"]["gamma"]), row(params["norm_2"]["beta"]),
        ffn_w, row(params["ffn"]["bias"]),
    )

    B_blk = _pick_batch_block(N, Lt, Li, E)
    grid = (N // B_blk,)

    def const_spec(arr):
        # Whole-array block, invariant across the batch grid (loaded once,
        # resident in VMEM for every grid step).
        return pl.BlockSpec(arr.shape, lambda n, _nd=arr.ndim: (0,) * _nd)

    in_specs = [
        pl.BlockSpec((B_blk, Lt, E), lambda n: (n, 0, 0)),         # text block
        pl.BlockSpec((B_blk, Li, E), lambda n: (n, 0, 0)),         # image block
    ] + [const_spec(op) for op in operands[2:]]

    # VMEM budget: resident weights + double-buffered activation blocks +
    # f32 intermediates, with headroom; capped at v7x's 64 MiB physical VMEM.
    itemsize = jnp.dtype(text_features.dtype).itemsize
    weight_bytes = sum(int(op.size) * jnp.dtype(op.dtype).itemsize
                       for op in operands[2:])
    io_bytes = 2 * B_blk * (2 * Lt + Li) * E * itemsize * 2        # dbl-buffered io
    scratch_bytes = B_blk * (Lt + Li) * E * 4 * 12 \
        + B_blk * Lt * max(Lt, Li) * 4 * 4
    vmem_limit = int(min(64 * 2 ** 20,
                         max(32 * 2 ** 20,
                             1.25 * (weight_bytes + io_bytes + scratch_bytes))))

    out_b = pl.pallas_call(
        functools.partial(_cross_layer_kernel, num_heads=num_heads),
        out_shape=jax.ShapeDtypeStruct((N, Lt, E), text_features.dtype),
        grid=grid,
        in_specs=in_specs,
        out_specs=pl.BlockSpec((B_blk, Lt, E), lambda n: (n, 0, 0)),
        compiler_params=pltpu.CompilerParams(
            dimension_semantics=("parallel",),
            vmem_limit_bytes=vmem_limit),
    )(*operands)

    return image_features, jnp.transpose(out_b, (1, 0, 2))         # (Lt, N, E)


# ----------------------------------------------------------------------------
# Pure-JAX reference (PyTorch eval-mode semantics) for a correctness check
# ----------------------------------------------------------------------------
def _reference_forward(image_features, text_features, params, num_heads):
    E = text_features.shape[-1]
    H = num_heads
    Dh = E // H

    def mha(q_in, kv_in, p):                                       # (L, N, E)
        Lq, N, _ = q_in.shape
        Lk = kv_in.shape[0]
        w, b = p["in_proj_weight"], p["in_proj_bias"]
        q = q_in @ w[:E].T + b[:E]
        k = kv_in @ w[E:2 * E].T + b[E:2 * E]
        v = kv_in @ w[2 * E:].T + b[2 * E:]
        split = lambda x, L: x.reshape(L, N * H, Dh).transpose(1, 0, 2)
        qh, kh, vh = split(q, Lq), split(k, Lk), split(v, Lk)
        s = jnp.einsum('bqd,bkd->bqk', qh, kh) * (Dh ** -0.5)
        a = jax.nn.softmax(s, axis=-1)
        o = jnp.einsum('bqk,bkd->bqd', a, vh).transpose(1, 0, 2).reshape(Lq, N, E)
        return o @ p["out_proj_weight"].T + p["out_proj_bias"]

    def ln(x, p):
        mu = x.mean(-1, keepdims=True)
        var = ((x - mu) ** 2).mean(-1, keepdims=True)
        return (x - mu) / jnp.sqrt(var + 1e-5) * p["gamma"] + p["beta"]

    t = text_features
    t = ln(t + mha(t, t, params["self_attention"]), params["norm_1"])
    t = ln(t + mha(t, image_features, params["cross_attention"]), params["norm_2"])
    return image_features, t @ params["ffn"]["weight"].T + params["ffn"]["bias"]


# ----------------------------------------------------------------------------
# Deterministic parameter init (PyTorch parameter layouts)
# ----------------------------------------------------------------------------
def init_params(key, embed_dim):
    E = embed_dim
    keys = jax.random.split(key, 8)

    def mha_params(k):
        k1, k2 = jax.random.split(k)
        return {
            "in_proj_weight": 0.05 * jax.random.normal(k1, (3 * E, E), jnp.float32),
            "in_proj_bias": jnp.zeros((3 * E,), jnp.float32),
            "out_proj_weight": 0.05 * jax.random.normal(k2, (E, E), jnp.float32),
            "out_proj_bias": jnp.zeros((E,), jnp.float32),
        }

    return {
        "self_attention": mha_params(keys[0]),
        "norm_1": {"gamma": jnp.ones((E,), jnp.float32),
                   "beta": jnp.zeros((E,), jnp.float32)},
        "cross_attention": mha_params(keys[1]),
        "norm_2": {"gamma": jnp.ones((E,), jnp.float32),
                   "beta": jnp.zeros((E,), jnp.float32)},
        "ffn": {"weight": 0.05 * jax.random.normal(keys[2], (E, E), jnp.float32),
                "bias": jnp.zeros((E,), jnp.float32)},
    }


if __name__ == "__main__":
    embed_dim = 32
    num_heads = 4
    L_text, L_image, batch = 8, 16, 2

    root = jax.random.PRNGKey(0)
    k_img, k_txt, k_par = jax.random.split(root, 3)
    image_features = jax.random.normal(k_img, (L_image, batch, embed_dim), jnp.float32)
    text_features = jax.random.normal(k_txt, (L_text, batch, embed_dim), jnp.float32)
    params = init_params(k_par, embed_dim)

    img_out, ffn_out = cross_layer_forward(image_features, text_features,
                                           params, num_heads)
    jax.block_until_ready((img_out, ffn_out))

    assert img_out.shape == (L_image, batch, embed_dim)
    assert ffn_out.shape == (L_text, batch, embed_dim)
    assert bool(jnp.all(jnp.isfinite(ffn_out)))

    # Numerics check against a pure-JAX reference (loose tol: approx reciprocal
    # in the in-kernel softmax denominator).
    _, ref_ffn = _reference_forward(image_features, text_features, params, num_heads)
    assert bool(jnp.allclose(ffn_out, ref_ffn, rtol=1e-2, atol=1e-2)), (
        "max abs err = %f" % float(jnp.max(jnp.abs(ffn_out - ref_ffn))))

    print("KERNEL_OK")
</pallas_src>

<mosaic_0001>
module attributes {stable_mosaic.version = 11 : i64} {
  func.func @_cross_layer_kernel(%arg0: i32, %arg1: memref<2x8x32xf32, #tpu.memory_space<vmem>>, %arg2: memref<2x16x32xf32, #tpu.memory_space<vmem>>, %arg3: memref<32x96xf32, #tpu.memory_space<vmem>>, %arg4: memref<1x96xf32, #tpu.memory_space<vmem>>, %arg5: memref<32x32xf32, #tpu.memory_space<vmem>>, %arg6: memref<1x32xf32, #tpu.memory_space<vmem>>, %arg7: memref<1x32xf32, #tpu.memory_space<vmem>>, %arg8: memref<1x32xf32, #tpu.memory_space<vmem>>, %arg9: memref<32x32xf32, #tpu.memory_space<vmem>>, %arg10: memref<1x32xf32, #tpu.memory_space<vmem>>, %arg11: memref<32x64xf32, #tpu.memory_space<vmem>>, %arg12: memref<1x64xf32, #tpu.memory_space<vmem>>, %arg13: memref<32x32xf32, #tpu.memory_space<vmem>>, %arg14: memref<1x32xf32, #tpu.memory_space<vmem>>, %arg15: memref<1x32xf32, #tpu.memory_space<vmem>>, %arg16: memref<1x32xf32, #tpu.memory_space<vmem>>, %arg17: memref<32x32xf32, #tpu.memory_space<vmem>>, %arg18: memref<1x32xf32, #tpu.memory_space<vmem>>, %arg19: memref<2x8x32xf32, #tpu.memory_space<vmem>>) attributes {dimension_semantics = [#tpu.dimension_semantics<parallel>], iteration_bounds = array<i64: 1>, scalar_prefetch = 0 : i64, scratch_operands = 0 : i64, tpu.core_type = #tpu.core_type<tc>, window_params = [{transform_indices = @transform_0, window_bounds = array<i64: 2, 8, 32>}, {transform_indices = @transform_1, window_bounds = array<i64: 2, 16, 32>}, {pipeline_mode = #tpu.pipeline_mode<synchronous>, transform_indices = @transform_2, window_bounds = array<i64: 32, 96>}, {pipeline_mode = #tpu.pipeline_mode<synchronous>, transform_indices = @transform_3, window_bounds = array<i64: 1, 96>}, {pipeline_mode = #tpu.pipeline_mode<synchronous>, transform_indices = @transform_4, window_bounds = array<i64: 32, 32>}, {pipeline_mode = #tpu.pipeline_mode<synchronous>, transform_indices = @transform_5, window_bounds = array<i64: 1, 32>}, {pipeline_mode = #tpu.pipeline_mode<synchronous>, transform_indices = @transform_6, window_bounds = array<i64: 1, 32>}, {pipeline_mode = #tpu.pipeline_mode<synchronous>, transform_indices = @transform_7, window_bounds = array<i64: 1, 32>}, {pipeline_mode = #tpu.pipeline_mode<synchronous>, transform_indices = @transform_8, window_bounds = array<i64: 32, 32>}, {pipeline_mode = #tpu.pipeline_mode<synchronous>, transform_indices = @transform_9, window_bounds = array<i64: 1, 32>}, {pipeline_mode = #tpu.pipeline_mode<synchronous>, transform_indices = @transform_10, window_bounds = array<i64: 32, 64>}, {pipeline_mode = #tpu.pipeline_mode<synchronous>, transform_indices = @transform_11, window_bounds = array<i64: 1, 64>}, {pipeline_mode = #tpu.pipeline_mode<synchronous>, transform_indices = @transform_12, window_bounds = array<i64: 32, 32>}, {pipeline_mode = #tpu.pipeline_mode<synchronous>, transform_indices = @transform_13, window_bounds = array<i64: 1, 32>}, {pipeline_mode = #tpu.pipeline_mode<synchronous>, transform_indices = @transform_14, window_bounds = array<i64: 1, 32>}, {pipeline_mode = #tpu.pipeline_mode<synchronous>, transform_indices = @transform_15, window_bounds = array<i64: 1, 32>}, {pipeline_mode = #tpu.pipeline_mode<synchronous>, transform_indices = @transform_16, window_bounds = array<i64: 32, 32>}, {pipeline_mode = #tpu.pipeline_mode<synchronous>, transform_indices = @transform_17, window_bounds = array<i64: 1, 32>}, {transform_indices = @transform_18, window_bounds = array<i64: 2, 8, 32>}]} {
    %c0 = arith.constant 0 : index
    %c0_0 = arith.constant 0 : index
    %c0_1 = arith.constant 0 : index
    %0 = vector.load %arg1[%c0, %c0_0, %c0_1] : memref<2x8x32xf32, #tpu.memory_space<vmem>>, vector<2x8x32xf32>
    %1 = vector.shape_cast %0 : vector<2x8x32xf32> to vector<16x32xf32>
    %c0_2 = arith.constant 0 : index
    %c0_3 = arith.constant 0 : index
    %c0_4 = arith.constant 0 : index
    %2 = vector.load %arg2[%c0_2, %c0_3, %c0_4] : memref<2x16x32xf32, #tpu.memory_space<vmem>>, vector<2x16x32xf32>
    %3 = vector.shape_cast %2 : vector<2x16x32xf32> to vector<32x32xf32>
    %c0_5 = arith.constant 0 : index
    %c0_6 = arith.constant 0 : index
    %4 = vector.load %arg3[%c0_5, %c0_6] : memref<32x96xf32, #tpu.memory_space<vmem>>, vector<32x96xf32>
    %cst = arith.constant dense<0.000000e+00> : vector<16x96xf32>
    %5 = tpu.matmul %1, %4, %cst {dimension_numbers = #tpu.dot_dimension_numbers<[1], [0], [0], [1], [0, 0, 1, 1], [], []>} : vector<16x32xf32>, vector<32x96xf32>, vector<16x96xf32> -> vector<16x96xf32>
    %c0_7 = arith.constant 0 : index
    %c0_8 = arith.constant 0 : index
    %6 = vector.load %arg4[%c0_7, %c0_8] : memref<1x96xf32, #tpu.memory_space<vmem>>, vector<1x96xf32>
    %7 = vector.broadcast %6 : vector<1x96xf32> to vector<16x96xf32>
    %8 = arith.addf %5, %7 : vector<16x96xf32>
    %9 = vector.extract_strided_slice %8 {offsets = [0, 0], sizes = [16, 32], strides = [1, 1]} : vector<16x96xf32> to vector<16x32xf32>
    %10 = vector.extract_strided_slice %8 {offsets = [0, 32], sizes = [16, 32], strides = [1, 1]} : vector<16x96xf32> to vector<16x32xf32>
    %11 = vector.extract_strided_slice %8 {offsets = [0, 64], sizes = [16, 32], strides = [1, 1]} : vector<16x96xf32> to vector<16x32xf32>
    %cst_9 = arith.constant 0.353553385 : f32
    %12 = vector.broadcast %cst_9 : f32 to vector<16x32xf32>
    %13 = arith.mulf %9, %12 : vector<16x32xf32>
    %14 = vector.shape_cast %13 : vector<16x32xf32> to vector<2x8x32xf32>
    %15 = vector.shape_cast %10 : vector<16x32xf32> to vector<2x8x32xf32>
    %16 = vector.shape_cast %11 : vector<16x32xf32> to vector<2x8x32xf32>
    %cst_10 = arith.constant 0.000000e+00 : f32
    %17 = vector.broadcast %cst_10 : f32 to vector<16x32xf32>
    %18 = vector.extract_strided_slice %14 {offsets = [0, 0, 0], sizes = [2, 8, 8], strides = [1, 1, 1]} : vector<2x8x32xf32> to vector<2x8x8xf32>
    %19 = vector.extract_strided_slice %15 {offsets = [0, 0, 0], sizes = [2, 8, 8], strides = [1, 1, 1]} : vector<2x8x32xf32> to vector<2x8x8xf32>
    "tpu.trace_start"() <{level = 10 : i32, message = "bqd,bkd->bqk"}> : () -> ()
    %cst_11 = arith.constant dense<0.000000e+00> : vector<2x8x8xf32>
    %20 = tpu.matmul %18, %19, %cst_11 {dimension_numbers = #tpu.dot_dimension_numbers<[2], [2], [1], [1], [0, 0, 0, 1, 1, 1], [0], [0]>} : vector<2x8x8xf32>, vector<2x8x8xf32>, vector<2x8x8xf32> -> vector<2x8x8xf32>
    "tpu.trace_stop"() : () -> ()
    %cst_12 = arith.constant dense<0xFF800000> : vector<2x8xf32>
    %21 = vector.multi_reduction <maximumf>, %20, %cst_12 [2] : vector<2x8x8xf32> to vector<2x8xf32>
    %22 = vector.shape_cast %21 : vector<2x8xf32> to vector<2x8x1xf32>
    %23 = vector.broadcast %22 : vector<2x8x1xf32> to vector<2x8x8xf32>
    %24 = arith.subf %20, %23 : vector<2x8x8xf32>
    %25 = math.exp %24 : vector<2x8x8xf32>
    %cst_13 = arith.constant dense<0.000000e+00> : vector<2x8xf32>
    %26 = vector.multi_reduction <add>, %25, %cst_13 [2] : vector<2x8x8xf32> to vector<2x8xf32>
    %27 = vector.shape_cast %26 : vector<2x8xf32> to vector<2x8x1xf32>
    %28 = tpu.reciprocal %27 {approx = true} : vector<2x8x1xf32> -> vector<2x8x1xf32>
    %29 = vector.broadcast %28 : vector<2x8x1xf32> to vector<2x8x8xf32>
    %30 = arith.mulf %25, %29 : vector<2x8x8xf32>
    %31 = vector.extract_strided_slice %16 {offsets = [0, 0, 0], sizes = [2, 8, 8], strides = [1, 1, 1]} : vector<2x8x32xf32> to vector<2x8x8xf32>
    "tpu.trace_start"() <{level = 10 : i32, message = "bqk,bkd->bqd"}> : () -> ()
    %cst_14 = arith.constant dense<0.000000e+00> : vector<2x8x8xf32>
    %32 = tpu.matmul %30, %31, %cst_14 {dimension_numbers = #tpu.dot_dimension_numbers<[2], [1], [1], [2], [0, 0, 0, 1, 1, 2], [0], [0]>} : vector<2x8x8xf32>, vector<2x8x8xf32>, vector<2x8x8xf32> -> vector<2x8x8xf32>
    "tpu.trace_stop"() : () -> ()
    %33 = vector.shape_cast %32 : vector<2x8x8xf32> to vector<16x8xf32>
    %c0_15 = arith.constant 0 : index
    %c0_16 = arith.constant 0 : index
    %34 = vector.load %arg5[%c0_15, %c0_16] : memref<32x32xf32, #tpu.memory_space<vmem>>, vector<8x32xf32>
    %cst_17 = arith.constant dense<0.000000e+00> : vector<16x32xf32>
    %35 = tpu.matmul %33, %34, %cst_17 {dimension_numbers = #tpu.dot_dimension_numbers<[1], [0], [0], [1], [0, 0, 1, 1], [], []>} : vector<16x8xf32>, vector<8x32xf32>, vector<16x32xf32> -> vector<16x32xf32>
    %36 = arith.addf %17, %35 : vector<16x32xf32>
    %37 = vector.extract_strided_slice %14 {offsets = [0, 0, 8], sizes = [2, 8, 8], strides = [1, 1, 1]} : vector<2x8x32xf32> to vector<2x8x8xf32>
    %38 = vector.extract_strided_slice %15 {offsets = [0, 0, 8], sizes = [2, 8, 8], strides = [1, 1, 1]} : vector<2x8x32xf32> to vector<2x8x8xf32>
    "tpu.trace_start"() <{level = 10 : i32, message = "bqd,bkd->bqk"}> : () -> ()
    %cst_18 = arith.constant dense<0.000000e+00> : vector<2x8x8xf32>
    %39 = tpu.matmul %37, %38, %cst_18 {dimension_numbers = #tpu.dot_dimension_numbers<[2], [2], [1], [1], [0, 0, 0, 1, 1, 1], [0], [0]>} : vector<2x8x8xf32>, vector<2x8x8xf32>, vector<2x8x8xf32> -> vector<2x8x8xf32>
    "tpu.trace_stop"() : () -> ()
    %cst_19 = arith.constant dense<0xFF800000> : vector<2x8xf32>
    %40 = vector.multi_reduction <maximumf>, %39, %cst_19 [2] : vector<2x8x8xf32> to vector<2x8xf32>
    %41 = vector.shape_cast %40 : vector<2x8xf32> to vector<2x8x1xf32>
    %42 = vector.broadcast %41 : vector<2x8x1xf32> to vector<2x8x8xf32>
    %43 = arith.subf %39, %42 : vector<2x8x8xf32>
    %44 = math.exp %43 : vector<2x8x8xf32>
    %cst_20 = arith.constant dense<0.000000e+00> : vector<2x8xf32>
    %45 = vector.multi_reduction <add>, %44, %cst_20 [2] : vector<2x8x8xf32> to vector<2x8xf32>
    %46 = vector.shape_cast %45 : vector<2x8xf32> to vector<2x8x1xf32>
    %47 = tpu.reciprocal %46 {approx = true} : vector<2x8x1xf32> -> vector<2x8x1xf32>
    %48 = vector.broadcast %47 : vector<2x8x1xf32> to vector<2x8x8xf32>
    %49 = arith.mulf %44, %48 : vector<2x8x8xf32>
    %50 = vector.extract_strided_slice %16 {offsets = [0, 0, 8], sizes = [2, 8, 8], strides = [1, 1, 1]} : vector<2x8x32xf32> to vector<2x8x8xf32>
    "tpu.trace_start"() <{level = 10 : i32, message = "bqk,bkd->bqd"}> : () -> ()
    %cst_21 = arith.constant dense<0.000000e+00> : vector<2x8x8xf32>
    %51 = tpu.matmul %49, %50, %cst_21 {dimension_numbers = #tpu.dot_dimension_numbers<[2], [1], [1], [2], [0, 0, 0, 1, 1, 2], [0], [0]>} : vector<2x8x8xf32>, vector<2x8x8xf32>, vector<2x8x8xf32> -> vector<2x8x8xf32>
    "tpu.trace_stop"() : () -> ()
    %52 = vector.shape_cast %51 : vector<2x8x8xf32> to vector<16x8xf32>
    %c8 = arith.constant 8 : index
    %c0_22 = arith.constant 0 : index
    %53 = vector.load %arg5[%c8, %c0_22] : memref<32x32xf32, #tpu.memory_space<vmem>>, vector<8x32xf32>
    %cst_23 = arith.constant dense<0.000000e+00> : vector<16x32xf32>
    %54 = tpu.matmul %52, %53, %cst_23 {dimension_numbers = #tpu.dot_dimension_numbers<[1], [0], [0], [1], [0, 0, 1, 1], [], []>} : vector<16x8xf32>, vector<8x32xf32>, vector<16x32xf32> -> vector<16x32xf32>
    %55 = arith.addf %36, %54 : vector<16x32xf32>
    %56 = vector.extract_strided_slice %14 {offsets = [0, 0, 16], sizes = [2, 8, 8], strides = [1, 1, 1]} : vector<2x8x32xf32> to vector<2x8x8xf32>
    %57 = vector.extract_strided_slice %15 {offsets = [0, 0, 16], sizes = [2, 8, 8], strides = [1, 1, 1]} : vector<2x8x32xf32> to vector<2x8x8xf32>
    "tpu.trace_start"() <{level = 10 : i32, message = "bqd,bkd->bqk"}> : () -> ()
    %cst_24 = arith.constant dense<0.000000e+00> : vector<2x8x8xf32>
    %58 = tpu.matmul %56, %57, %cst_24 {dimension_numbers = #tpu.dot_dimension_numbers<[2], [2], [1], [1], [0, 0, 0, 1, 1, 1], [0], [0]>} : vector<2x8x8xf32>, vector<2x8x8xf32>, vector<2x8x8xf32> -> vector<2x8x8xf32>
    "tpu.trace_stop"() : () -> ()
    %cst_25 = arith.constant dense<0xFF800000> : vector<2x8xf32>
    %59 = vector.multi_reduction <maximumf>, %58, %cst_25 [2] : vector<2x8x8xf32> to vector<2x8xf32>
    %60 = vector.shape_cast %59 : vector<2x8xf32> to vector<2x8x1xf32>
    %61 = vector.broadcast %60 : vector<2x8x1xf32> to vector<2x8x8xf32>
    %62 = arith.subf %58, %61 : vector<2x8x8xf32>
    %63 = math.exp %62 : vector<2x8x8xf32>
    %cst_26 = arith.constant dense<0.000000e+00> : vector<2x8xf32>
    %64 = vector.multi_reduction <add>, %63, %cst_26 [2] : vector<2x8x8xf32> to vector<2x8xf32>
    %65 = vector.shape_cast %64 : vector<2x8xf32> to vector<2x8x1xf32>
    %66 = tpu.reciprocal %65 {approx = true} : vector<2x8x1xf32> -> vector<2x8x1xf32>
    %67 = vector.broadcast %66 : vector<2x8x1xf32> to vector<2x8x8xf32>
    %68 = arith.mulf %63, %67 : vector<2x8x8xf32>
    %69 = vector.extract_strided_slice %16 {offsets = [0, 0, 16], sizes = [2, 8, 8], strides = [1, 1, 1]} : vector<2x8x32xf32> to vector<2x8x8xf32>
    "tpu.trace_start"() <{level = 10 : i32, message = "bqk,bkd->bqd"}> : () -> ()
    %cst_27 = arith.constant dense<0.000000e+00> : vector<2x8x8xf32>
    %70 = tpu.matmul %68, %69, %cst_27 {dimension_numbers = #tpu.dot_dimension_numbers<[2], [1], [1], [2], [0, 0, 0, 1, 1, 2], [0], [0]>} : vector<2x8x8xf32>, vector<2x8x8xf32>, vector<2x8x8xf32> -> vector<2x8x8xf32>
    "tpu.trace_stop"() : () -> ()
    %71 = vector.shape_cast %70 : vector<2x8x8xf32> to vector<16x8xf32>
    %c16 = arith.constant 16 : index
    %c0_28 = arith.constant 0 : index
    %72 = vector.load %arg5[%c16, %c0_28] : memref<32x32xf32, #tpu.memory_space<vmem>>, vector<8x32xf32>
    %cst_29 = arith.constant dense<0.000000e+00> : vector<16x32xf32>
    %73 = tpu.matmul %71, %72, %cst_29 {dimension_numbers = #tpu.dot_dimension_numbers<[1], [0], [0], [1], [0, 0, 1, 1], [], []>} : vector<16x8xf32>, vector<8x32xf32>, vector<16x32xf32> -> vector<16x32xf32>
    %74 = arith.addf %55, %73 : vector<16x32xf32>
    %75 = vector.extract_strided_slice %14 {offsets = [0, 0, 24], sizes = [2, 8, 8], strides = [1, 1, 1]} : vector<2x8x32xf32> to vector<2x8x8xf32>
    %76 = vector.extract_strided_slice %15 {offsets = [0, 0, 24], sizes = [2, 8, 8], strides = [1, 1, 1]} : vector<2x8x32xf32> to vector<2x8x8xf32>
    "tpu.trace_start"() <{level = 10 : i32, message = "bqd,bkd->bqk"}> : () -> ()
    %cst_30 = arith.constant dense<0.000000e+00> : vector<2x8x8xf32>
    %77 = tpu.matmul %75, %76, %cst_30 {dimension_numbers = #tpu.dot_dimension_numbers<[2], [2], [1], [1], [0, 0, 0, 1, 1, 1], [0], [0]>} : vector<2x8x8xf32>, vector<2x8x8xf32>, vector<2x8x8xf32> -> vector<2x8x8xf32>
    "tpu.trace_stop"() : () -> ()
    %cst_31 = arith.constant dense<0xFF800000> : vector<2x8xf32>
    %78 = vector.multi_reduction <maximumf>, %77, %cst_31 [2] : vector<2x8x8xf32> to vector<2x8xf32>
    %79 = vector.shape_cast %78 : vector<2x8xf32> to vector<2x8x1xf32>
    %80 = vector.broadcast %79 : vector<2x8x1xf32> to vector<2x8x8xf32>
    %81 = arith.subf %77, %80 : vector<2x8x8xf32>
    %82 = math.exp %81 : vector<2x8x8xf32>
    %cst_32 = arith.constant dense<0.000000e+00> : vector<2x8xf32>
    %83 = vector.multi_reduction <add>, %82, %cst_32 [2] : vector<2x8x8xf32> to vector<2x8xf32>
    %84 = vector.shape_cast %83 : vector<2x8xf32> to vector<2x8x1xf32>
    %85 = tpu.reciprocal %84 {approx = true} : vector<2x8x1xf32> -> vector<2x8x1xf32>
    %86 = vector.broadcast %85 : vector<2x8x1xf32> to vector<2x8x8xf32>
    %87 = arith.mulf %82, %86 : vector<2x8x8xf32>
    %88 = vector.extract_strided_slice %16 {offsets = [0, 0, 24], sizes = [2, 8, 8], strides = [1, 1, 1]} : vector<2x8x32xf32> to vector<2x8x8xf32>
    "tpu.trace_start"() <{level = 10 : i32, message = "bqk,bkd->bqd"}> : () -> ()
    %cst_33 = arith.constant dense<0.000000e+00> : vector<2x8x8xf32>
    %89 = tpu.matmul %87, %88, %cst_33 {dimension_numbers = #tpu.dot_dimension_numbers<[2], [1], [1], [2], [0, 0, 0, 1, 1, 2], [0], [0]>} : vector<2x8x8xf32>, vector<2x8x8xf32>, vector<2x8x8xf32> -> vector<2x8x8xf32>
    "tpu.trace_stop"() : () -> ()
    %90 = vector.shape_cast %89 : vector<2x8x8xf32> to vector<16x8xf32>
    %c24 = arith.constant 24 : index
    %c0_34 = arith.constant 0 : index
    %91 = vector.load %arg5[%c24, %c0_34] : memref<32x32xf32, #tpu.memory_space<vmem>>, vector<8x32xf32>
    %cst_35 = arith.constant dense<0.000000e+00> : vector<16x32xf32>
    %92 = tpu.matmul %90, %91, %cst_35 {dimension_numbers = #tpu.dot_dimension_numbers<[1], [0], [0], [1], [0, 0, 1, 1], [], []>} : vector<16x8xf32>, vector<8x32xf32>, vector<16x32xf32> -> vector<16x32xf32>
    %93 = arith.addf %74, %92 : vector<16x32xf32>
    %c0_36 = arith.constant 0 : index
    %c0_37 = arith.constant 0 : index
    %94 = vector.load %arg6[%c0_36, %c0_37] : memref<1x32xf32, #tpu.memory_space<vmem>>, vector<1x32xf32>
    %95 = vector.broadcast %94 : vector<1x32xf32> to vector<16x32xf32>
    %96 = arith.addf %93, %95 : vector<16x32xf32>
    %97 = arith.addf %1, %96 : vector<16x32xf32>
    %cst_38 = arith.constant dense<0.000000e+00> : vector<16xf32>
    %98 = vector.multi_reduction <add>, %97, %cst_38 [1] : vector<16x32xf32> to vector<16xf32>
    %99 = vector.shape_cast %98 : vector<16xf32> to vector<16x1xf32>
    %cst_39 = arith.constant 3.200000e+01 : f32
    %100 = vector.broadcast %cst_39 : f32 to vector<16x1xf32>
    %101 = arith.divf %99, %100 : vector<16x1xf32>
    %102 = vector.broadcast %101 : vector<16x1xf32> to vector<16x32xf32>
    %103 = arith.subf %97, %102 : vector<16x32xf32>
    %104 = arith.mulf %103, %103 : vector<16x32xf32>
    %cst_40 = arith.constant dense<0.000000e+00> : vector<16xf32>
    %105 = vector.multi_reduction <add>, %104, %cst_40 [1] : vector<16x32xf32> to vector<16xf32>
    %106 = vector.shape_cast %105 : vector<16xf32> to vector<16x1xf32>
    %cst_41 = arith.constant 3.200000e+01 : f32
    %107 = vector.broadcast %cst_41 : f32 to vector<16x1xf32>
    %108 = arith.divf %106, %107 : vector<16x1xf32>
    %cst_42 = arith.constant 9.99999974E-6 : f32
    %109 = vector.broadcast %cst_42 : f32 to vector<16x1xf32>
    %110 = arith.addf %108, %109 : vector<16x1xf32>
    %111 = math.rsqrt %110 : vector<16x1xf32>
    %112 = vector.broadcast %111 : vector<16x1xf32> to vector<16x32xf32>
    %113 = arith.mulf %103, %112 : vector<16x32xf32>
    %c0_43 = arith.constant 0 : index
    %c0_44 = arith.constant 0 : index
    %114 = vector.load %arg7[%c0_43, %c0_44] : memref<1x32xf32, #tpu.memory_space<vmem>>, vector<1x32xf32>
    %115 = vector.broadcast %114 : vector<1x32xf32> to vector<16x32xf32>
    %116 = arith.mulf %113, %115 : vector<16x32xf32>
    %c0_45 = arith.constant 0 : index
    %c0_46 = arith.constant 0 : index
    %117 = vector.load %arg8[%c0_45, %c0_46] : memref<1x32xf32, #tpu.memory_space<vmem>>, vector<1x32xf32>
    %118 = vector.broadcast %117 : vector<1x32xf32> to vector<16x32xf32>
    %119 = arith.addf %116, %118 : vector<16x32xf32>
    %c0_47 = arith.constant 0 : index
    %c0_48 = arith.constant 0 : index
    %120 = vector.load %arg9[%c0_47, %c0_48] : memref<32x32xf32, #tpu.memory_space<vmem>>, vector<32x32xf32>
    %cst_49 = arith.constant dense<0.000000e+00> : vector<16x32xf32>
    %121 = tpu.matmul %119, %120, %cst_49 {dimension_numbers = #tpu.dot_dimension_numbers<[1], [0], [0], [1], [0, 0, 1, 1], [], []>} : vector<16x32xf32>, vector<32x32xf32>, vector<16x32xf32> -> vector<16x32xf32>
    %c0_50 = arith.constant 0 : index
    %c0_51 = arith.constant 0 : index
    %122 = vector.load %arg10[%c0_50, %c0_51] : memref<1x32xf32, #tpu.memory_space<vmem>>, vector<1x32xf32>
    %123 = vector.broadcast %122 : vector<1x32xf32> to vector<16x32xf32>
    %124 = arith.addf %121, %123 : vector<16x32xf32>
    %c0_52 = arith.constant 0 : index
    %c0_53 = arith.constant 0 : index
    %125 = vector.load %arg11[%c0_52, %c0_53] : memref<32x64xf32, #tpu.memory_space<vmem>>, vector<32x64xf32>
    %cst_54 = arith.constant dense<0.000000e+00> : vector<32x64xf32>
    %126 = tpu.matmul %3, %125, %cst_54 {dimension_numbers = #tpu.dot_dimension_numbers<[1], [0], [0], [1], [0, 0, 1, 1], [], []>} : vector<32x32xf32>, vector<32x64xf32>, vector<32x64xf32> -> vector<32x64xf32>
    %c0_55 = arith.constant 0 : index
    %c0_56 = arith.constant 0 : index
    %127 = vector.load %arg12[%c0_55, %c0_56] : memref<1x64xf32, #tpu.memory_space<vmem>>, vector<1x64xf32>
    %128 = vector.broadcast %127 : vector<1x64xf32> to vector<32x64xf32>
    %129 = arith.addf %126, %128 : vector<32x64xf32>
    %130 = vector.extract_strided_slice %129 {offsets = [0, 0], sizes = [32, 32], strides = [1, 1]} : vector<32x64xf32> to vector<32x32xf32>
    %131 = vector.extract_strided_slice %129 {offsets = [0, 32], sizes = [32, 32], strides = [1, 1]} : vector<32x64xf32> to vector<32x32xf32>
    %cst_57 = arith.constant 0.353553385 : f32
    %132 = vector.broadcast %cst_57 : f32 to vector<16x32xf32>
    %133 = arith.mulf %124, %132 : vector<16x32xf32>
    %134 = vector.shape_cast %133 : vector<16x32xf32> to vector<2x8x32xf32>
    %135 = vector.shape_cast %130 : vector<32x32xf32> to vector<2x16x32xf32>
    %136 = vector.shape_cast %131 : vector<32x32xf32> to vector<2x16x32xf32>
    %cst_58 = arith.constant 0.000000e+00 : f32
    %137 = vector.broadcast %cst_58 : f32 to vector<16x32xf32>
    %138 = vector.extract_strided_slice %134 {offsets = [0, 0, 0], sizes = [2, 8, 8], strides = [1, 1, 1]} : vector<2x8x32xf32> to vector<2x8x8xf32>
    %139 = vector.extract_strided_slice %135 {offsets = [0, 0, 0], sizes = [2, 16, 8], strides = [1, 1, 1]} : vector<2x16x32xf32> to vector<2x16x8xf32>
    "tpu.trace_start"() <{level = 10 : i32, message = "bqd,bkd->bqk"}> : () -> ()
    %cst_59 = arith.constant dense<0.000000e+00> : vector<2x8x16xf32>
    %140 = tpu.matmul %138, %139, %cst_59 {dimension_numbers = #tpu.dot_dimension_numbers<[2], [2], [1], [1], [0, 0, 0, 1, 1, 1], [0], [0]>} : vector<2x8x8xf32>, vector<2x16x8xf32>, vector<2x8x16xf32> -> vector<2x8x16xf32>
    "tpu.trace_stop"() : () -> ()
    %cst_60 = arith.constant dense<0xFF800000> : vector<2x8xf32>
    %141 = vector.multi_reduction <maximumf>, %140, %cst_60 [2] : vector<2x8x16xf32> to vector<2x8xf32>
    %142 = vector.shape_cast %141 : vector<2x8xf32> to vector<2x8x1xf32>
    %143 = vector.broadcast %142 : vector<2x8x1xf32> to vector<2x8x16xf32>
    %144 = arith.subf %140, %143 : vector<2x8x16xf32>
    %145 = math.exp %144 : vector<2x8x16xf32>
    %cst_61 = arith.constant dense<0.000000e+00> : vector<2x8xf32>
    %146 = vector.multi_reduction <add>, %145, %cst_61 [2] : vector<2x8x16xf32> to vector<2x8xf32>
    %147 = vector.shape_cast %146 : vector<2x8xf32> to vector<2x8x1xf32>
    %148 = tpu.reciprocal %147 {approx = true} : vector<2x8x1xf32> -> vector<2x8x1xf32>
    %149 = vector.broadcast %148 : vector<2x8x1xf32> to vector<2x8x16xf32>
    %150 = arith.mulf %145, %149 : vector<2x8x16xf32>
    %151 = vector.extract_strided_slice %136 {offsets = [0, 0, 0], sizes = [2, 16, 8], strides = [1, 1, 1]} : vector<2x16x32xf32> to vector<2x16x8xf32>
    "tpu.trace_start"() <{level = 10 : i32, message = "bqk,bkd->bqd"}> : () -> ()
    %cst_62 = arith.constant dense<0.000000e+00> : vector<2x8x8xf32>
    %152 = tpu.matmul %150, %151, %cst_62 {dimension_numbers = #tpu.dot_dimension_numbers<[2], [1], [1], [2], [0, 0, 0, 1, 1, 2], [0], [0]>} : vector<2x8x16xf32>, vector<2x16x8xf32>, vector<2x8x8xf32> -> vector<2x8x8xf32>
    "tpu.trace_stop"() : () -> ()
    %153 = vector.shape_cast %152 : vector<2x8x8xf32> to vector<16x8xf32>
    %c0_63 = arith.constant 0 : index
    %c0_64 = arith.constant 0 : index
    %154 = vector.load %arg13[%c0_63, %c0_64] : memref<32x32xf32, #tpu.memory_space<vmem>>, vector<8x32xf32>
    %cst_65 = arith.constant dense<0.000000e+00> : vector<16x32xf32>
    %155 = tpu.matmul %153, %154, %cst_65 {dimension_numbers = #tpu.dot_dimension_numbers<[1], [0], [0], [1], [0, 0, 1, 1], [], []>} : vector<16x8xf32>, vector<8x32xf32>, vector<16x32xf32> -> vector<16x32xf32>
    %156 = arith.addf %137, %155 : vector<16x32xf32>
    %157 = vector.extract_strided_slice %134 {offsets = [0, 0, 8], sizes = [2, 8, 8], strides = [1, 1, 1]} : vector<2x8x32xf32> to vector<2x8x8xf32>
    %158 = vector.extract_strided_slice %135 {offsets = [0, 0, 8], sizes = [2, 16, 8], strides = [1, 1, 1]} : vector<2x16x32xf32> to vector<2x16x8xf32>
    "tpu.trace_start"() <{level = 10 : i32, message = "bqd,bkd->bqk"}> : () -> ()
    %cst_66 = arith.constant dense<0.000000e+00> : vector<2x8x16xf32>
    %159 = tpu.matmul %157, %158, %cst_66 {dimension_numbers = #tpu.dot_dimension_numbers<[2], [2], [1], [1], [0, 0, 0, 1, 1, 1], [0], [0]>} : vector<2x8x8xf32>, vector<2x16x8xf32>, vector<2x8x16xf32> -> vector<2x8x16xf32>
    "tpu.trace_stop"() : () -> ()
    %cst_67 = arith.constant dense<0xFF800000> : vector<2x8xf32>
    %160 = vector.multi_reduction <maximumf>, %159, %cst_67 [2] : vector<2x8x16xf32> to vector<2x8xf32>
    %161 = vector.shape_cast %160 : vector<2x8xf32> to vector<2x8x1xf32>
    %162 = vector.broadcast %161 : vector<2x8x1xf32> to vector<2x8x16xf32>
    %163 = arith.subf %159, %162 : vector<2x8x16xf32>
    %164 = math.exp %163 : vector<2x8x16xf32>
    %cst_68 = arith.constant dense<0.000000e+00> : vector<2x8xf32>
    %165 = vector.multi_reduction <add>, %164, %cst_68 [2] : vector<2x8x16xf32> to vector<2x8xf32>
    %166 = vector.shape_cast %165 : vector<2x8xf32> to vector<2x8x1xf32>
    %167 = tpu.reciprocal %166 {approx = true} : vector<2x8x1xf32> -> vector<2x8x1xf32>
    %168 = vector.broadcast %167 : vector<2x8x1xf32> to vector<2x8x16xf32>
    %169 = arith.mulf %164, %168 : vector<2x8x16xf32>
    %170 = vector.extract_strided_slice %136 {offsets = [0, 0, 8], sizes = [2, 16, 8], strides = [1, 1, 1]} : vector<2x16x32xf32> to vector<2x16x8xf32>
    "tpu.trace_start"() <{level = 10 : i32, message = "bqk,bkd->bqd"}> : () -> ()
    %cst_69 = arith.constant dense<0.000000e+00> : vector<2x8x8xf32>
    %171 = tpu.matmul %169, %170, %cst_69 {dimension_numbers = #tpu.dot_dimension_numbers<[2], [1], [1], [2], [0, 0, 0, 1, 1, 2], [0], [0]>} : vector<2x8x16xf32>, vector<2x16x8xf32>, vector<2x8x8xf32> -> vector<2x8x8xf32>
    "tpu.trace_stop"() : () -> ()
    %172 = vector.shape_cast %171 : vector<2x8x8xf32> to vector<16x8xf32>
    %c8_70 = arith.constant 8 : index
    %c0_71 = arith.constant 0 : index
    %173 = vector.load %arg13[%c8_70, %c0_71] : memref<32x32xf32, #tpu.memory_space<vmem>>, vector<8x32xf32>
    %cst_72 = arith.constant dense<0.000000e+00> : vector<16x32xf32>
    %174 = tpu.matmul %172, %173, %cst_72 {dimension_numbers = #tpu.dot_dimension_numbers<[1], [0], [0], [1], [0, 0, 1, 1], [], []>} : vector<16x8xf32>, vector<8x32xf32>, vector<16x32xf32> -> vector<16x32xf32>
    %175 = arith.addf %156, %174 : vector<16x32xf32>
    %176 = vector.extract_strided_slice %134 {offsets = [0, 0, 16], sizes = [2, 8, 8], strides = [1, 1, 1]} : vector<2x8x32xf32> to vector<2x8x8xf32>
    %177 = vector.extract_strided_slice %135 {offsets = [0, 0, 16], sizes = [2, 16, 8], strides = [1, 1, 1]} : vector<2x16x32xf32> to vector<2x16x8xf32>
    "tpu.trace_start"() <{level = 10 : i32, message = "bqd,bkd->bqk"}> : () -> ()
    %cst_73 = arith.constant dense<0.000000e+00> : vector<2x8x16xf32>
    %178 = tpu.matmul %176, %177, %cst_73 {dimension_numbers = #tpu.dot_dimension_numbers<[2], [2], [1], [1], [0, 0, 0, 1, 1, 1], [0], [0]>} : vector<2x8x8xf32>, vector<2x16x8xf32>, vector<2x8x16xf32> -> vector<2x8x16xf32>
    "tpu.trace_stop"() : () -> ()
    %cst_74 = arith.constant dense<0xFF800000> : vector<2x8xf32>
    %179 = vector.multi_reduction <maximumf>, %178, %cst_74 [2] : vector<2x8x16xf32> to vector<2x8xf32>
    %180 = vector.shape_cast %179 : vector<2x8xf32> to vector<2x8x1xf32>
    %181 = vector.broadcast %180 : vector<2x8x1xf32> to vector<2x8x16xf32>
    %182 = arith.subf %178, %181 : vector<2x8x16xf32>
    %183 = math.exp %182 : vector<2x8x16xf32>
    %cst_75 = arith.constant dense<0.000000e+00> : vector<2x8xf32>
    %184 = vector.multi_reduction <add>, %183, %cst_75 [2] : vector<2x8x16xf32> to vector<2x8xf32>
    %185 = vector.shape_cast %184 : vector<2x8xf32> to vector<2x8x1xf32>
    %186 = tpu.reciprocal %185 {approx = true} : vector<2x8x1xf32> -> vector<2x8x1xf32>
    %187 = vector.broadcast %186 : vector<2x8x1xf32> to vector<2x8x16xf32>
    %188 = arith.mulf %183, %187 : vector<2x8x16xf32>
    %189 = vector.extract_strided_slice %136 {offsets = [0, 0, 16], sizes = [2, 16, 8], strides = [1, 1, 1]} : vector<2x16x32xf32> to vector<2x16x8xf32>
    "tpu.trace_start"() <{level = 10 : i32, message = "bqk,bkd->bqd"}> : () -> ()
    %cst_76 = arith.constant dense<0.000000e+00> : vector<2x8x8xf32>
    %190 = tpu.matmul %188, %189, %cst_76 {dimension_numbers = #tpu.dot_dimension_numbers<[2], [1], [1], [2], [0, 0, 0, 1, 1, 2], [0], [0]>} : vector<2x8x16xf32>, vector<2x16x8xf32>, vector<2x8x8xf32> -> vector<2x8x8xf32>
    "tpu.trace_stop"() : () -> ()
    %191 = vector.shape_cast %190 : vector<2x8x8xf32> to vector<16x8xf32>
    %c16_77 = arith.constant 16 : index
    %c0_78 = arith.constant 0 : index
    %192 = vector.load %arg13[%c16_77, %c0_78] : memref<32x32xf32, #tpu.memory_space<vmem>>, vector<8x32xf32>
    %cst_79 = arith.constant dense<0.000000e+00> : vector<16x32xf32>
    %193 = tpu.matmul %191, %192, %cst_79 {dimension_numbers = #tpu.dot_dimension_numbers<[1], [0], [0], [1], [0, 0, 1, 1], [], []>} : vector<16x8xf32>, vector<8x32xf32>, vector<16x32xf32> -> vector<16x32xf32>
    %194 = arith.addf %175, %193 : vector<16x32xf32>
    %195 = vector.extract_strided_slice %134 {offsets = [0, 0, 24], sizes = [2, 8, 8], strides = [1, 1, 1]} : vector<2x8x32xf32> to vector<2x8x8xf32>
    %196 = vector.extract_strided_slice %135 {offsets = [0, 0, 24], sizes = [2, 16, 8], strides = [1, 1, 1]} : vector<2x16x32xf32> to vector<2x16x8xf32>
    "tpu.trace_start"() <{level = 10 : i32, message = "bqd,bkd->bqk"}> : () -> ()
    %cst_80 = arith.constant dense<0.000000e+00> : vector<2x8x16xf32>
    %197 = tpu.matmul %195, %196, %cst_80 {dimension_numbers = #tpu.dot_dimension_numbers<[2], [2], [1], [1], [0, 0, 0, 1, 1, 1], [0], [0]>} : vector<2x8x8xf32>, vector<2x16x8xf32>, vector<2x8x16xf32> -> vector<2x8x16xf32>
    "tpu.trace_stop"() : () -> ()
    %cst_81 = arith.constant dense<0xFF800000> : vector<2x8xf32>
    %198 = vector.multi_reduction <maximumf>, %197, %cst_81 [2] : vector<2x8x16xf32> to vector<2x8xf32>
    %199 = vector.shape_cast %198 : vector<2x8xf32> to vector<2x8x1xf32>
    %200 = vector.broadcast %199 : vector<2x8x1xf32> to vector<2x8x16xf32>
    %201 = arith.subf %197, %200 : vector<2x8x16xf32>
    %202 = math.exp %201 : vector<2x8x16xf32>
    %cst_82 = arith.constant dense<0.000000e+00> : vector<2x8xf32>
    %203 = vector.multi_reduction <add>, %202, %cst_82 [2] : vector<2x8x16xf32> to vector<2x8xf32>
    %204 = vector.shape_cast %203 : vector<2x8xf32> to vector<2x8x1xf32>
    %205 = tpu.reciprocal %204 {approx = true} : vector<2x8x1xf32> -> vector<2x8x1xf32>
    %206 = vector.broadcast %205 : vector<2x8x1xf32> to vector<2x8x16xf32>
    %207 = arith.mulf %202, %206 : vector<2x8x16xf32>
    %208 = vector.extract_strided_slice %136 {offsets = [0, 0, 24], sizes = [2, 16, 8], strides = [1, 1, 1]} : vector<2x16x32xf32> to vector<2x16x8xf32>
    "tpu.trace_start"() <{level = 10 : i32, message = "bqk,bkd->bqd"}> : () -> ()
    %cst_83 = arith.constant dense<0.000000e+00> : vector<2x8x8xf32>
    %209 = tpu.matmul %207, %208, %cst_83 {dimension_numbers = #tpu.dot_dimension_numbers<[2], [1], [1], [2], [0, 0, 0, 1, 1, 2], [0], [0]>} : vector<2x8x16xf32>, vector<2x16x8xf32>, vector<2x8x8xf32> -> vector<2x8x8xf32>
    "tpu.trace_stop"() : () -> ()
    %210 = vector.shape_cast %209 : vector<2x8x8xf32> to vector<16x8xf32>
    %c24_84 = arith.constant 24 : index
    %c0_85 = arith.constant 0 : index
    %211 = vector.load %arg13[%c24_84, %c0_85] : memref<32x32xf32, #tpu.memory_space<vmem>>, vector<8x32xf32>
    %cst_86 = arith.constant dense<0.000000e+00> : vector<16x32xf32>
    %212 = tpu.matmul %210, %211, %cst_86 {dimension_numbers = #tpu.dot_dimension_numbers<[1], [0], [0], [1], [0, 0, 1, 1], [], []>} : vector<16x8xf32>, vector<8x32xf32>, vector<16x32xf32> -> vector<16x32xf32>
    %213 = arith.addf %194, %212 : vector<16x32xf32>
    %c0_87 = arith.constant 0 : index
    %c0_88 = arith.constant 0 : index
    %214 = vector.load %arg14[%c0_87, %c0_88] : memref<1x32xf32, #tpu.memory_space<vmem>>, vector<1x32xf32>
    %215 = vector.broadcast %214 : vector<1x32xf32> to vector<16x32xf32>
    %216 = arith.addf %213, %215 : vector<16x32xf32>
    %217 = arith.addf %119, %216 : vector<16x32xf32>
    %cst_89 = arith.constant dense<0.000000e+00> : vector<16xf32>
    %218 = vector.multi_reduction <add>, %217, %cst_89 [1] : vector<16x32xf32> to vector<16xf32>
    %219 = vector.shape_cast %218 : vector<16xf32> to vector<16x1xf32>
    %cst_90 = arith.constant 3.200000e+01 : f32
    %220 = vector.broadcast %cst_90 : f32 to vector<16x1xf32>
    %221 = arith.divf %219, %220 : vector<16x1xf32>
    %222 = vector.broadcast %221 : vector<16x1xf32> to vector<16x32xf32>
    %223 = arith.subf %217, %222 : vector<16x32xf32>
    %224 = arith.mulf %223, %223 : vector<16x32xf32>
    %cst_91 = arith.constant dense<0.000000e+00> : vector<16xf32>
    %225 = vector.multi_reduction <add>, %224, %cst_91 [1] : vector<16x32xf32> to vector<16xf32>
    %226 = vector.shape_cast %225 : vector<16xf32> to vector<16x1xf32>
    %cst_92 = arith.constant 3.200000e+01 : f32
    %227 = vector.broadcast %cst_92 : f32 to vector<16x1xf32>
    %228 = arith.divf %226, %227 : vector<16x1xf32>
    %cst_93 = arith.constant 9.99999974E-6 : f32
    %229 = vector.broadcast %cst_93 : f32 to vector<16x1xf32>
    %230 = arith.addf %228, %229 : vector<16x1xf32>
    %231 = math.rsqrt %230 : vector<16x1xf32>
    %232 = vector.broadcast %231 : vector<16x1xf32> to vector<16x32xf32>
    %233 = arith.mulf %223, %232 : vector<16x32xf32>
    %c0_94 = arith.constant 0 : index
    %c0_95 = arith.constant 0 : index
    %234 = vector.load %arg15[%c0_94, %c0_95] : memref<1x32xf32, #tpu.memory_space<vmem>>, vector<1x32xf32>
    %235 = vector.broadcast %234 : vector<1x32xf32> to vector<16x32xf32>
    %236 = arith.mulf %233, %235 : vector<16x32xf32>
    %c0_96 = arith.constant 0 : index
    %c0_97 = arith.constant 0 : index
    %237 = vector.load %arg16[%c0_96, %c0_97] : memref<1x32xf32, #tpu.memory_space<vmem>>, vector<1x32xf32>
    %238 = vector.broadcast %237 : vector<1x32xf32> to vector<16x32xf32>
    %239 = arith.addf %236, %238 : vector<16x32xf32>
    %c0_98 = arith.constant 0 : index
    %c0_99 = arith.constant 0 : index
    %240 = vector.load %arg17[%c0_98, %c0_99] : memref<32x32xf32, #tpu.memory_space<vmem>>, vector<32x32xf32>
    %cst_100 = arith.constant dense<0.000000e+00> : vector<16x32xf32>
    %241 = tpu.matmul %239, %240, %cst_100 {dimension_numbers = #tpu.dot_dimension_numbers<[1], [0], [0], [1], [0, 0, 1, 1], [], []>} : vector<16x32xf32>, vector<32x32xf32>, vector<16x32xf32> -> vector<16x32xf32>
    %c0_101 = arith.constant 0 : index
    %c0_102 = arith.constant 0 : index
    %242 = vector.load %arg18[%c0_101, %c0_102] : memref<1x32xf32, #tpu.memory_space<vmem>>, vector<1x32xf32>
    %243 = vector.broadcast %242 : vector<1x32xf32> to vector<16x32xf32>
    %244 = arith.addf %241, %243 : vector<16x32xf32>
    %245 = vector.shape_cast %244 : vector<16x32xf32> to vector<2x8x32xf32>
    %c0_103 = arith.constant 0 : index
    %c0_104 = arith.constant 0 : index
    %c0_105 = arith.constant 0 : index
    %246 = vector.load %arg19[%c0_103, %c0_104, %c0_105] : memref<2x8x32xf32, #tpu.memory_space<vmem>>, vector<2x8x32xf32>
    tpu.vector_store %arg19[%c0_103, %c0_104, %c0_105], %245 {strides = array<i32>} : memref<2x8x32xf32, #tpu.memory_space<vmem>>, vector<2x8x32xf32>,
    return
  }
  func.func @transform_0(%arg0: i32) -> (i32, i32, i32) {
    %c0_i32 = arith.constant 0 : i32
    %c0_i32_0 = arith.constant 0 : i32
    %c0_i32_1 = arith.constant 0 : i32
    return %arg0, %c0_i32, %c0_i32_0 : i32, i32, i32
  }
  func.func @transform_1(%arg0: i32) -> (i32, i32, i32) {
    %c0_i32 = arith.constant 0 : i32
    %c0_i32_0 = arith.constant 0 : i32
    %c0_i32_1 = arith.constant 0 : i32
    return %arg0, %c0_i32, %c0_i32_0 : i32, i32, i32
  }
  func.func @transform_2(%arg0: i32) -> (i32, i32) {
    %c0_i32 = arith.constant 0 : i32
    %c0_i32_0 = arith.constant 0 : i32
    %c0_i32_1 = arith.constant 0 : i32
    return %c0_i32, %c0_i32_0 : i32, i32
  }
  func.func @transform_3(%arg0: i32) -> (i32, i32) {
    %c0_i32 = arith.constant 0 : i32
    %c0_i32_0 = arith.constant 0 : i32
    %c0_i32_1 = arith.constant 0 : i32
    return %c0_i32, %c0_i32_0 : i32, i32
  }
  func.func @transform_4(%arg0: i32) -> (i32, i32) {
    %c0_i32 = arith.constant 0 : i32
    %c0_i32_0 = arith.constant 0 : i32
    %c0_i32_1 = arith.constant 0 : i32
    return %c0_i32, %c0_i32_0 : i32, i32
  }
  func.func @transform_5(%arg0: i32) -> (i32, i32) {
    %c0_i32 = arith.constant 0 : i32
    %c0_i32_0 = arith.constant 0 : i32
    %c0_i32_1 = arith.constant 0 : i32
    return %c0_i32, %c0_i32_0 : i32, i32
  }
  func.func @transform_6(%arg0: i32) -> (i32, i32) {
    %c0_i32 = arith.constant 0 : i32
    %c0_i32_0 = arith.constant 0 : i32
    %c0_i32_1 = arith.constant 0 : i32
    return %c0_i32, %c0_i32_0 : i32, i32
  }
  func.func @transform_7(%arg0: i32) -> (i32, i32) {
    %c0_i32 = arith.constant 0 : i32
    %c0_i32_0 = arith.constant 0 : i32
    %c0_i32_1 = arith.constant 0 : i32
    return %c0_i32, %c0_i32_0 : i32, i32
  }
  func.func @transform_8(%arg0: i32) -> (i32, i32) {
    %c0_i32 = arith.constant 0 : i32
    %c0_i32_0 = arith.constant 0 : i32
    %c0_i32_1 = arith.constant 0 : i32
    return %c0_i32, %c0_i32_0 : i32, i32
  }
  func.func @transform_9(%arg0: i32) -> (i32, i32) {
    %c0_i32 = arith.constant 0 : i32
    %c0_i32_0 = arith.constant 0 : i32
    %c0_i32_1 = arith.constant 0 : i32
    return %c0_i32, %c0_i32_0 : i32, i32
  }
  func.func @transform_10(%arg0: i32) -> (i32, i32) {
    %c0_i32 = arith.constant 0 : i32
    %c0_i32_0 = arith.constant 0 : i32
    %c0_i32_1 = arith.constant 0 : i32
    return %c0_i32, %c0_i32_0 : i32, i32
  }
  func.func @transform_11(%arg0: i32) -> (i32, i32) {
    %c0_i32 = arith.constant 0 : i32
    %c0_i32_0 = arith.constant 0 : i32
    %c0_i32_1 = arith.constant 0 : i32
    return %c0_i32, %c0_i32_0 : i32, i32
  }
  func.func @transform_12(%arg0: i32) -> (i32, i32) {
    %c0_i32 = arith.constant 0 : i32
    %c0_i32_0 = arith.constant 0 : i32
    %c0_i32_1 = arith.constant 0 : i32
    return %c0_i32, %c0_i32_0 : i32, i32
  }
  func.func @transform_13(%arg0: i32) -> (i32, i32) {
    %c0_i32 = arith.constant 0 : i32
    %c0_i32_0 = arith.constant 0 : i32
    %c0_i32_1 = arith.constant 0 : i32
    return %c0_i32, %c0_i32_0 : i32, i32
  }
  func.func @transform_14(%arg0: i32) -> (i32, i32) {
    %c0_i32 = arith.constant 0 : i32
    %c0_i32_0 = arith.constant 0 : i32
    %c0_i32_1 = arith.constant 0 : i32
    return %c0_i32, %c0_i32_0 : i32, i32
  }
  func.func @transform_15(%arg0: i32) -> (i32, i32) {
    %c0_i32 = arith.constant 0 : i32
    %c0_i32_0 = arith.constant 0 : i32
    %c0_i32_1 = arith.constant 0 : i32
    return %c0_i32, %c0_i32_0 : i32, i32
  }
  func.func @transform_16(%arg0: i32) -> (i32, i32) {
    %c0_i32 = arith.constant 0 : i32
    %c0_i32_0 = arith.constant 0 : i32
    %c0_i32_1 = arith.constant 0 : i32
    return %c0_i32, %c0_i32_0 : i32, i32
  }
  func.func @transform_17(%arg0: i32) -> (i32, i32) {
    %c0_i32 = arith.constant 0 : i32
    %c0_i32_0 = arith.constant 0 : i32
    %c0_i32_1 = arith.constant 0 : i32
    return %c0_i32, %c0_i32_0 : i32, i32
  }
  func.func @transform_18(%arg0: i32) -> (i32, i32, i32) {
    %c0_i32 = arith.constant 0 : i32
    %c0_i32_0 = arith.constant 0 : i32
    %c0_i32_1 = arith.constant 0 : i32
    return %arg0, %c0_i32, %c0_i32_0 : i32, i32, i32
  }
}

</mosaic_0001>

<llo_original>
// kernel: cross_layer_forward.1
$region0: #{cross_layer_forward.1}
  #allocation0 [shape = 'u32[]', space=smem, size = 0x4, offset = 0x4, fixed_abs, tag = 'smem constant byte address 0x4 - core index']
  #allocation1 [shape = 'u32[144,128]{1,0:T(1,128)}', space=vmem, size = 0x12000, scoped, tag = 'internal scratch']
  %s0 = inlined_call_operand.vmem [shape: f32[2,8,32], index: 0, kind: input, shape index: {}]
  %s1 = inlined_call_operand.vmem [shape: f32[2,16,32], index: 1, kind: input, shape index: {}]
  %s2 = inlined_call_operand.vmem [shape: f32[32,96], index: 2, kind: input, shape index: {}]
  %s3 = inlined_call_operand.vmem [shape: f32[1,96], index: 3, kind: input, shape index: {}]
  %s4 = inlined_call_operand.vmem [shape: f32[32,32], index: 4, kind: input, shape index: {}]
  %s5 = inlined_call_operand.vmem [shape: f32[1,32], index: 5, kind: input, shape index: {}]
  %s6 = inlined_call_operand.vmem [shape: f32[1,32], index: 6, kind: input, shape index: {}]
  %s7 = inlined_call_operand.vmem [shape: f32[1,32], index: 7, kind: input, shape index: {}]
  %s8 = inlined_call_operand.vmem [shape: f32[32,32], index: 8, kind: input, shape index: {}]
  %s9 = inlined_call_operand.vmem [shape: f32[1,32], index: 9, kind: input, shape index: {}]
  %s10 = inlined_call_operand.vmem [shape: f32[32,64], index: 10, kind: input, shape index: {}]
  %s11 = inlined_call_operand.vmem [shape: f32[1,64], index: 11, kind: input, shape index: {}]
  %s12 = inlined_call_operand.vmem [shape: f32[32,32], index: 12, kind: input, shape index: {}]
  %s13 = inlined_call_operand.vmem [shape: f32[1,32], index: 13, kind: input, shape index: {}]
  %s14 = inlined_call_operand.vmem [shape: f32[1,32], index: 14, kind: input, shape index: {}]
  %s15 = inlined_call_operand.vmem [shape: f32[1,32], index: 15, kind: input, shape index: {}]
  %s16 = inlined_call_operand.vmem [shape: f32[32,32], index: 16, kind: input, shape index: {}]
  %s17 = inlined_call_operand.vmem [shape: f32[1,32], index: 17, kind: input, shape index: {}]
  %s18 = inlined_call_operand.vmem [shape: f32[2,8,32], index: 18, kind: output, shape index: {}]
  %s19 = sld [smem:[#allocation0]]
  $region82: #{cross_layer_forward.1} parent=0
    _
  %s21 = ssub.s32 1, %s19
  %s22 = scalar_select 0, %s21, %s19
  // Predicated region
  $region2: #{cross_layer_forward.1} parent=0 // pred_check
    _
  $region3: #{cross_layer_forward.1} parent=0 // pred_check_branch
    %24 = sbr.rel (0) target = $region5
  $region4: #{cross_layer_forward.1} parent=0 // pred_region
    _
  $region5: #{cross_layer_forward.1} parent=0 // pred_fallthru
    _
  // Predicated region
  $region6: #{cross_layer_forward.1} parent=0 // pred_check
    _
  $region7: #{cross_layer_forward.1} parent=0 // pred_check_branch
    %26 = sbr.rel (0) target = $region9
  $region8: #{cross_layer_forward.1} parent=0 // pred_region
    _
  $region9: #{cross_layer_forward.1} parent=0 // pred_fallthru
    _
  // Predicated region
  $region10: #{cross_layer_forward.1} parent=0 // pred_check
    _
  $region11: #{cross_layer_forward.1} parent=0 // pred_check_branch
    %28 = sbr.rel (0) target = $region13
  $region12: #{cross_layer_forward.1} parent=0 // pred_region
    _
  $region13: #{cross_layer_forward.1} parent=0 // pred_fallthru
    _
  // Predicated region
  $region14: #{cross_layer_forward.1} parent=0 // pred_check
    _
  $region15: #{cross_layer_forward.1} parent=0 // pred_check_branch
    %30 = sbr.rel (0) target = $region17
  $region16: #{cross_layer_forward.1} parent=0 // pred_region
    _
  $region17: #{cross_layer_forward.1} parent=0 // pred_fallthru
    _
  // Predicated region
  $region18: #{cross_layer_forward.1} parent=0 // pred_check
    _
  $region19: #{cross_layer_forward.1} parent=0 // pred_check_branch
    %32 = sbr.rel (0) target = $region21
  $region20: #{cross_layer_forward.1} parent=0 // pred_region
    _
  $region21: #{cross_layer_forward.1} parent=0 // pred_fallthru
    _
  // Predicated region
  $region22: #{cross_layer_forward.1} parent=0 // pred_check
    _
  $region23: #{cross_layer_forward.1} parent=0 // pred_check_branch
    %34 = sbr.rel (0) target = $region25
  $region24: #{cross_layer_forward.1} parent=0 // pred_region
    _
  $region25: #{cross_layer_forward.1} parent=0 // pred_fallthru
    _
  // Predicated region
  $region26: #{cross_layer_forward.1} parent=0 // pred_check
    _
  $region27: #{cross_layer_forward.1} parent=0 // pred_check_branch
    %36 = sbr.rel (0) target = $region29
  $region28: #{cross_layer_forward.1} parent=0 // pred_region
    _
  $region29: #{cross_layer_forward.1} parent=0 // pred_fallthru
    _
  // Predicated region
  $region30: #{cross_layer_forward.1} parent=0 // pred_check
    _
  $region31: #{cross_layer_forward.1} parent=0 // pred_check_branch
    %38 = sbr.rel (0) target = $region33
  $region32: #{cross_layer_forward.1} parent=0 // pred_region
    _
  $region33: #{cross_layer_forward.1} parent=0 // pred_fallthru
    _
  // Predicated region
  $region34: #{cross_layer_forward.1} parent=0 // pred_check
    _
  $region35: #{cross_layer_forward.1} parent=0 // pred_check_branch
    %40 = sbr.rel (0) target = $region37
  $region36: #{cross_layer_forward.1} parent=0 // pred_region
    _
  $region37: #{cross_layer_forward.1} parent=0 // pred_fallthru
    _
  // Predicated region
  $region38: #{cross_layer_forward.1} parent=0 // pred_check
    _
  $region39: #{cross_layer_forward.1} parent=0 // pred_check_branch
    %42 = sbr.rel (0) target = $region41
  $region40: #{cross_layer_forward.1} parent=0 // pred_region
    _
  $region41: #{cross_layer_forward.1} parent=0 // pred_fallthru
    _
  // Predicated region
  $region42: #{cross_layer_forward.1} parent=0 // pred_check
    _
  $region43: #{cross_layer_forward.1} parent=0 // pred_check_branch
    %44 = sbr.rel (0) target = $region45
  $region44: #{cross_layer_forward.1} parent=0 // pred_region
    _
  $region45: #{cross_layer_forward.1} parent=0 // pred_fallthru
    _
  // Predicated region
  $region46: #{cross_layer_forward.1} parent=0 // pred_check
    _
  $region47: #{cross_layer_forward.1} parent=0 // pred_check_branch
    %46 = sbr.rel (0) target = $region49
  $region48: #{cross_layer_forward.1} parent=0 // pred_region
    _
  $region49: #{cross_layer_forward.1} parent=0 // pred_fallthru
    _
  // Predicated region
  $region50: #{cross_layer_forward.1} parent=0 // pred_check
    _
  $region51: #{cross_layer_forward.1} parent=0 // pred_check_branch
    %48 = sbr.rel (0) target = $region53
  $region52: #{cross_layer_forward.1} parent=0 // pred_region
    _
  $region53: #{cross_layer_forward.1} parent=0 // pred_fallthru
    _
  // Predicated region
  $region54: #{cross_layer_forward.1} parent=0 // pred_check
    _
  $region55: #{cross_layer_forward.1} parent=0 // pred_check_branch
    %50 = sbr.rel (0) target = $region57
  $region56: #{cross_layer_forward.1} parent=0 // pred_region
    _
  $region57: #{cross_layer_forward.1} parent=0 // pred_fallthru
    _
  // Predicated region
  $region58: #{cross_layer_forward.1} parent=0 // pred_check
    _
  $region59: #{cross_layer_forward.1} parent=0 // pred_check_branch
    %52 = sbr.rel (0) target = $region61
  $region60: #{cross_layer_forward.1} parent=0 // pred_region
    _
  $region61: #{cross_layer_forward.1} parent=0 // pred_fallthru
    _
  // Predicated region
  $region62: #{cross_layer_forward.1} parent=0 // pred_check
    _
  $region63: #{cross_layer_forward.1} parent=0 // pred_check_branch
    %54 = sbr.rel (0) target = $region65
  $region64: #{cross_layer_forward.1} parent=0 // pred_region
    _
  $region65: #{cross_layer_forward.1} parent=0 // pred_fallthru
    _
  // Predicated region
  $region66: #{cross_layer_forward.1} parent=0 // pred_check
    _
  $region67: #{cross_layer_forward.1} parent=0 // pred_check_branch
    %56 = sbr.rel (0) target = $region69
  $region68: #{cross_layer_forward.1} parent=0 // pred_region
    _
  $region69: #{cross_layer_forward.1} parent=0 // pred_fallthru
    _
  // Predicated region
  $region70: #{cross_layer_forward.1} parent=0 // pred_check
    _
  $region71: #{cross_layer_forward.1} parent=0 // pred_check_branch
    %58 = sbr.rel (0) target = $region73
  $region72: #{cross_layer_forward.1} parent=0 // pred_region
    _
  $region73: #{cross_layer_forward.1} parent=0 // pred_fallthru
    _
  %v59 = vld [vmem:[%s0] sm:$0xff]
  %v60 = vld [vmem:[%s0 + $0x8] sm:$0xff]
  %v61 = vld [vmem:[%s1] sm:$0xff]
  %v62 = vld [vmem:[%s1 + $0x8] sm:$0xff]
  %v63 = vld [vmem:[%s1 + $0x10] sm:$0xff]
  %v64 = vld [vmem:[%s1 + $0x18] sm:$0xff]
  %v65 = vld [vmem:[%s2] sm:$0xff]
  %v66 = vld [vmem:[%s2 + $0x8] sm:$0xff]
  %v67 = vld [vmem:[%s2 + $0x10] sm:$0xff]
  %v68 = vld [vmem:[%s2 + $0x18] sm:$0xff]
  %v69 = vld [vmem:[%s3] sm:$0x1]
  %v71 = vlaneseq
  %v72 = vshrl.u32 %v71, 7
  %v73 = vsub.s32 0, %v72
  %v74 = vrot.slane %v69, %v73
  %vm76 = vcmask 261120
  %v78 = vsel %vm76, %v59, 0
  %v81 = vsel %vm76, %v60, 0
  %83 = vmatprep.subr.mxu0 0.0
  %84 = vmatpush1.msra.mxu0 %v65
  %85 = vmatprep.subr.mxu0 0.0
  %86 = vmatpush1.msra.mxu0 %v66
  %87 = vmatprep.subr.mxu0 0.0
  %88 = vmatpush1.msra.mxu0 %v67
  %89 = vmatprep.subr.mxu0 0.0
  %90 = vmatpush1.msra.mxu0 %v68
  %91 = vmatprep.subr.mxu0 0.0
  %92 = vmatpush1.msra.mxu0 0.0
  %93 = vmatprep.subr.mxu0 0.0
  %94 = vmatpush1.msra.mxu0 0.0
  %95 = vmatprep.subr.mxu0 0.0
  %96 = vmatpush1.msra.mxu0 0.0
  %97 = vmatprep.subr.mxu0 0.0
  %98 = vmatpush1.msra.mxu0 0.0
  %99 = vmatprep.subr.mxu0 0.0
  %100 = vmatpush1.msra.mxu0 0.0
  %101 = vmatprep.subr.mxu0 0.0
  %102 = vmatpush1.msra.mxu0 0.0
  %103 = vmatprep.subr.mxu0 0.0
  %104 = vmatpush1.msra.mxu0 0.0
  %105 = vmatprep.subr.mxu0 0.0
  %106 = vmatpush1.msra.mxu0 0.0
  %107 = vmatprep.subr.mxu0 0.0
  %108 = vmatpush1.msra.mxu0 0.0
  %109 = vmatprep.subr.mxu0 0.0
  %110 = vmatpush1.msra.mxu0 0.0
  %111 = vmatprep.subr.mxu0 0.0
  %112 = vmatpush1.msra.mxu0 0.0
  %113 = vmatprep.subr.mxu0 0.0
  %114 = vmatpush1.msra.mxu0 0.0
  %115 = vmatprep.subr.mxu0 0.0
  %116 = vmatpush1.msra.mxu0 0.0
  %117 = vmatprep.subr.mxu0 0.0
  %118 = vmatpush1.msra.mxu0 0.0
  %119 = vmatprep.subr.mxu0 0.0
  %120 = vmatpush1.msra.mxu0 0.0
  %121 = vmatprep.subr.mxu0 0.0
  %122 = vmatpush1.msra.mxu0 0.0
  %123 = vmatprep.subr.mxu0 0.0
  %124 = vmatpush1.msra.mxu0 0.0
  %125 = vmatprep.subr.mxu0 0.0
  %126 = vmatpush1.msra.mxu0 0.0
  %127 = vmatprep.subr.mxu0 0.0
  %128 = vmatpush1.msra.mxu0 0.0
  %129 = vmatprep.subr.mxu0 0.0
  %130 = vmatpush1.msra.mxu0 0.0
  %131 = vmatprep.subr.mxu0 0.0
  %132 = vmatpush1.msra.mxu0 0.0
  %133 = vmatprep.subr.mxu0 0.0
  %134 = vmatpush1.msra.mxu0 0.0
  %135 = vmatprep.subr.mxu0 0.0
  %136 = vmatpush1.msra.mxu0 0.0
  %137 = vmatprep.subr.mxu0 0.0
  %138 = vmatpush1.msra.mxu0 0.0
  %139 = vmatprep.subr.mxu0 0.0
  %140 = vmatpush1.msra.mxu0 0.0
  %141 = vmatprep.subr.mxu0 0.0
  %142 = vmatpush1.msra.mxu0 0.0
  %143 = vmatprep.subr.mxu0 0.0
  %144 = vmatpush1.msra.mxu0 0.0
  %145 = vmatprep.subr.mxu0 0.0
  %146 = vmatpush1.msra.mxu0 0.0
  %147 = vmatprep.mubr.f32.mxu0 0.0
  %148 = vmatmul.mubr.f32.gmra.mrb[0].mxu0 %v78
  %v149 = vpop.f32.mrb[0].mxu0
  %v150 = vadd.f32 %v74, %v149
  %v151 = vpop.f32.mrb[0].mxu0
  %152 = vmatprep.mubr.f32.mxu0 0.0
  %153 = vmatmul.mubr.f32.gmra.mrb[0].mxu0 %v81
  %v154 = vpop.f32.mrb[0].mxu0
  %v155 = vadd.f32 %v74, %v154
  %v156 = vpop.f32.mrb[0].mxu0
  %157 = vdwg.mxu0
  %v158 = vmul.f32 %v150, 0.35355338
  %v159 = vmul.f32 %v155, 0.35355338
  %161 = vrot.lane.b32.xlu0 %v150, 96
  %v162 = vpop.permute.xlu0 %161
  %vm163 = vcmask 64512
  %v165 = vsel %vm163, %v158, 0
  %v167 = vsel %vm163, %v162, 0
  %169 = vmatprep.subr.mxu0 0.0
  %170 = vmatpush1.xpose.msra.mxu0 %v167
  %171 = vmatprep.subr.mxu0 0.0
  %172 = vmatpush1.xpose.msra.mxu0 0.0
  %173 = vmatprep.subr.mxu0 0.0
  %174 = vmatpush1.xpose.msra.mxu0 0.0
  %175 = vmatprep.subr.mxu0 0.0
  %176 = vmatpush1.xpose.msra.mxu0 0.0
  %177 = vmatprep.subr.mxu0 0.0
  %178 = vmatpush1.xpose.msra.mxu0 0.0
  %179 = vmatprep.subr.mxu0 0.0
  %180 = vmatpush1.xpose.msra.mxu0 0.0
  %181 = vmatprep.subr.mxu0 0.0
  %182 = vmatpush1.xpose.msra.mxu0 0.0
  %183 = vmatprep.subr.mxu0 0.0
  %184 = vmatpush1.xpose.msra.mxu0 0.0
  %185 = vmatprep.subr.mxu0 0.0
  %186 = vmatpush1.xpose.msra.mxu0 0.0
  %187 = vmatprep.subr.mxu0 0.0
  %188 = vmatpush1.xpose.msra.mxu0 0.0
  %189 = vmatprep.subr.mxu0 0.0
  %190 = vmatpush1.xpose.msra.mxu0 0.0
  %191 = vmatprep.subr.mxu0 0.0
  %192 = vmatpush1.xpose.msra.mxu0 0.0
  %193 = vmatprep.subr.mxu0 0.0
  %194 = vmatpush1.xpose.msra.mxu0 0.0
  %195 = vmatprep.subr.mxu0 0.0
  %196 = vmatpush1.xpose.msra.mxu0 0.0
  %197 = vmatprep.subr.mxu0 0.0
  %198 = vmatpush1.xpose.msra.mxu0 0.0
  %199 = vmatprep.subr.mxu0 0.0
  %200 = vmatpush1.xpose.msra.mxu0 0.0
  %201 = vmatprep.subr.mxu0 0.0
  %202 = vmatpush1.xpose.msra.mxu0 0.0
  %203 = vmatprep.subr.mxu0 0.0
  %204 = vmatpush1.xpose.msra.mxu0 0.0
  %205 = vmatprep.subr.mxu0 0.0
  %206 = vmatpush1.xpose.msra.mxu0 0.0
  %207 = vmatprep.subr.mxu0 0.0
  %208 = vmatpush1.xpose.msra.mxu0 0.0
  %209 = vmatprep.subr.mxu0 0.0
  %210 = vmatpush1.xpose.msra.mxu0 0.0
  %211 = vmatprep.subr.mxu0 0.0
  %212 = vmatpush1.xpose.msra.mxu0 0.0
  %213 = vmatprep.subr.mxu0 0.0
  %214 = vmatpush1.xpose.msra.mxu0 0.0
  %215 = vmatprep.subr.mxu0 0.0
  %216 = vmatpush1.xpose.msra.mxu0 0.0
  %217 = vmatprep.subr.mxu0 0.0
  %218 = vmatpush1.xpose.msra.mxu0 0.0
  %219 = vmatprep.subr.mxu0 0.0
  %220 = vmatpush1.xpose.msra.mxu0 0.0
  %221 = vmatprep.subr.mxu0 0.0
  %222 = vmatpush1.xpose.msra.mxu0 0.0
  %223 = vmatprep.subr.mxu0 0.0
  %224 = vmatpush1.xpose.msra.mxu0 0.0
  %225 = vmatprep.subr.mxu0 0.0
  %226 = vmatpush1.xpose.msra.mxu0 0.0
  %227 = vmatprep.subr.mxu0 0.0
  %228 = vmatpush1.xpose.msra.mxu0 0.0
  %229 = vmatprep.subr.mxu0 0.0
  %230 = vmatpush1.xpose.msra.mxu0 0.0
  %231 = vmatprep.subr.mxu0 0.0
  %232 = vmatpush1.xpose.msra.mxu0 0.0
  %233 = vmatprep.mubr.f32.mxu0 0.0
  %234 = vmatmul.mubr.f32.gmra.mrb[0].mxu0 %v165
  %v235 = vpop.f32.mrb[0].mxu0
  %v236 = vadd.f32 0.0, %v235
  %v237 = vpop.f32.mrb[0].mxu0
  %238 = vdwg.mxu0
  %240 = vrot.lane.b32.xlu0 %v155, 96
  %v241 = vpop.permute.xlu0 %240
  %v243 = vsel %vm163, %v159, 0
  %v245 = vsel %vm163, %v241, 0
  %247 = vmatprep.subr.mxu0 0.0
  %248 = vmatpush1.xpose.msra.mxu0 %v245
  %249 = vmatprep.subr.mxu0 0.0
  %250 = vmatpush1.xpose.msra.mxu0 0.0
  %251 = vmatprep.subr.mxu0 0.0
  %252 = vmatpush1.xpose.msra.mxu0 0.0
  %253 = vmatprep.subr.mxu0 0.0
  %254 = vmatpush1.xpose.msra.mxu0 0.0
  %255 = vmatprep.subr.mxu0 0.0
  %256 = vmatpush1.xpose.msra.mxu0 0.0
  %257 = vmatprep.subr.mxu0 0.0
  %258 = vmatpush1.xpose.msra.mxu0 0.0
  %259 = vmatprep.subr.mxu0 0.0
  %260 = vmatpush1.xpose.msra.mxu0 0.0
  %261 = vmatprep.subr.mxu0 0.0
  %262 = vmatpush1.xpose.msra.mxu0 0.0
  %263 = vmatprep.subr.mxu0 0.0
  %264 = vmatpush1.xpose.msra.mxu0 0.0
  %265 = vmatprep.subr.mxu0 0.0
  %266 = vmatpush1.xpose.msra.mxu0 0.0
  %267 = vmatprep.subr.mxu0 0.0
  %268 = vmatpush1.xpose.msra.mxu0 0.0
  %269 = vmatprep.subr.mxu0 0.0
  %270 = vmatpush1.xpose.msra.mxu0 0.0
  %271 = vmatprep.subr.mxu0 0.0
  %272 = vmatpush1.xpose.msra.mxu0 0.0
  %273 = vmatprep.subr.mxu0 0.0
  %274 = vmatpush1.xpose.msra.mxu0 0.0
  %275 = vmatprep.subr.mxu0 0.0
  %276 = vmatpush1.xpose.msra.mxu0 0.0
  %277 = vmatprep.subr.mxu0 0.0
  %278 = vmatpush1.xpose.msra.mxu0 0.0
  %279 = vmatprep.subr.mxu0 0.0
  %280 = vmatpush1.xpose.msra.mxu0 0.0
  %281 = vmatprep.subr.mxu0 0.0
  %282 = vmatpush1.xpose.msra.mxu0 0.0
  %283 = vmatprep.subr.mxu0 0.0
  %284 = vmatpush1.xpose.msra.mxu0 0.0
  %285 = vmatprep.subr.mxu0 0.0
  %286 = vmatpush1.xpose.msra.mxu0 0.0
  %287 = vmatprep.subr.mxu0 0.0
  %288 = vmatpush1.xpose.msra.mxu0 0.0
  %289 = vmatprep.subr.mxu0 0.0
  %290 = vmatpush1.xpose.msra.mxu0 0.0
  %291 = vmatprep.subr.mxu0 0.0
  %292 = vmatpush1.xpose.msra.mxu0 0.0
  %293 = vmatprep.subr.mxu0 0.0
  %294 = vmatpush1.xpose.msra.mxu0 0.0
  %295 = vmatprep.subr.mxu0 0.0
  %296 = vmatpush1.xpose.msra.mxu0 0.0
  %297 = vmatprep.subr.mxu0 0.0
  %298 = vmatpush1.xpose.msra.mxu0 0.0
  %299 = vmatprep.subr.mxu0 0.0
  %300 = vmatpush1.xpose.msra.mxu0 0.0
  %301 = vmatprep.subr.mxu0 0.0
  %302 = vmatpush1.xpose.msra.mxu0 0.0
  %303 = vmatprep.subr.mxu0 0.0
  %304 = vmatpush1.xpose.msra.mxu0 0.0
  %305 = vmatprep.subr.mxu0 0.0
  %306 = vmatpush1.xpose.msra.mxu0 0.0
  %307 = vmatprep.subr.mxu0 0.0
  %308 = vmatpush1.xpose.msra.mxu0 0.0
  %309 = vmatprep.subr.mxu0 0.0
  %310 = vmatpush1.xpose.msra.mxu0 0.0
  %311 = vmatprep.mubr.f32.mxu0 0.0
  %312 = vmatmul.mubr.f32.gmra.mrb[0].mxu0 %v243
  %v313 = vpop.f32.mrb[0].mxu0
  %v314 = vadd.f32 0.0, %v313
  %v315 = vpop.f32.mrb[0].mxu0
  %316 = vdwg.mxu0
  %v317 = vsel %vm163, %v236, -inf
  %318 = vmax.xlane.f32.xlu0 %v317
  %v319 = vpop.xlane.xlu0 %318
  %v320 = vsel %vm163, %v314, -inf
  %321 = vmax.xlane.f32.xlu0 %v320
  %v322 = vpop.xlane.xlu0 %321
  %v323 = vsub.f32 %v236, %v319
  %v324 = vsub.f32 %v314, %v322
  %v325 = vmul.f32 %v323, 1.442695
  %v326 = vpow.pop %v325
  %v327 = vmul.f32 %v324, 1.442695
  %v328 = vpow.pop %v327
  %v329 = vsel %vm163, %v326, 0.0
  %330 = vadd.xlane.f32.xlu0 %v329
  %v331 = vpop.xlane.xlu0 %330
  %v332 = vsel %vm163, %v328, 0.0
  %333 = vadd.xlane.f32.xlu0 %v332
  %v334 = vpop.xlane.xlu0 %333
  %v335 = vrcp.pop %v331
  %v336 = vrcp.pop %v334
  %v337 = vmul.f32 %v326, %v335
  %v338 = vmul.f32 %v328, %v336
  %339 = vrot.lane.b32.xlu0 %v150, 64
  %v340 = vpop.permute.xlu0 %339
  %v343 = vsel %vm163, %v337, 0
  %345 = vmatprep.subr.mxu0 0.0
  %346 = vmatpush1.msra.mxu0 %v340
  %347 = vmatprep.subr.mxu0 0.0
  %348 = vmatpush1.msra.mxu0 0.0
  %349 = vmatprep.subr.mxu0 0.0
  %350 = vmatpush1.msra.mxu0 0.0
  %351 = vmatprep.subr.mxu0 0.0
  %352 = vmatpush1.msra.mxu0 0.0
  %353 = vmatprep.subr.mxu0 0.0
  %354 = vmatpush1.msra.mxu0 0.0
  %355 = vmatprep.subr.mxu0 0.0
  %356 = vmatpush1.msra.mxu0 0.0
  %357 = vmatprep.subr.mxu0 0.0
  %358 = vmatpush1.msra.mxu0 0.0
  %359 = vmatprep.subr.mxu0 0.0
  %360 = vmatpush1.msra.mxu0 0.0
  %361 = vmatprep.subr.mxu0 0.0
  %362 = vmatpush1.msra.mxu0 0.0
  %363 = vmatprep.subr.mxu0 0.0
  %364 = vmatpush1.msra.mxu0 0.0
  %365 = vmatprep.subr.mxu0 0.0
  %366 = vmatpush1.msra.mxu0 0.0
  %367 = vmatprep.subr.mxu0 0.0
  %368 = vmatpush1.msra.mxu0 0.0
  %369 = vmatprep.subr.mxu0 0.0
  %370 = vmatpush1.msra.mxu0 0.0
  %371 = vmatprep.subr.mxu0 0.0
  %372 = vmatpush1.msra.mxu0 0.0
  %373 = vmatprep.subr.mxu0 0.0
  %374 = vmatpush1.msra.mxu0 0.0
  %375 = vmatprep.subr.mxu0 0.0
  %376 = vmatpush1.msra.mxu0 0.0
  %377 = vmatprep.subr.mxu0 0.0
  %378 = vmatpush1.msra.mxu0 0.0
  %379 = vmatprep.subr.mxu0 0.0
  %380 = vmatpush1.msra.mxu0 0.0
  %381 = vmatprep.subr.mxu0 0.0
  %382 = vmatpush1.msra.mxu0 0.0
  %383 = vmatprep.subr.mxu0 0.0
  %384 = vmatpush1.msra.mxu0 0.0
  %385 = vmatprep.subr.mxu0 0.0
  %386 = vmatpush1.msra.mxu0 0.0
  %387 = vmatprep.subr.mxu0 0.0
  %388 = vmatpush1.msra.mxu0 0.0
  %389 = vmatprep.subr.mxu0 0.0
  %390 = vmatpush1.msra.mxu0 0.0
  %391 = vmatprep.subr.mxu0 0.0
  %392 = vmatpush1.msra.mxu0 0.0
  %393 = vmatprep.subr.mxu0 0.0
  %394 = vmatpush1.msra.mxu0 0.0
  %395 = vmatprep.subr.mxu0 0.0
  %396 = vmatpush1.msra.mxu0 0.0
  %397 = vmatprep.subr.mxu0 0.0
  %398 = vmatpush1.msra.mxu0 0.0
  %399 = vmatprep.subr.mxu0 0.0
  %400 = vmatpush1.msra.mxu0 0.0
  %401 = vmatprep.subr.mxu0 0.0
  %402 = vmatpush1.msra.mxu0 0.0
  %403 = vmatprep.subr.mxu0 0.0
  %404 = vmatpush1.msra.mxu0 0.0
  %405 = vmatprep.subr.mxu0 0.0
  %406 = vmatpush1.msra.mxu0 0.0
  %407 = vmatprep.subr.mxu0 0.0
  %408 = vmatpush1.msra.mxu0 0.0
  %409 = vmatprep.mubr.f32.mxu0 0.0
  %410 = vmatmul.mubr.f32.gmra.mrb[0].mxu0 %v343
  %v411 = vpop.f32.mrb[0].mxu0
  %v412 = vadd.f32 0.0, %v411
  %v413 = vpop.f32.mrb[0].mxu0
  %414 = vdwg.mxu0
  %415 = vrot.lane.b32.xlu0 %v155, 64
  %v416 = vpop.permute.xlu0 %415
  %v419 = vsel %vm163, %v338, 0
  %421 = vmatprep.subr.mxu0 0.0
  %422 = vmatpush1.msra.mxu0 %v416
  %423 = vmatprep.subr.mxu0 0.0
  %424 = vmatpush1.msra.mxu0 0.0
  %425 = vmatprep.subr.mxu0 0.0
  %426 = vmatpush1.msra.mxu0 0.0
  %427 = vmatprep.subr.mxu0 0.0
  %428 = vmatpush1.msra.mxu0 0.0
  %429 = vmatprep.subr.mxu0 0.0
  %430 = vmatpush1.msra.mxu0 0.0
  %431 = vmatprep.subr.mxu0 0.0
  %432 = vmatpush1.msra.mxu0 0.0
  %433 = vmatprep.subr.mxu0 0.0
  %434 = vmatpush1.msra.mxu0 0.0
  %435 = vmatprep.subr.mxu0 0.0
  %436 = vmatpush1.msra.mxu0 0.0
  %437 = vmatprep.subr.mxu0 0.0
  %438 = vmatpush1.msra.mxu0 0.0
  %439 = vmatprep.subr.mxu0 0.0
  %440 = vmatpush1.msra.mxu0 0.0
  %441 = vmatprep.subr.mxu0 0.0
  %442 = vmatpush1.msra.mxu0 0.0
  %443 = vmatprep.subr.mxu0 0.0
  %444 = vmatpush1.msra.mxu0 0.0
  %445 = vmatprep.subr.mxu0 0.0
  %446 = vmatpush1.msra.mxu0 0.0
  %447 = vmatprep.subr.mxu0 0.0
  %448 = vmatpush1.msra.mxu0 0.0
  %449 = vmatprep.subr.mxu0 0.0
  %450 = vmatpush1.msra.mxu0 0.0
  %451 = vmatprep.subr.mxu0 0.0
  %452 = vmatpush1.msra.mxu0 0.0
  %453 = vmatprep.subr.mxu0 0.0
  %454 = vmatpush1.msra.mxu0 0.0
  %455 = vmatprep.subr.mxu0 0.0
  %456 = vmatpush1.msra.mxu0 0.0
  %457 = vmatprep.subr.mxu0 0.0
  %458 = vmatpush1.msra.mxu0 0.0
  %459 = vmatprep.subr.mxu0 0.0
  %460 = vmatpush1.msra.mxu0 0.0
  %461 = vmatprep.subr.mxu0 0.0
  %462 = vmatpush1.msra.mxu0 0.0
  %463 = vmatprep.subr.mxu0 0.0
  %464 = vmatpush1.msra.mxu0 0.0
  %465 = vmatprep.subr.mxu0 0.0
  %466 = vmatpush1.msra.mxu0 0.0
  %467 = vmatprep.subr.mxu0 0.0
  %468 = vmatpush1.msra.mxu0 0.0
  %469 = vmatprep.subr.mxu0 0.0
  %470 = vmatpush1.msra.mxu0 0.0
  %471 = vmatprep.subr.mxu0 0.0
  %472 = vmatpush1.msra.mxu0 0.0
  %473 = vmatprep.subr.mxu0 0.0
  %474 = vmatpush1.msra.mxu0 0.0
  %475 = vmatprep.subr.mxu0 0.0
  %476 = vmatpush1.msra.mxu0 0.0
  %477 = vmatprep.subr.mxu0 0.0
  %478 = vmatpush1.msra.mxu0 0.0
  %479 = vmatprep.subr.mxu0 0.0
  %480 = vmatpush1.msra.mxu0 0.0
  %481 = vmatprep.subr.mxu0 0.0
  %482 = vmatpush1.msra.mxu0 0.0
  %483 = vmatprep.subr.mxu0 0.0
  %484 = vmatpush1.msra.mxu0 0.0
  %485 = vmatprep.mubr.f32.mxu0 0.0
  %486 = vmatmul.mubr.f32.gmra.mrb[0].mxu0 %v419
  %v487 = vpop.f32.mrb[0].mxu0
  %v488 = vadd.f32 0.0, %v487
  %v489 = vpop.f32.mrb[0].mxu0
  %490 = vdwg.mxu0
  %v491 = vld [vmem:[%s4] sm:$0xff]
  %492 = vrot.lane.b32.xlu0 %v158, 120
  %v493 = vpop.permute.xlu0 %492
  %494 = vrot.lane.b32.xlu0 %v150, 88
  %v495 = vpop.permute.xlu0 %494
  %v496 = vsel %vm163, %v493, 0
  %v498 = vsel %vm163, %v495, 0
  %500 = vmatprep.subr.mxu0 0.0
  %501 = vmatpush1.xpose.msra.mxu0 %v498
  %502 = vmatprep.subr.mxu0 0.0
  %503 = vmatpush1.xpose.msra.mxu0 0.0
  %504 = vmatprep.subr.mxu0 0.0
  %505 = vmatpush1.xpose.msra.mxu0 0.0
  %506 = vmatprep.subr.mxu0 0.0
  %507 = vmatpush1.xpose.msra.mxu0 0.0
  %508 = vmatprep.subr.mxu0 0.0
  %509 = vmatpush1.xpose.msra.mxu0 0.0
  %510 = vmatprep.subr.mxu0 0.0
  %511 = vmatpush1.xpose.msra.mxu0 0.0
  %512 = vmatprep.subr.mxu0 0.0
  %513 = vmatpush1.xpose.msra.mxu0 0.0
  %514 = vmatprep.subr.mxu0 0.0
  %515 = vmatpush1.xpose.msra.mxu0 0.0
  %516 = vmatprep.subr.mxu0 0.0
  %517 = vmatpush1.xpose.msra.mxu0 0.0
  %518 = vmatprep.subr.mxu0 0.0
  %519 = vmatpush1.xpose.msra.mxu0 0.0
  %520 = vmatprep.subr.mxu0 0.0
  %521 = vmatpush1.xpose.msra.mxu0 0.0
  %522 = vmatprep.subr.mxu0 0.0
  %523 = vmatpush1.xpose.msra.mxu0 0.0
  %524 = vmatprep.subr.mxu0 0.0
  %525 = vmatpush1.xpose.msra.mxu0 0.0
  %526 = vmatprep.subr.mxu0 0.0
  %527 = vmatpush1.xpose.msra.mxu0 0.0
  %528 = vmatprep.subr.mxu0 0.0
  %529 = vmatpush1.xpose.msra.mxu0 0.0
  %530 = vmatprep.subr.mxu0 0.0
  %531 = vmatpush1.xpose.msra.mxu0 0.0
  %532 = vmatprep.subr.mxu0 0.0
  %533 = vmatpush1.xpose.msra.mxu0 0.0
  %534 = vmatprep.subr.mxu0 0.0
  %535 = vmatpush1.xpose.msra.mxu0 0.0
  %536 = vmatprep.subr.mxu0 0.0
  %537 = vmatpush1.xpose.msra.mxu0 0.0
  %538 = vmatprep.subr.mxu0 0.0
  %539 = vmatpush1.xpose.msra.mxu0 0.0
  %540 = vmatprep.subr.mxu0 0.0
  %541 = vmatpush1.xpose.msra.mxu0 0.0
  %542 = vmatprep.subr.mxu0 0.0
  %543 = vmatpush1.xpose.msra.mxu0 0.0
  %544 = vmatprep.subr.mxu0 0.0
  %545 = vmatpush1.xpose.msra.mxu0 0.0
  %546 = vmatprep.subr.mxu0 0.0
  %547 = vmatpush1.xpose.msra.mxu0 0.0
  %548 = vmatprep.subr.mxu0 0.0
  %549 = vmatpush1.xpose.msra.mxu0 0.0
  %550 = vmatprep.subr.mxu0 0.0
  %551 = vmatpush1.xpose.msra.mxu0 0.0
  %552 = vmatprep.subr.mxu0 0.0
  %553 = vmatpush1.xpose.msra.mxu0 0.0
  %554 = vmatprep.subr.mxu0 0.0
  %555 = vmatpush1.xpose.msra.mxu0 0.0
  %556 = vmatprep.subr.mxu0 0.0
  %557 = vmatpush1.xpose.msra.mxu0 0.0
  %558 = vmatprep.subr.mxu0 0.0
  %559 = vmatpush1.xpose.msra.mxu0 0.0
  %560 = vmatprep.subr.mxu0 0.0
  %561 = vmatpush1.xpose.msra.mxu0 0.0
  %562 = vmatprep.subr.mxu0 0.0
  %563 = vmatpush1.xpose.msra.mxu0 0.0
  %564 = vmatprep.mubr.f32.mxu0 0.0
  %565 = vmatmul.mubr.f32.gmra.mrb[0].mxu0 %v496
  %v566 = vpop.f32.mrb[0].mxu0
  %v567 = vadd.f32 0.0, %v566
  %v568 = vpop.f32.mrb[0].mxu0
  %569 = vdwg.mxu0
  %570 = vrot.lane.b32.xlu0 %v159, 120
  %v571 = vpop.permute.xlu0 %570
  %572 = vrot.lane.b32.xlu0 %v155, 88
  %v573 = vpop.permute.xlu0 %572
  %v574 = vsel %vm163, %v571, 0
  %v576 = vsel %vm163, %v573, 0
  %578 = vmatprep.subr.mxu0 0.0
  %579 = vmatpush1.xpose.msra.mxu0 %v576
  %580 = vmatprep.subr.mxu0 0.0
  %581 = vmatpush1.xpose.msra.mxu0 0.0
  %582 = vmatprep.subr.mxu0 0.0
  %583 = vmatpush1.xpose.msra.mxu0 0.0
  %584 = vmatprep.subr.mxu0 0.0
  %585 = vmatpush1.xpose.msra.mxu0 0.0
  %586 = vmatprep.subr.mxu0 0.0
  %587 = vmatpush1.xpose.msra.mxu0 0.0
  %588 = vmatprep.subr.mxu0 0.0
  %589 = vmatpush1.xpose.msra.mxu0 0.0
  %590 = vmatprep.subr.mxu0 0.0
  %591 = vmatpush1.xpose.msra.mxu0 0.0
  %592 = vmatprep.subr.mxu0 0.0
  %593 = vmatpush1.xpose.msra.mxu0 0.0
  %594 = vmatprep.subr.mxu0 0.0
  %595 = vmatpush1.xpose.msra.mxu0 0.0
  %596 = vmatprep.subr.mxu0 0.0
  %597 = vmatpush1.xpose.msra.mxu0 0.0
  %598 = vmatprep.subr.mxu0 0.0
  %599 = vmatpush1.xpose.msra.mxu0 0.0
  %600 = vmatprep.subr.mxu0 0.0
  %601 = vmatpush1.xpose.msra.mxu0 0.0
  %602 = vmatprep.subr.mxu0 0.0
  %603 = vmatpush1.xpose.msra.mxu0 0.0
  %604 = vmatprep.subr.mxu0 0.0
  %605 = vmatpush1.xpose.msra.mxu0 0.0
  %606 = vmatprep.subr.mxu0 0.0
  %607 = vmatpush1.xpose.msra.mxu0 0.0
  %608 = vmatprep.subr.mxu0 0.0
  %609 = vmatpush1.xpose.msra.mxu0 0.0
  %610 = vmatprep.subr.mxu0 0.0
  %611 = vmatpush1.xpose.msra.mxu0 0.0
  %612 = vmatprep.subr.mxu0 0.0
  %613 = vmatpush1.xpose.msra.mxu0 0.0
  %614 = vmatprep.subr.mxu0 0.0
  %615 = vmatpush1.xpose.msra.mxu0 0.0
  %616 = vmatprep.subr.mxu0 0.0
  %617 = vmatpush1.xpose.msra.mxu0 0.0
  %618 = vmatprep.subr.mxu0 0.0
  %619 = vmatpush1.xpose.msra.mxu0 0.0
  %620 = vmatprep.subr.mxu0 0.0
  %621 = vmatpush1.xpose.msra.mxu0 0.0
  %622 = vmatprep.subr.mxu0 0.0
  %623 = vmatpush1.xpose.msra.mxu0 0.0
  %624 = vmatprep.subr.mxu0 0.0
  %625 = vmatpush1.xpose.msra.mxu0 0.0
  %626 = vmatprep.subr.mxu0 0.0
  %627 = vmatpush1.xpose.msra.mxu0 0.0
  %628 = vmatprep.subr.mxu0 0.0
  %629 = vmatpush1.xpose.msra.mxu0 0.0
  %630 = vmatprep.subr.mxu0 0.0
  %631 = vmatpush1.xpose.msra.mxu0 0.0
  %632 = vmatprep.subr.mxu0 0.0
  %633 = vmatpush1.xpose.msra.mxu0 0.0
  %634 = vmatprep.subr.mxu0 0.0
  %635 = vmatpush1.xpose.msra.mxu0 0.0
  %636 = vmatprep.subr.mxu0 0.0
  %637 = vmatpush1.xpose.msra.mxu0 0.0
  %638 = vmatprep.subr.mxu0 0.0
  %639 = vmatpush1.xpose.msra.mxu0 0.0
  %640 = vmatprep.subr.mxu0 0.0
  %641 = vmatpush1.xpose.msra.mxu0 0.0
  %642 = vmatprep.mubr.f32.mxu0 0.0
  %643 = vmatmul.mubr.f32.gmra.mrb[0].mxu0 %v574
  %v644 = vpop.f32.mrb[0].mxu0
  %v645 = vadd.f32 0.0, %v644
  %v646 = vpop.f32.mrb[0].mxu0
  %647 = vdwg.mxu0
  %v648 = vsel %vm163, %v567, -inf
  %649 = vmax.xlane.f32.xlu0 %v648
  %v650 = vpop.xlane.xlu0 %649
  %v651 = vsel %vm163, %v645, -inf
  %652 = vmax.xlane.f32.xlu0 %v651
  %v653 = vpop.xlane.xlu0 %652
  %v654 = vsub.f32 %v567, %v650
  %v655 = vsub.f32 %v645, %v653
  %v656 = vmul.f32 %v654, 1.442695
  %v657 = vpow.pop %v656
  %v658 = vmul.f32 %v655, 1.442695
  %v659 = vpow.pop %v658
  %v660 = vsel %vm163, %v657, 0.0
  %661 = vadd.xlane.f32.xlu0 %v660
  %v662 = vpop.xlane.xlu0 %661
  %v663 = vsel %vm163, %v659, 0.0
  %664 = vadd.xlane.f32.xlu0 %v663
  %v665 = vpop.xlane.xlu0 %664
  %v666 = vrcp.pop %v662
  %v667 = vrcp.pop %v665
  %v668 = vmul.f32 %v657, %v666
  %v669 = vmul.f32 %v659, %v667
  %670 = vrot.lane.b32.xlu0 %v150, 56
  %v671 = vpop.permute.xlu0 %670
  %v674 = vsel %vm163, %v668, 0
  %676 = vmatprep.subr.mxu0 0.0
  %677 = vmatpush1.msra.mxu0 %v671
  %678 = vmatprep.subr.mxu0 0.0
  %679 = vmatpush1.msra.mxu0 0.0
  %680 = vmatprep.subr.mxu0 0.0
  %681 = vmatpush1.msra.mxu0 0.0
  %682 = vmatprep.subr.mxu0 0.0
  %683 = vmatpush1.msra.mxu0 0.0
  %684 = vmatprep.subr.mxu0 0.0
  %685 = vmatpush1.msra.mxu0 0.0
  %686 = vmatprep.subr.mxu0 0.0
  %687 = vmatpush1.msra.mxu0 0.0
  %688 = vmatprep.subr.mxu0 0.0
  %689 = vmatpush1.msra.mxu0 0.0
  %690 = vmatprep.subr.mxu0 0.0
  %691 = vmatpush1.msra.mxu0 0.0
  %692 = vmatprep.subr.mxu0 0.0
  %693 = vmatpush1.msra.mxu0 0.0
  %694 = vmatprep.subr.mxu0 0.0
  %695 = vmatpush1.msra.mxu0 0.0
  %696 = vmatprep.subr.mxu0 0.0
  %697 = vmatpush1.msra.mxu0 0.0
  %698 = vmatprep.subr.mxu0 0.0
  %699 = vmatpush1.msra.mxu0 0.0
  %700 = vmatprep.subr.mxu0 0.0
  %701 = vmatpush1.msra.mxu0 0.0
  %702 = vmatprep.subr.mxu0 0.0
  %703 = vmatpush1.msra.mxu0 0.0
  %704 = vmatprep.subr.mxu0 0.0
  %705 = vmatpush1.msra.mxu0 0.0
  %706 = vmatprep.subr.mxu0 0.0
  %707 = vmatpush1.msra.mxu0 0.0
  %708 = vmatprep.subr.mxu0 0.0
  %709 = vmatpush1.msra.mxu0 0.0
  %710 = vmatprep.subr.mxu0 0.0
  %711 = vmatpush1.msra.mxu0 0.0
  %712 = vmatprep.subr.mxu0 0.0
  %713 = vmatpush1.msra.mxu0 0.0
  %714 = vmatprep.subr.mxu0 0.0
  %715 = vmatpush1.msra.mxu0 0.0
  %716 = vmatprep.subr.mxu0 0.0
  %717 = vmatpush1.msra.mxu0 0.0
  %718 = vmatprep.subr.mxu0 0.0
  %719 = vmatpush1.msra.mxu0 0.0
  %720 = vmatprep.subr.mxu0 0.0
  %721 = vmatpush1.msra.mxu0 0.0
  %722 = vmatprep.subr.mxu0 0.0
  %723 = vmatpush1.msra.mxu0 0.0
  %724 = vmatprep.subr.mxu0 0.0
  %725 = vmatpush1.msra.mxu0 0.0
  %726 = vmatprep.subr.mxu0 0.0
  %727 = vmatpush1.msra.mxu0 0.0
  %728 = vmatprep.subr.mxu0 0.0
  %729 = vmatpush1.msra.mxu0 0.0
  %730 = vmatprep.subr.mxu0 0.0
  %731 = vmatpush1.msra.mxu0 0.0
  %732 = vmatprep.subr.mxu0 0.0
  %733 = vmatpush1.msra.mxu0 0.0
  %734 = vmatprep.subr.mxu0 0.0
  %735 = vmatpush1.msra.mxu0 0.0
  %736 = vmatprep.subr.mxu0 0.0
  %737 = vmatpush1.msra.mxu0 0.0
  %738 = vmatprep.subr.mxu0 0.0
  %739 = vmatpush1.msra.mxu0 0.0
  %740 = vmatprep.mubr.f32.mxu0 0.0
  %741 = vmatmul.mubr.f32.gmra.mrb[0].mxu0 %v674
  %v742 = vpop.f32.mrb[0].mxu0
  %v743 = vadd.f32 0.0, %v742
  %v744 = vpop.f32.mrb[0].mxu0
  %745 = vdwg.mxu0
  %746 = vrot.lane.b32.xlu0 %v155, 56
  %v747 = vpop.permute.xlu0 %746
  %v750 = vsel %vm163, %v669, 0
  %752 = vmatprep.subr.mxu0 0.0
  %753 = vmatpush1.msra.mxu0 %v747
  %754 = vmatprep.subr.mxu0 0.0
  %755 = vmatpush1.msra.mxu0 0.0
  %756 = vmatprep.subr.mxu0 0.0
  %757 = vmatpush1.msra.mxu0 0.0
  %758 = vmatprep.subr.mxu0 0.0
  %759 = vmatpush1.msra.mxu0 0.0
  %760 = vmatprep.subr.mxu0 0.0
  %761 = vmatpush1.msra.mxu0 0.0
  %762 = vmatprep.subr.mxu0 0.0
  %763 = vmatpush1.msra.mxu0 0.0
  %764 = vmatprep.subr.mxu0 0.0
  %765 = vmatpush1.msra.mxu0 0.0
  %766 = vmatprep.subr.mxu0 0.0
  %767 = vmatpush1.msra.mxu0 0.0
  %768 = vmatprep.subr.mxu0 0.0
  %769 = vmatpush1.msra.mxu0 0.0
  %770 = vmatprep.subr.mxu0 0.0
  %771 = vmatpush1.msra.mxu0 0.0
  %772 = vmatprep.subr.mxu0 0.0
  %773 = vmatpush1.msra.mxu0 0.0
  %774 = vmatprep.subr.mxu0 0.0
  %775 = vmatpush1.msra.mxu0 0.0
  %776 = vmatprep.subr.mxu0 0.0
  %777 = vmatpush1.msra.mxu0 0.0
  %778 = vmatprep.subr.mxu0 0.0
  %779 = vmatpush1.msra.mxu0 0.0
  %780 = vmatprep.subr.mxu0 0.0
  %781 = vmatpush1.msra.mxu0 0.0
  %782 = vmatprep.subr.mxu0 0.0
  %783 = vmatpush1.msra.mxu0 0.0
  %784 = vmatprep.subr.mxu0 0.0
  %785 = vmatpush1.msra.mxu0 0.0
  %786 = vmatprep.subr.mxu0 0.0
  %787 = vmatpush1.msra.mxu0 0.0
  %788 = vmatprep.subr.mxu0 0.0
  %789 = vmatpush1.msra.mxu0 0.0
  %790 = vmatprep.subr.mxu0 0.0
  %791 = vmatpush1.msra.mxu0 0.0
  %792 = vmatprep.subr.mxu0 0.0
  %793 = vmatpush1.msra.mxu0 0.0
  %794 = vmatprep.subr.mxu0 0.0
  %795 = vmatpush1.msra.mxu0 0.0
  %796 = vmatprep.subr.mxu0 0.0
  %797 = vmatpush1.msra.mxu0 0.0
  %798 = vmatprep.subr.mxu0 0.0
  %799 = vmatpush1.msra.mxu0 0.0
  %800 = vmatprep.subr.mxu0 0.0
  %801 = vmatpush1.msra.mxu0 0.0
  %802 = vmatprep.subr.mxu0 0.0
  %803 = vmatpush1.msra.mxu0 0.0
  %804 = vmatprep.subr.mxu0 0.0
  %805 = vmatpush1.msra.mxu0 0.0
  %806 = vmatprep.subr.mxu0 0.0
  %807 = vmatpush1.msra.mxu0 0.0
  %808 = vmatprep.subr.mxu0 0.0
  %809 = vmatpush1.msra.mxu0 0.0
  %810 = vmatprep.subr.mxu0 0.0
  %811 = vmatpush1.msra.mxu0 0.0
  %812 = vmatprep.subr.mxu0 0.0
  %813 = vmatpush1.msra.mxu0 0.0
  %814 = vmatprep.subr.mxu0 0.0
  %815 = vmatpush1.msra.mxu0 0.0
  %816 = vmatprep.mubr.f32.mxu0 0.0
  %817 = vmatmul.mubr.f32.gmra.mrb[0].mxu0 %v750
  %v818 = vpop.f32.mrb[0].mxu0
  %v819 = vadd.f32 0.0, %v818
  %v820 = vpop.f32.mrb[0].mxu0
  %821 = vdwg.mxu0
  %v822 = vld [vmem:[%s4 + $0x8] sm:$0xff]
  %v824 = vsel %vm163, %v743, 0
  %v827 = vsel %vm163, %v819, 0
  %829 = vmatprep.subr.mxu0 0.0
  %830 = vmatpush1.msra.mxu0 %v822
  %831 = vmatprep.subr.mxu0 0.0
  %832 = vmatpush1.msra.mxu0 0.0
  %833 = vmatprep.subr.mxu0 0.0
  %834 = vmatpush1.msra.mxu0 0.0
  %835 = vmatprep.subr.mxu0 0.0
  %836 = vmatpush1.msra.mxu0 0.0
  %837 = vmatprep.subr.mxu0 0.0
  %838 = vmatpush1.msra.mxu0 0.0
  %839 = vmatprep.subr.mxu0 0.0
  %840 = vmatpush1.msra.mxu0 0.0
  %841 = vmatprep.subr.mxu0 0.0
  %842 = vmatpush1.msra.mxu0 0.0
  %843 = vmatprep.subr.mxu0 0.0
  %844 = vmatpush1.msra.mxu0 0.0
  %845 = vmatprep.subr.mxu0 0.0
  %846 = vmatpush1.msra.mxu0 0.0
  %847 = vmatprep.subr.mxu0 0.0
  %848 = vmatpush1.msra.mxu0 0.0
  %849 = vmatprep.subr.mxu0 0.0
  %850 = vmatpush1.msra.mxu0 0.0
  %851 = vmatprep.subr.mxu0 0.0
  %852 = vmatpush1.msra.mxu0 0.0
  %853 = vmatprep.subr.mxu0 0.0
  %854 = vmatpush1.msra.mxu0 0.0
  %855 = vmatprep.subr.mxu0 0.0
  %856 = vmatpush1.msra.mxu0 0.0
  %857 = vmatprep.subr.mxu0 0.0
  %858 = vmatpush1.msra.mxu0 0.0
  %859 = vmatprep.subr.mxu0 0.0
  %860 = vmatpush1.msra.mxu0 0.0
  %861 = vmatprep.subr.mxu0 0.0
  %862 = vmatpush1.msra.mxu0 0.0
  %863 = vmatprep.subr.mxu0 0.0
  %864 = vmatpush1.msra.mxu0 0.0
  %865 = vmatprep.subr.mxu0 0.0
  %866 = vmatpush1.msra.mxu0 0.0
  %867 = vmatprep.subr.mxu0 0.0
  %868 = vmatpush1.msra.mxu0 0.0
  %869 = vmatprep.subr.mxu0 0.0
  %870 = vmatpush1.msra.mxu0 0.0
  %871 = vmatprep.subr.mxu0 0.0
  %872 = vmatpush1.msra.mxu0 0.0
  %873 = vmatprep.subr.mxu0 0.0
  %874 = vmatpush1.msra.mxu0 0.0
  %875 = vmatprep.subr.mxu0 0.0
  %876 = vmatpush1.msra.mxu0 0.0
  %877 = vmatprep.subr.mxu0 0.0
  %878 = vmatpush1.msra.mxu0 0.0
  %879 = vmatprep.subr.mxu0 0.0
  %880 = vmatpush1.msra.mxu0 0.0
  %881 = vmatprep.subr.mxu0 0.0
  %882 = vmatpush1.msra.mxu0 0.0
  %883 = vmatprep.subr.mxu0 0.0
  %884 = vmatpush1.msra.mxu0 0.0
  %885 = vmatprep.subr.mxu0 0.0
  %886 = vmatpush1.msra.mxu0 0.0
  %887 = vmatprep.subr.mxu0 0.0
  %888 = vmatpush1.msra.mxu0 0.0
  %889 = vmatprep.subr.mxu0 0.0
  %890 = vmatpush1.msra.mxu0 0.0
  %891 = vmatprep.subr.mxu0 0.0
  %892 = vmatpush1.msra.mxu0 0.0
  %893 = vmatprep.mubr.f32.mxu0 0.0
  %894 = vmatmul.mubr.f32.gmra.mrb[0].mxu0 %v824
  %v895 = vpop.f32.mrb[0].mxu0
  %v896 = vadd.f32 0.0, %v895
  %v897 = vpop.f32.mrb[0].mxu0
  %898 = vmatprep.mubr.f32.mxu0 0.0
  %899 = vmatmul.mubr.f32.gmra.mrb[0].mxu0 %v827
  %v900 = vpop.f32.mrb[0].mxu0
  %v901 = vadd.f32 0.0, %v900
  %v902 = vpop.f32.mrb[0].mxu0
  %903 = vdwg.mxu0
  %v905 = vsel %vm163, %v412, 0
  %v908 = vsel %vm163, %v488, 0
  %910 = vmatprep.subr.mxu0 0.0
  %911 = vmatpush1.msra.mxu0 %v491
  %912 = vmatprep.subr.mxu0 0.0
  %913 = vmatpush1.msra.mxu0 0.0
  %914 = vmatprep.subr.mxu0 0.0
  %915 = vmatpush1.msra.mxu0 0.0
  %916 = vmatprep.subr.mxu0 0.0
  %917 = vmatpush1.msra.mxu0 0.0
  %918 = vmatprep.subr.mxu0 0.0
  %919 = vmatpush1.msra.mxu0 0.0
  %920 = vmatprep.subr.mxu0 0.0
  %921 = vmatpush1.msra.mxu0 0.0
  %922 = vmatprep.subr.mxu0 0.0
  %923 = vmatpush1.msra.mxu0 0.0
  %924 = vmatprep.subr.mxu0 0.0
  %925 = vmatpush1.msra.mxu0 0.0
  %926 = vmatprep.subr.mxu0 0.0
  %927 = vmatpush1.msra.mxu0 0.0
  %928 = vmatprep.subr.mxu0 0.0
  %929 = vmatpush1.msra.mxu0 0.0
  %930 = vmatprep.subr.mxu0 0.0
  %931 = vmatpush1.msra.mxu0 0.0
  %932 = vmatprep.subr.mxu0 0.0
  %933 = vmatpush1.msra.mxu0 0.0
  %934 = vmatprep.subr.mxu0 0.0
  %935 = vmatpush1.msra.mxu0 0.0
  %936 = vmatprep.subr.mxu0 0.0
  %937 = vmatpush1.msra.mxu0 0.0
  %938 = vmatprep.subr.mxu0 0.0
  %939 = vmatpush1.msra.mxu0 0.0
  %940 = vmatprep.subr.mxu0 0.0
  %941 = vmatpush1.msra.mxu0 0.0
  %942 = vmatprep.subr.mxu0 0.0
  %943 = vmatpush1.msra.mxu0 0.0
  %944 = vmatprep.subr.mxu0 0.0
  %945 = vmatpush1.msra.mxu0 0.0
  %946 = vmatprep.subr.mxu0 0.0
  %947 = vmatpush1.msra.mxu0 0.0
  %948 = vmatprep.subr.mxu0 0.0
  %949 = vmatpush1.msra.mxu0 0.0
  %950 = vmatprep.subr.mxu0 0.0
  %951 = vmatpush1.msra.mxu0 0.0
  %952 = vmatprep.subr.mxu0 0.0
  %953 = vmatpush1.msra.mxu0 0.0
  %954 = vmatprep.subr.mxu0 0.0
  %955 = vmatpush1.msra.mxu0 0.0
  %956 = vmatprep.subr.mxu0 0.0
  %957 = vmatpush1.msra.mxu0 0.0
  %958 = vmatprep.subr.mxu0 0.0
  %959 = vmatpush1.msra.mxu0 0.0
  %960 = vmatprep.subr.mxu0 0.0
  %961 = vmatpush1.msra.mxu0 0.0
  %962 = vmatprep.subr.mxu0 0.0
  %963 = vmatpush1.msra.mxu0 0.0
  %964 = vmatprep.subr.mxu0 0.0
  %965 = vmatpush1.msra.mxu0 0.0
  %966 = vmatprep.subr.mxu0 0.0
  %967 = vmatpush1.msra.mxu0 0.0
  %968 = vmatprep.subr.mxu0 0.0
  %969 = vmatpush1.msra.mxu0 0.0
  %970 = vmatprep.subr.mxu0 0.0
  %971 = vmatpush1.msra.mxu0 0.0
  %972 = vmatprep.subr.mxu0 0.0
  %973 = vmatpush1.msra.mxu0 0.0
  %974 = vmatprep.mubr.f32.mxu0 0.0
  %975 = vmatmul.mubr.f32.gmra.mrb[0].mxu0 %v905
  %v976 = vpop.f32.mrb[0].mxu0
  %v977 = vadd.f32 %v896, %v976
  %v978 = vpop.f32.mrb[0].mxu0
  %979 = vmatprep.mubr.f32.mxu0 0.0
  %980 = vmatmul.mubr.f32.gmra.mrb[0].mxu0 %v908
  %v981 = vpop.f32.mrb[0].mxu0
  %v982 = vadd.f32 %v901, %v981
  %v983 = vpop.f32.mrb[0].mxu0
  %984 = vdwg.mxu0
  %985 = vrot.lane.b32.xlu0 %v158, 112
  %v986 = vpop.permute.xlu0 %985
  %987 = vrot.lane.b32.xlu0 %v150, 80
  %v988 = vpop.permute.xlu0 %987
  %v989 = vsel %vm163, %v986, 0
  %v991 = vsel %vm163, %v988, 0
  %993 = vmatprep.subr.mxu0 0.0
  %994 = vmatpush1.xpose.msra.mxu0 %v991
  %995 = vmatprep.subr.mxu0 0.0
  %996 = vmatpush1.xpose.msra.mxu0 0.0
  %997 = vmatprep.subr.mxu0 0.0
  %998 = vmatpush1.xpose.msra.mxu0 0.0
  %999 = vmatprep.subr.mxu0 0.0
  %1000 = vmatpush1.xpose.msra.mxu0 0.0
  %1001 = vmatprep.subr.mxu0 0.0
  %1002 = vmatpush1.xpose.msra.mxu0 0.0
  %1003 = vmatprep.subr.mxu0 0.0
  %1004 = vmatpush1.xpose.msra.mxu0 0.0
  %1005 = vmatprep.subr.mxu0 0.0
  %1006 = vmatpush1.xpose.msra.mxu0 0.0
  %1007 = vmatprep.subr.mxu0 0.0
  %1008 = vmatpush1.xpose.msra.mxu0 0.0
  %1009 = vmatprep.subr.mxu0 0.0
  %1010 = vmatpush1.xpose.msra.mxu0 0.0
  %1011 = vmatprep.subr.mxu0 0.0
  %1012 = vmatpush1.xpose.msra.mxu0 0.0
  %1013 = vmatprep.subr.mxu0 0.0
  %1014 = vmatpush1.xpose.msra.mxu0 0.0
  %1015 = vmatprep.subr.mxu0 0.0
  %1016 = vmatpush1.xpose.msra.mxu0 0.0
  %1017 = vmatprep.subr.mxu0 0.0
  %1018 = vmatpush1.xpose.msra.mxu0 0.0
  %1019 = vmatprep.subr.mxu0 0.0
  %1020 = vmatpush1.xpose.msra.mxu0 0.0
  %1021 = vmatprep.subr.mxu0 0.0
  %1022 = vmatpush1.xpose.msra.mxu0 0.0
  %1023 = vmatprep.subr.mxu0 0.0
  %1024 = vmatpush1.xpose.msra.mxu0 0.0
  %1025 = vmatprep.subr.mxu0 0.0
  %1026 = vmatpush1.xpose.msra.mxu0 0.0
  %1027 = vmatprep.subr.mxu0 0.0
  %1028 = vmatpush1.xpose.msra.mxu0 0.0
  %1029 = vmatprep.subr.mxu0 0.0
  %1030 = vmatpush1.xpose.msra.mxu0 0.0
  %1031 = vmatprep.subr.mxu0 0.0
  %1032 = vmatpush1.xpose.msra.mxu0 0.0
  %1033 = vmatprep.subr.mxu0 0.0
  %1034 = vmatpush1.xpose.msra.mxu0 0.0
  %1035 = vmatprep.subr.mxu0 0.0
  %1036 = vmatpush1.xpose.msra.mxu0 0.0
  %1037 = vmatprep.subr.mxu0 0.0
  %1038 = vmatpush1.xpose.msra.mxu0 0.0
  %1039 = vmatprep.subr.mxu0 0.0
  %1040 = vmatpush1.xpose.msra.mxu0 0.0
  %1041 = vmatprep.subr.mxu0 0.0
  %1042 = vmatpush1.xpose.msra.mxu0 0.0
  %1043 = vmatprep.subr.mxu0 0.0
  %1044 = vmatpush1.xpose.msra.mxu0 0.0
  %1045 = vmatprep.subr.mxu0 0.0
  %1046 = vmatpush1.xpose.msra.mxu0 0.0
  %1047 = vmatprep.subr.mxu0 0.0
  %1048 = vmatpush1.xpose.msra.mxu0 0.0
  %1049 = vmatprep.subr.mxu0 0.0
  %1050 = vmatpush1.xpose.msra.mxu0 0.0
  %1051 = vmatprep.subr.mxu0 0.0
  %1052 = vmatpush1.xpose.msra.mxu0 0.0
  %1053 = vmatprep.subr.mxu0 0.0
  %1054 = vmatpush1.xpose.msra.mxu0 0.0
  %1055 = vmatprep.subr.mxu0 0.0
  %1056 = vmatpush1.xpose.msra.mxu0 0.0
  %1057 = vmatprep.mubr.f32.mxu0 0.0
  %1058 = vmatmul.mubr.f32.gmra.mrb[0].mxu0 %v989
  %v1059 = vpop.f32.mrb[0].mxu0
  %v1060 = vadd.f32 0.0, %v1059
  %v1061 = vpop.f32.mrb[0].mxu0
  %1062 = vdwg.mxu0
  %1063 = vrot.lane.b32.xlu0 %v159, 112
  %v1064 = vpop.permute.xlu0 %1063
  %1065 = vrot.lane.b32.xlu0 %v155, 80
  %v1066 = vpop.permute.xlu0 %1065
  %v1067 = vsel %vm163, %v1064, 0
  %v1069 = vsel %vm163, %v1066, 0
  %1071 = vmatprep.subr.mxu0 0.0
  %1072 = vmatpush1.xpose.msra.mxu0 %v1069
  %1073 = vmatprep.subr.mxu0 0.0
  %1074 = vmatpush1.xpose.msra.mxu0 0.0
  %1075 = vmatprep.subr.mxu0 0.0
  %1076 = vmatpush1.xpose.msra.mxu0 0.0
  %1077 = vmatprep.subr.mxu0 0.0
  %1078 = vmatpush1.xpose.msra.mxu0 0.0
  %1079 = vmatprep.subr.mxu0 0.0
  %1080 = vmatpush1.xpose.msra.mxu0 0.0
  %1081 = vmatprep.subr.mxu0 0.0
  %1082 = vmatpush1.xpose.msra.mxu0 0.0
  %1083 = vmatprep.subr.mxu0 0.0
  %1084 = vmatpush1.xpose.msra.mxu0 0.0
  %1085 = vmatprep.subr.mxu0 0.0
  %1086 = vmatpush1.xpose.msra.mxu0 0.0
  %1087 = vmatprep.subr.mxu0 0.0
  %1088 = vmatpush1.xpose.msra.mxu0 0.0
  %1089 = vmatprep.subr.mxu0 0.0
  %1090 = vmatpush1.xpose.msra.mxu0 0.0
  %1091 = vmatprep.subr.mxu0 0.0
  %1092 = vmatpush1.xpose.msra.mxu0 0.0
  %1093 = vmatprep.subr.mxu0 0.0
  %1094 = vmatpush1.xpose.msra.mxu0 0.0
  %1095 = vmatprep.subr.mxu0 0.0
  %1096 = vmatpush1.xpose.msra.mxu0 0.0
  %1097 = vmatprep.subr.mxu0 0.0
  %1098 = vmatpush1.xpose.msra.mxu0 0.0
  %1099 = vmatprep.subr.mxu0 0.0
  %1100 = vmatpush1.xpose.msra.mxu0 0.0
  %1101 = vmatprep.subr.mxu0 0.0
  %1102 = vmatpush1.xpose.msra.mxu0 0.0
  %1103 = vmatprep.subr.mxu0 0.0
  %1104 = vmatpush1.xpose.msra.mxu0 0.0
  %1105 = vmatprep.subr.mxu0 0.0
  %1106 = vmatpush1.xpose.msra.mxu0 0.0
  %1107 = vmatprep.subr.mxu0 0.0
  %1108 = vmatpush1.xpose.msra.mxu0 0.0
  %1109 = vmatprep.subr.mxu0 0.0
  %1110 = vmatpush1.xpose.msra.mxu0 0.0
  %1111 = vmatprep.subr.mxu0 0.0
  %1112 = vmatpush1.xpose.msra.mxu0 0.0
  %1113 = vmatprep.subr.mxu0 0.0
  %1114 = vmatpush1.xpose.msra.mxu0 0.0
  %1115 = vmatprep.subr.mxu0 0.0
  %1116 = vmatpush1.xpose.msra.mxu0 0.0
  %1117 = vmatprep.subr.mxu0 0.0
  %1118 = vmatpush1.xpose.msra.mxu0 0.0
  %1119 = vmatprep.subr.mxu0 0.0
  %1120 = vmatpush1.xpose.msra.mxu0 0.0
  %1121 = vmatprep.subr.mxu0 0.0
  %1122 = vmatpush1.xpose.msra.mxu0 0.0
  %1123 = vmatprep.subr.mxu0 0.0
  %1124 = vmatpush1.xpose.msra.mxu0 0.0
  %1125 = vmatprep.subr.mxu0 0.0
  %1126 = vmatpush1.xpose.msra.mxu0 0.0
  %1127 = vmatprep.subr.mxu0 0.0
  %1128 = vmatpush1.xpose.msra.mxu0 0.0
  %1129 = vmatprep.subr.mxu0 0.0
  %1130 = vmatpush1.xpose.msra.mxu0 0.0
  %1131 = vmatprep.subr.mxu0 0.0
  %1132 = vmatpush1.xpose.msra.mxu0 0.0
  %1133 = vmatprep.subr.mxu0 0.0
  %1134 = vmatpush1.xpose.msra.mxu0 0.0
  %1135 = vmatprep.mubr.f32.mxu0 0.0
  %1136 = vmatmul.mubr.f32.gmra.mrb[0].mxu0 %v1067
  %v1137 = vpop.f32.mrb[0].mxu0
  %v1138 = vadd.f32 0.0, %v1137
  %v1139 = vpop.f32.mrb[0].mxu0
  %1140 = vdwg.mxu0
  %v1141 = vsel %vm163, %v1060, -inf
  %1142 = vmax.xlane.f32.xlu0 %v1141
  %v1143 = vpop.xlane.xlu0 %1142
  %v1144 = vsel %vm163, %v1138, -inf
  %1145 = vmax.xlane.f32.xlu0 %v1144
  %v1146 = vpop.xlane.xlu0 %1145
  %v1147 = vsub.f32 %v1060, %v1143
  %v1148 = vsub.f32 %v1138, %v1146
  %v1149 = vmul.f32 %v1147, 1.442695
  %v1150 = vpow.pop %v1149
  %v1151 = vmul.f32 %v1148, 1.442695
  %v1152 = vpow.pop %v1151
  %v1153 = vsel %vm163, %v1150, 0.0
  %1154 = vadd.xlane.f32.xlu0 %v1153
  %v1155 = vpop.xlane.xlu0 %1154
  %v1156 = vsel %vm163, %v1152, 0.0
  %1157 = vadd.xlane.f32.xlu0 %v1156
  %v1158 = vpop.xlane.xlu0 %1157
  %v1159 = vrcp.pop %v1155
  %v1160 = vrcp.pop %v1158
  %v1161 = vmul.f32 %v1150, %v1159
  %v1162 = vmul.f32 %v1152, %v1160
  %1163 = vrot.lane.b32.xlu0 %v150, 48
  %v1164 = vpop.permute.xlu0 %1163
  %v1167 = vsel %vm163, %v1161, 0
  %1169 = vmatprep.subr.mxu0 0.0
  %1170 = vmatpush1.msra.mxu0 %v1164
  %1171 = vmatprep.subr.mxu0 0.0
  %1172 = vmatpush1.msra.mxu0 0.0
  %1173 = vmatprep.subr.mxu0 0.0
  %1174 = vmatpush1.msra.mxu0 0.0
  %1175 = vmatprep.subr.mxu0 0.0
  %1176 = vmatpush1.msra.mxu0 0.0
  %1177 = vmatprep.subr.mxu0 0.0
  %1178 = vmatpush1.msra.mxu0 0.0
  %1179 = vmatprep.subr.mxu0 0.0
  %1180 = vmatpush1.msra.mxu0 0.0
  %1181 = vmatprep.subr.mxu0 0.0
  %1182 = vmatpush1.msra.mxu0 0.0
  %1183 = vmatprep.subr.mxu0 0.0
  %1184 = vmatpush1.msra.mxu0 0.0
  %1185 = vmatprep.subr.mxu0 0.0
  %1186 = vmatpush1.msra.mxu0 0.0
  %1187 = vmatprep.subr.mxu0 0.0
  %1188 = vmatpush1.msra.mxu0 0.0
  %1189 = vmatprep.subr.mxu0 0.0
  %1190 = vmatpush1.msra.mxu0 0.0
  %1191 = vmatprep.subr.mxu0 0.0
  %1192 = vmatpush1.msra.mxu0 0.0
  %1193 = vmatprep.subr.mxu0 0.0
  %1194 = vmatpush1.msra.mxu0 0.0
  %1195 = vmatprep.subr.mxu0 0.0
  %1196 = vmatpush1.msra.mxu0 0.0
  %1197 = vmatprep.subr.mxu0 0.0
  %1198 = vmatpush1.msra.mxu0 0.0
  %1199 = vmatprep.subr.mxu0 0.0
  %1200 = vmatpush1.msra.mxu0 0.0
  %1201 = vmatprep.subr.mxu0 0.0
  %1202 = vmatpush1.msra.mxu0 0.0
  %1203 = vmatprep.subr.mxu0 0.0
  %1204 = vmatpush1.msra.mxu0 0.0
  %1205 = vmatprep.subr.mxu0 0.0
  %1206 = vmatpush1.msra.mxu0 0.0
  %1207 = vmatprep.subr.mxu0 0.0
  %1208 = vmatpush1.msra.mxu0 0.0
  %1209 = vmatprep.subr.mxu0 0.0
  %1210 = vmatpush1.msra.mxu0 0.0
  %1211 = vmatprep.subr.mxu0 0.0
  %1212 = vmatpush1.msra.mxu0 0.0
  %1213 = vmatprep.subr.mxu0 0.0
  %1214 = vmatpush1.msra.mxu0 0.0
  %1215 = vmatprep.subr.mxu0 0.0
  %1216 = vmatpush1.msra.mxu0 0.0
  %1217 = vmatprep.subr.mxu0 0.0
  %1218 = vmatpush1.msra.mxu0 0.0
  %1219 = vmatprep.subr.mxu0 0.0
  %1220 = vmatpush1.msra.mxu0 0.0
  %1221 = vmatprep.subr.mxu0 0.0
  %1222 = vmatpush1.msra.mxu0 0.0
  %1223 = vmatprep.subr.mxu0 0.0
  %1224 = vmatpush1.msra.mxu0 0.0
  %1225 = vmatprep.subr.mxu0 0.0
  %1226 = vmatpush1.msra.mxu0 0.0
  %1227 = vmatprep.subr.mxu0 0.0
  %1228 = vmatpush1.msra.mxu0 0.0
  %1229 = vmatprep.subr.mxu0 0.0
  %1230 = vmatpush1.msra.mxu0 0.0
  %1231 = vmatprep.subr.mxu0 0.0
  %1232 = vmatpush1.msra.mxu0 0.0
  %1233 = vmatprep.mubr.f32.mxu0 0.0
  %1234 = vmatmul.mubr.f32.gmra.mrb[0].mxu0 %v1167
  %v1235 = vpop.f32.mrb[0].mxu0
  %v1236 = vadd.f32 0.0, %v1235
  %v1237 = vpop.f32.mrb[0].mxu0
  %1238 = vdwg.mxu0
  %1239 = vrot.lane.b32.xlu0 %v155, 48
  %v1240 = vpop.permute.xlu0 %1239
  %v1243 = vsel %vm163, %v1162, 0
  %1245 = vmatprep.subr.mxu0 0.0
  %1246 = vmatpush1.msra.mxu0 %v1240
  %1247 = vmatprep.subr.mxu0 0.0
  %1248 = vmatpush1.msra.mxu0 0.0
  %1249 = vmatprep.subr.mxu0 0.0
  %1250 = vmatpush1.msra.mxu0 0.0
  %1251 = vmatprep.subr.mxu0 0.0
  %1252 = vmatpush1.msra.mxu0 0.0
  %1253 = vmatprep.subr.mxu0 0.0
  %1254 = vmatpush1.msra.mxu0 0.0
  %1255 = vmatprep.subr.mxu0 0.0
  %1256 = vmatpush1.msra.mxu0 0.0
  %1257 = vmatprep.subr.mxu0 0.0
  %1258 = vmatpush1.msra.mxu0 0.0
  %1259 = vmatprep.subr.mxu0 0.0
  %1260 = vmatpush1.msra.mxu0 0.0
  %1261 = vmatprep.subr.mxu0 0.0
  %1262 = vmatpush1.msra.mxu0 0.0
  %1263 = vmatprep.subr.mxu0 0.0
  %1264 = vmatpush1.msra.mxu0 0.0
  %1265 = vmatprep.subr.mxu0 0.0
  %1266 = vmatpush1.msra.mxu0 0.0
  %1267 = vmatprep.subr.mxu0 0.0
  %1268 = vmatpush1.msra.mxu0 0.0
  %1269 = vmatprep.subr.mxu0 0.0
  %1270 = vmatpush1.msra.mxu0 0.0
  %1271 = vmatprep.subr.mxu0 0.0
  %1272 = vmatpush1.msra.mxu0 0.0
  %1273 = vmatprep.subr.mxu0 0.0
  %1274 = vmatpush1.msra.mxu0 0.0
  %1275 = vmatprep.subr.mxu0 0.0
  %1276 = vmatpush1.msra.mxu0 0.0
  %1277 = vmatprep.subr.mxu0 0.0
  %1278 = vmatpush1.msra.mxu0 0.0
  %1279 = vmatprep.subr.mxu0 0.0
  %1280 = vmatpush1.msra.mxu0 0.0
  %1281 = vmatprep.subr.mxu0 0.0
  %1282 = vmatpush1.msra.mxu0 0.0
  %1283 = vmatprep.subr.mxu0 0.0
  %1284 = vmatpush1.msra.mxu0 0.0
  %1285 = vmatprep.subr.mxu0 0.0
  %1286 = vmatpush1.msra.mxu0 0.0
  %1287 = vmatprep.subr.mxu0 0.0
  %1288 = vmatpush1.msra.mxu0 0.0
  %1289 = vmatprep.subr.mxu0 0.0
  %1290 = vmatpush1.msra.mxu0 0.0
  %1291 = vmatprep.subr.mxu0 0.0
  %1292 = vmatpush1.msra.mxu0 0.0
  %1293 = vmatprep.subr.mxu0 0.0
  %1294 = vmatpush1.msra.mxu0 0.0
  %1295 = vmatprep.subr.mxu0 0.0
  %1296 = vmatpush1.msra.mxu0 0.0
  %1297 = vmatprep.subr.mxu0 0.0
  %1298 = vmatpush1.msra.mxu0 0.0
  %1299 = vmatprep.subr.mxu0 0.0
  %1300 = vmatpush1.msra.mxu0 0.0
  %1301 = vmatprep.subr.mxu0 0.0
  %1302 = vmatpush1.msra.mxu0 0.0
  %1303 = vmatprep.subr.mxu0 0.0
  %1304 = vmatpush1.msra.mxu0 0.0
  %1305 = vmatprep.subr.mxu0 0.0
  %1306 = vmatpush1.msra.mxu0 0.0
  %1307 = vmatprep.subr.mxu0 0.0
  %1308 = vmatpush1.msra.mxu0 0.0
  %1309 = vmatprep.mubr.f32.mxu0 0.0
  %1310 = vmatmul.mubr.f32.gmra.mrb[0].mxu0 %v1243
  %v1311 = vpop.f32.mrb[0].mxu0
  %v1312 = vadd.f32 0.0, %v1311
  %v1313 = vpop.f32.mrb[0].mxu0
  %1314 = vdwg.mxu0
  %v1315 = vld [vmem:[%s4 + $0x10] sm:$0xff]
  %v1317 = vsel %vm163, %v1236, 0
  %v1320 = vsel %vm163, %v1312, 0
  %1322 = vmatprep.subr.mxu0 0.0
  %1323 = vmatpush1.msra.mxu0 %v1315
  %1324 = vmatprep.subr.mxu0 0.0
  %1325 = vmatpush1.msra.mxu0 0.0
  %1326 = vmatprep.subr.mxu0 0.0
  %1327 = vmatpush1.msra.mxu0 0.0
  %1328 = vmatprep.subr.mxu0 0.0
  %1329 = vmatpush1.msra.mxu0 0.0
  %1330 = vmatprep.subr.mxu0 0.0
  %1331 = vmatpush1.msra.mxu0 0.0
  %1332 = vmatprep.subr.mxu0 0.0
  %1333 = vmatpush1.msra.mxu0 0.0
  %1334 = vmatprep.subr.mxu0 0.0
  %1335 = vmatpush1.msra.mxu0 0.0
  %1336 = vmatprep.subr.mxu0 0.0
  %1337 = vmatpush1.msra.mxu0 0.0
  %1338 = vmatprep.subr.mxu0 0.0
  %1339 = vmatpush1.msra.mxu0 0.0
  %1340 = vmatprep.subr.mxu0 0.0
  %1341 = vmatpush1.msra.mxu0 0.0
  %1342 = vmatprep.subr.mxu0 0.0
  %1343 = vmatpush1.msra.mxu0 0.0
  %1344 = vmatprep.subr.mxu0 0.0
  %1345 = vmatpush1.msra.mxu0 0.0
  %1346 = vmatprep.subr.mxu0 0.0
  %1347 = vmatpush1.msra.mxu0 0.0
  %1348 = vmatprep.subr.mxu0 0.0
  %1349 = vmatpush1.msra.mxu0 0.0
  %1350 = vmatprep.subr.mxu0 0.0
  %1351 = vmatpush1.msra.mxu0 0.0
  %1352 = vmatprep.subr.mxu0 0.0
  %1353 = vmatpush1.msra.mxu0 0.0
  %1354 = vmatprep.subr.mxu0 0.0
  %1355 = vmatpush1.msra.mxu0 0.0
  %1356 = vmatprep.subr.mxu0 0.0
  %1357 = vmatpush1.msra.mxu0 0.0
  %1358 = vmatprep.subr.mxu0 0.0
  %1359 = vmatpush1.msra.mxu0 0.0
  %1360 = vmatprep.subr.mxu0 0.0
  %1361 = vmatpush1.msra.mxu0 0.0
  %1362 = vmatprep.subr.mxu0 0.0
  %1363 = vmatpush1.msra.mxu0 0.0
  %1364 = vmatprep.subr.mxu0 0.0
  %1365 = vmatpush1.msra.mxu0 0.0
  %1366 = vmatprep.subr.mxu0 0.0
  %1367 = vmatpush1.msra.mxu0 0.0
  %1368 = vmatprep.subr.mxu0 0.0
  %1369 = vmatpush1.msra.mxu0 0.0
  %1370 = vmatprep.subr.mxu0 0.0
  %1371 = vmatpush1.msra.mxu0 0.0
  %1372 = vmatprep.subr.mxu0 0.0
  %1373 = vmatpush1.msra.mxu0 0.0
  %1374 = vmatprep.subr.mxu0 0.0
  %1375 = vmatpush1.msra.mxu0 0.0
  %1376 = vmatprep.subr.mxu0 0.0
  %1377 = vmatpush1.msra.mxu0 0.0
  %1378 = vmatprep.subr.mxu0 0.0
  %1379 = vmatpush1.msra.mxu0 0.0
  %1380 = vmatprep.subr.mxu0 0.0
  %1381 = vmatpush1.msra.mxu0 0.0
  %1382 = vmatprep.subr.mxu0 0.0
  %1383 = vmatpush1.msra.mxu0 0.0
  %1384 = vmatprep.subr.mxu0 0.0
  %1385 = vmatpush1.msra.mxu0 0.0
  %1386 = vmatprep.mubr.f32.mxu0 0.0
  %1387 = vmatmul.mubr.f32.gmra.mrb[0].mxu0 %v1317
  %v1388 = vpop.f32.mrb[0].mxu0
  %v1389 = vadd.f32 0.0, %v1388
  %v1390 = vpop.f32.mrb[0].mxu0
  %1391 = vmatprep.mubr.f32.mxu0 0.0
  %1392 = vmatmul.mubr.f32.gmra.mrb[0].mxu0 %v1320
  %v1393 = vpop.f32.mrb[0].mxu0
  %v1394 = vadd.f32 0.0, %v1393
  %v1395 = vpop.f32.mrb[0].mxu0
  %1396 = vdwg.mxu0
  %v1397 = vadd.f32 %v977, %v1389
  %v1398 = vadd.f32 %v982, %v1394
  %1399 = vrot.lane.b32.xlu0 %v158, 104
  %v1400 = vpop.permute.xlu0 %1399
  %1401 = vrot.lane.b32.xlu0 %v150, 72
  %v1402 = vpop.permute.xlu0 %1401
  %v1403 = vsel %vm163, %v1400, 0
  %v1405 = vsel %vm163, %v1402, 0
  %1407 = vmatprep.subr.mxu0 0.0
  %1408 = vmatpush1.xpose.msra.mxu0 %v1405
  %1409 = vmatprep.subr.mxu0 0.0
  %1410 = vmatpush1.xpose.msra.mxu0 0.0
  %1411 = vmatprep.subr.mxu0 0.0
  %1412 = vmatpush1.xpose.msra.mxu0 0.0
  %1413 = vmatprep.subr.mxu0 0.0
  %1414 = vmatpush1.xpose.msra.mxu0 0.0
  %1415 = vmatprep.subr.mxu0 0.0
  %1416 = vmatpush1.xpose.msra.mxu0 0.0
  %1417 = vmatprep.subr.mxu0 0.0
  %1418 = vmatpush1.xpose.msra.mxu0 0.0
  %1419 = vmatprep.subr.mxu0 0.0
  %1420 = vmatpush1.xpose.msra.mxu0 0.0
  %1421 = vmatprep.subr.mxu0 0.0
  %1422 = vmatpush1.xpose.msra.mxu0 0.0
  %1423 = vmatprep.subr.mxu0 0.0
  %1424 = vmatpush1.xpose.msra.mxu0 0.0
  %1425 = vmatprep.subr.mxu0 0.0
  %1426 = vmatpush1.xpose.msra.mxu0 0.0
  %1427 = vmatprep.subr.mxu0 0.0
  %1428 = vmatpush1.xpose.msra.mxu0 0.0
  %1429 = vmatprep.subr.mxu0 0.0
  %1430 = vmatpush1.xpose.msra.mxu0 0.0
  %1431 = vmatprep.subr.mxu0 0.0
  %1432 = vmatpush1.xpose.msra.mxu0 0.0
  %1433 = vmatprep.subr.mxu0 0.0
  %1434 = vmatpush1.xpose.msra.mxu0 0.0
  %1435 = vmatprep.subr.mxu0 0.0
  %1436 = vmatpush1.xpose.msra.mxu0 0.0
  %1437 = vmatprep.subr.mxu0 0.0
  %1438 = vmatpush1.xpose.msra.mxu0 0.0
  %1439 = vmatprep.subr.mxu0 0.0
  %1440 = vmatpush1.xpose.msra.mxu0 0.0
  %1441 = vmatprep.subr.mxu0 0.0
  %1442 = vmatpush1.xpose.msra.mxu0 0.0
  %1443 = vmatprep.subr.mxu0 0.0
  %1444 = vmatpush1.xpose.msra.mxu0 0.0
  %1445 = vmatprep.subr.mxu0 0.0
  %1446 = vmatpush1.xpose.msra.mxu0 0.0
  %1447 = vmatprep.subr.mxu0 0.0
  %1448 = vmatpush1.xpose.msra.mxu0 0.0
  %1449 = vmatprep.subr.mxu0 0.0
  %1450 = vmatpush1.xpose.msra.mxu0 0.0
  %1451 = vmatprep.subr.mxu0 0.0
  %1452 = vmatpush1.xpose.msra.mxu0 0.0
  %1453 = vmatprep.subr.mxu0 0.0
  %1454 = vmatpush1.xpose.msra.mxu0 0.0
  %1455 = vmatprep.subr.mxu0 0.0
  %1456 = vmatpush1.xpose.msra.mxu0 0.0
  %1457 = vmatprep.subr.mxu0 0.0
  %1458 = vmatpush1.xpose.msra.mxu0 0.0
  %1459 = vmatprep.subr.mxu0 0.0
  %1460 = vmatpush1.xpose.msra.mxu0 0.0
  %1461 = vmatprep.subr.mxu0 0.0
  %1462 = vmatpush1.xpose.msra.mxu0 0.0
  %1463 = vmatprep.subr.mxu0 0.0
  %1464 = vmatpush1.xpose.msra.mxu0 0.0
  %1465 = vmatprep.subr.mxu0 0.0
  %1466 = vmatpush1.xpose.msra.mxu0 0.0
  %1467 = vmatprep.subr.mxu0 0.0
  %1468 = vmatpush1.xpose.msra.mxu0 0.0
  %1469 = vmatprep.subr.mxu0 0.0
  %1470 = vmatpush1.xpose.msra.mxu0 0.0
  %1471 = vmatprep.mubr.f32.mxu0 0.0
  %1472 = vmatmul.mubr.f32.gmra.mrb[0].mxu0 %v1403
  %v1473 = vpop.f32.mrb[0].mxu0
  %v1474 = vadd.f32 0.0, %v1473
  %v1475 = vpop.f32.mrb[0].mxu0
  %1476 = vdwg.mxu0
  %1477 = vrot.lane.b32.xlu0 %v159, 104
  %v1478 = vpop.permute.xlu0 %1477
  %1479 = vrot.lane.b32.xlu0 %v155, 72
  %v1480 = vpop.permute.xlu0 %1479
  %v1481 = vsel %vm163, %v1478, 0
  %v1483 = vsel %vm163, %v1480, 0
  %1485 = vmatprep.subr.mxu0 0.0
  %1486 = vmatpush1.xpose.msra.mxu0 %v1483
  %1487 = vmatprep.subr.mxu0 0.0
  %1488 = vmatpush1.xpose.msra.mxu0 0.0
  %1489 = vmatprep.subr.mxu0 0.0
  %1490 = vmatpush1.xpose.msra.mxu0 0.0
  %1491 = vmatprep.subr.mxu0 0.0
  %1492 = vmatpush1.xpose.msra.mxu0 0.0
  %1493 = vmatprep.subr.mxu0 0.0
  %1494 = vmatpush1.xpose.msra.mxu0 0.0
  %1495 = vmatprep.subr.mxu0 0.0
  %1496 = vmatpush1.xpose.msra.mxu0 0.0
  %1497 = vmatprep.subr.mxu0 0.0
  %1498 = vmatpush1.xpose.msra.mxu0 0.0
  %1499 = vmatprep.subr.mxu0 0.0
  %1500 = vmatpush1.xpose.msra.mxu0 0.0
  %1501 = vmatprep.subr.mxu0 0.0
  %1502 = vmatpush1.xpose.msra.mxu0 0.0
  %1503 = vmatprep.subr.mxu0 0.0
  %1504 = vmatpush1.xpose.msra.mxu0 0.0
  %1505 = vmatprep.subr.mxu0 0.0
  %1506 = vmatpush1.xpose.msra.mxu0 0.0
  %1507 = vmatprep.subr.mxu0 0.0
  %1508 = vmatpush1.xpose.msra.mxu0 0.0
  %1509 = vmatprep.subr.mxu0 0.0
  %1510 = vmatpush1.xpose.msra.mxu0 0.0
  %1511 = vmatprep.subr.mxu0 0.0
  %1512 = vmatpush1.xpose.msra.mxu0 0.0
  %1513 = vmatprep.subr.mxu0 0.0
  %1514 = vmatpush1.xpose.msra.mxu0 0.0
  %1515 = vmatprep.subr.mxu0 0.0
  %1516 = vmatpush1.xpose.msra.mxu0 0.0
  %1517 = vmatprep.subr.mxu0 0.0
  %1518 = vmatpush1.xpose.msra.mxu0 0.0
  %1519 = vmatprep.subr.mxu0 0.0
  %1520 = vmatpush1.xpose.msra.mxu0 0.0
  %1521 = vmatprep.subr.mxu0 0.0
  %1522 = vmatpush1.xpose.msra.mxu0 0.0
  %1523 = vmatprep.subr.mxu0 0.0
  %1524 = vmatpush1.xpose.msra.mxu0 0.0
  %1525 = vmatprep.subr.mxu0 0.0
  %1526 = vmatpush1.xpose.msra.mxu0 0.0
  %1527 = vmatprep.subr.mxu0 0.0
  %1528 = vmatpush1.xpose.msra.mxu0 0.0
  %1529 = vmatprep.subr.mxu0 0.0
  %1530 = vmatpush1.xpose.msra.mxu0 0.0
  %1531 = vmatprep.subr.mxu0 0.0
  %1532 = vmatpush1.xpose.msra.mxu0 0.0
  %1533 = vmatprep.subr.mxu0 0.0
  %1534 = vmatpush1.xpose.msra.mxu0 0.0
  %1535 = vmatprep.subr.mxu0 0.0
  %1536 = vmatpush1.xpose.msra.mxu0 0.0
  %1537 = vmatprep.subr.mxu0 0.0
  %1538 = vmatpush1.xpose.msra.mxu0 0.0
  %1539 = vmatprep.subr.mxu0 0.0
  %1540 = vmatpush1.xpose.msra.mxu0 0.0
  %1541 = vmatprep.subr.mxu0 0.0
  %1542 = vmatpush1.xpose.msra.mxu0 0.0
  %1543 = vmatprep.subr.mxu0 0.0
  %1544 = vmatpush1.xpose.msra.mxu0 0.0
  %1545 = vmatprep.subr.mxu0 0.0
  %1546 = vmatpush1.xpose.msra.mxu0 0.0
  %1547 = vmatprep.subr.mxu0 0.0
  %1548 = vmatpush1.xpose.msra.mxu0 0.0
  %1549 = vmatprep.mubr.f32.mxu0 0.0
  %1550 = vmatmul.mubr.f32.gmra.mrb[0].mxu0 %v1481
  %v1551 = vpop.f32.mrb[0].mxu0
  %v1552 = vadd.f32 0.0, %v1551
  %v1553 = vpop.f32.mrb[0].mxu0
  %1554 = vdwg.mxu0
  %v1555 = vsel %vm163, %v1474, -inf
  %1556 = vmax.xlane.f32.xlu0 %v1555
  %v1557 = vpop.xlane.xlu0 %1556
  %v1558 = vsel %vm163, %v1552, -inf
  %1559 = vmax.xlane.f32.xlu0 %v1558
  %v1560 = vpop.xlane.xlu0 %1559
  %v1561 = vsub.f32 %v1474, %v1557
  %v1562 = vsub.f32 %v1552, %v1560
  %v1563 = vmul.f32 %v1561, 1.442695
  %v1564 = vpow.pop %v1563
  %v1565 = vmul.f32 %v1562, 1.442695
  %v1566 = vpow.pop %v1565
  %v1567 = vsel %vm163, %v1564, 0.0
  %1568 = vadd.xlane.f32.xlu0 %v1567
  %v1569 = vpop.xlane.xlu0 %1568
  %v1570 = vsel %vm163, %v1566, 0.0
  %1571 = vadd.xlane.f32.xlu0 %v1570
  %v1572 = vpop.xlane.xlu0 %1571
  %v1573 = vrcp.pop %v1569
  %v1574 = vrcp.pop %v1572
  %v1575 = vmul.f32 %v1564, %v1573
  %v1576 = vmul.f32 %v1566, %v1574
  %1577 = vrot.lane.b32.xlu0 %v150, 40
  %v1578 = vpop.permute.xlu0 %1577
  %v1581 = vsel %vm163, %v1575, 0
  %1583 = vmatprep.subr.mxu0 0.0
  %1584 = vmatpush1.msra.mxu0 %v1578
  %1585 = vmatprep.subr.mxu0 0.0
  %1586 = vmatpush1.msra.mxu0 0.0
  %1587 = vmatprep.subr.mxu0 0.0
  %1588 = vmatpush1.msra.mxu0 0.0
  %1589 = vmatprep.subr.mxu0 0.0
  %1590 = vmatpush1.msra.mxu0 0.0
  %1591 = vmatprep.subr.mxu0 0.0
  %1592 = vmatpush1.msra.mxu0 0.0
  %1593 = vmatprep.subr.mxu0 0.0
  %1594 = vmatpush1.msra.mxu0 0.0
  %1595 = vmatprep.subr.mxu0 0.0
  %1596 = vmatpush1.msra.mxu0 0.0
  %1597 = vmatprep.subr.mxu0 0.0
  %1598 = vmatpush1.msra.mxu0 0.0
  %1599 = vmatprep.subr.mxu0 0.0
  %1600 = vmatpush1.msra.mxu0 0.0
  %1601 = vmatprep.subr.mxu0 0.0
  %1602 = vmatpush1.msra.mxu0 0.0
  %1603 = vmatprep.subr.mxu0 0.0
  %1604 = vmatpush1.msra.mxu0 0.0
  %1605 = vmatprep.subr.mxu0 0.0
  %1606 = vmatpush1.msra.mxu0 0.0
  %1607 = vmatprep.subr.mxu0 0.0
  %1608 = vmatpush1.msra.mxu0 0.0
  %1609 = vmatprep.subr.mxu0 0.0
  %1610 = vmatpush1.msra.mxu0 0.0
  %1611 = vmatprep.subr.mxu0 0.0
  %1612 = vmatpush1.msra.mxu0 0.0
  %1613 = vmatprep.subr.mxu0 0.0
  %1614 = vmatpush1.msra.mxu0 0.0
  %1615 = vmatprep.subr.mxu0 0.0
  %1616 = vmatpush1.msra.mxu0 0.0
  %1617 = vmatprep.subr.mxu0 0.0
  %1618 = vmatpush1.msra.mxu0 0.0
  %1619 = vmatprep.subr.mxu0 0.0
  %1620 = vmatpush1.msra.mxu0 0.0
  %1621 = vmatprep.subr.mxu0 0.0
  %1622 = vmatpush1.msra.mxu0 0.0
  %1623 = vmatprep.subr.mxu0 0.0
  %1624 = vmatpush1.msra.mxu0 0.0
  %1625 = vmatprep.subr.mxu0 0.0
  %1626 = vmatpush1.msra.mxu0 0.0
  %1627 = vmatprep.subr.mxu0 0.0
  %1628 = vmatpush1.msra.mxu0 0.0
  %1629 = vmatprep.subr.mxu0 0.0
  %1630 = vmatpush1.msra.mxu0 0.0
  %1631 = vmatprep.subr.mxu0 0.0
  %1632 = vmatpush1.msra.mxu0 0.0
  %1633 = vmatprep.subr.mxu0 0.0
  %1634 = vmatpush1.msra.mxu0 0.0
  %1635 = vmatprep.subr.mxu0 0.0
  %1636 = vmatpush1.msra.mxu0 0.0
  %1637 = vmatprep.subr.mxu0 0.0
  %1638 = vmatpush1.msra.mxu0 0.0
  %1639 = vmatprep.subr.mxu0 0.0
  %1640 = vmatpush1.msra.mxu0 0.0
  %1641 = vmatprep.subr.mxu0 0.0
  %1642 = vmatpush1.msra.mxu0 0.0
  %1643 = vmatprep.subr.mxu0 0.0
  %1644 = vmatpush1.msra.mxu0 0.0
  %1645 = vmatprep.subr.mxu0 0.0
  %1646 = vmatpush1.msra.mxu0 0.0
  %1647 = vmatprep.mubr.f32.mxu0 0.0
  %1648 = vmatmul.mubr.f32.gmra.mrb[0].mxu0 %v1581
  %v1649 = vpop.f32.mrb[0].mxu0
  %v1650 = vadd.f32 0.0, %v1649
  %v1651 = vpop.f32.mrb[0].mxu0
  %1652 = vdwg.mxu0
  %1653 = vrot.lane.b32.xlu0 %v155, 40
  %v1654 = vpop.permute.xlu0 %1653
  %v1657 = vsel %vm163, %v1576, 0
  %1659 = vmatprep.subr.mxu0 0.0
  %1660 = vmatpush1.msra.mxu0 %v1654
  %1661 = vmatprep.subr.mxu0 0.0
  %1662 = vmatpush1.msra.mxu0 0.0
  %1663 = vmatprep.subr.mxu0 0.0
  %1664 = vmatpush1.msra.mxu0 0.0
  %1665 = vmatprep.subr.mxu0 0.0
  %1666 = vmatpush1.msra.mxu0 0.0
  %1667 = vmatprep.subr.mxu0 0.0
  %1668 = vmatpush1.msra.mxu0 0.0
  %1669 = vmatprep.subr.mxu0 0.0
  %1670 = vmatpush1.msra.mxu0 0.0
  %1671 = vmatprep.subr.mxu0 0.0
  %1672 = vmatpush1.msra.mxu0 0.0
  %1673 = vmatprep.subr.mxu0 0.0
  %1674 = vmatpush1.msra.mxu0 0.0
  %1675 = vmatprep.subr.mxu0 0.0
  %1676 = vmatpush1.msra.mxu0 0.0
  %1677 = vmatprep.subr.mxu0 0.0
  %1678 = vmatpush1.msra.mxu0 0.0
  %1679 = vmatprep.subr.mxu0 0.0
  %1680 = vmatpush1.msra.mxu0 0.0
  %1681 = vmatprep.subr.mxu0 0.0
  %1682 = vmatpush1.msra.mxu0 0.0
  %1683 = vmatprep.subr.mxu0 0.0
  %1684 = vmatpush1.msra.mxu0 0.0
  %1685 = vmatprep.subr.mxu0 0.0
  %1686 = vmatpush1.msra.mxu0 0.0
  %1687 = vmatprep.subr.mxu0 0.0
  %1688 = vmatpush1.msra.mxu0 0.0
  %1689 = vmatprep.subr.mxu0 0.0
  %1690 = vmatpush1.msra.mxu0 0.0
  %1691 = vmatprep.subr.mxu0 0.0
  %1692 = vmatpush1.msra.mxu0 0.0
  %1693 = vmatprep.subr.mxu0 0.0
  %1694 = vmatpush1.msra.mxu0 0.0
  %1695 = vmatprep.subr.mxu0 0.0
  %1696 = vmatpush1.msra.mxu0 0.0
  %1697 = vmatprep.subr.mxu0 0.0
  %1698 = vmatpush1.msra.mxu0 0.0
  %1699 = vmatprep.subr.mxu0 0.0
  %1700 = vmatpush1.msra.mxu0 0.0
  %1701 = vmatprep.subr.mxu0 0.0
  %1702 = vmatpush1.msra.mxu0 0.0
  %1703 = vmatprep.subr.mxu0 0.0
  %1704 = vmatpush1.msra.mxu0 0.0
  %1705 = vmatprep.subr.mxu0 0.0
  %1706 = vmatpush1.msra.mxu0 0.0
  %1707 = vmatprep.subr.mxu0 0.0
  %1708 = vmatpush1.msra.mxu0 0.0
  %1709 = vmatprep.subr.mxu0 0.0
  %1710 = vmatpush1.msra.mxu0 0.0
  %1711 = vmatprep.subr.mxu0 0.0
  %1712 = vmatpush1.msra.mxu0 0.0
  %1713 = vmatprep.subr.mxu0 0.0
  %1714 = vmatpush1.msra.mxu0 0.0
  %1715 = vmatprep.subr.mxu0 0.0
  %1716 = vmatpush1.msra.mxu0 0.0
  %1717 = vmatprep.subr.mxu0 0.0
  %1718 = vmatpush1.msra.mxu0 0.0
  %1719 = vmatprep.subr.mxu0 0.0
  %1720 = vmatpush1.msra.mxu0 0.0
  %1721 = vmatprep.subr.mxu0 0.0
  %1722 = vmatpush1.msra.mxu0 0.0
  %1723 = vmatprep.mubr.f32.mxu0 0.0
  %1724 = vmatmul.mubr.f32.gmra.mrb[0].mxu0 %v1657
  %v1725 = vpop.f32.mrb[0].mxu0
  %v1726 = vadd.f32 0.0, %v1725
  %v1727 = vpop.f32.mrb[0].mxu0
  %1728 = vdwg.mxu0
  %v1729 = vld [vmem:[%s4 + $0x18] sm:$0xff]
  %v1731 = vsel %vm163, %v1650, 0
  %v1734 = vsel %vm163, %v1726, 0
  %1736 = vmatprep.subr.mxu0 0.0
  %1737 = vmatpush1.msra.mxu0 %v1729
  %1738 = vmatprep.subr.mxu0 0.0
  %1739 = vmatpush1.msra.mxu0 0.0
  %1740 = vmatprep.subr.mxu0 0.0
  %1741 = vmatpush1.msra.mxu0 0.0
  %1742 = vmatprep.subr.mxu0 0.0
  %1743 = vmatpush1.msra.mxu0 0.0
  %1744 = vmatprep.subr.mxu0 0.0
  %1745 = vmatpush1.msra.mxu0 0.0
  %1746 = vmatprep.subr.mxu0 0.0
  %1747 = vmatpush1.msra.mxu0 0.0
  %1748 = vmatprep.subr.mxu0 0.0
  %1749 = vmatpush1.msra.mxu0 0.0
  %1750 = vmatprep.subr.mxu0 0.0
  %1751 = vmatpush1.msra.mxu0 0.0
  %1752 = vmatprep.subr.mxu0 0.0
  %1753 = vmatpush1.msra.mxu0 0.0
  %1754 = vmatprep.subr.mxu0 0.0
  %1755 = vmatpush1.msra.mxu0 0.0
  %1756 = vmatprep.subr.mxu0 0.0
  %1757 = vmatpush1.msra.mxu0 0.0
  %1758 = vmatprep.subr.mxu0 0.0
  %1759 = vmatpush1.msra.mxu0 0.0
  %1760 = vmatprep.subr.mxu0 0.0
  %1761 = vmatpush1.msra.mxu0 0.0
  %1762 = vmatprep.subr.mxu0 0.0
  %1763 = vmatpush1.msra.mxu0 0.0
  %1764 = vmatprep.subr.mxu0 0.0
  %1765 = vmatpush1.msra.mxu0 0.0
  %1766 = vmatprep.subr.mxu0 0.0
  %1767 = vmatpush1.msra.mxu0 0.0
  %1768 = vmatprep.subr.mxu0 0.0
  %1769 = vmatpush1.msra.mxu0 0.0
  %1770 = vmatprep.subr.mxu0 0.0
  %1771 = vmatpush1.msra.mxu0 0.0
  %1772 = vmatprep.subr.mxu0 0.0
  %1773 = vmatpush1.msra.mxu0 0.0
  %1774 = vmatprep.subr.mxu0 0.0
  %1775 = vmatpush1.msra.mxu0 0.0
  %1776 = vmatprep.subr.mxu0 0.0
  %1777 = vmatpush1.msra.mxu0 0.0
  %1778 = vmatprep.subr.mxu0 0.0
  %1779 = vmatpush1.msra.mxu0 0.0
  %1780 = vmatprep.subr.mxu0 0.0
  %1781 = vmatpush1.msra.mxu0 0.0
  %1782 = vmatprep.subr.mxu0 0.0
  %1783 = vmatpush1.msra.mxu0 0.0
  %1784 = vmatprep.subr.mxu0 0.0
  %1785 = vmatpush1.msra.mxu0 0.0
  %1786 = vmatprep.subr.mxu0 0.0
  %1787 = vmatpush1.msra.mxu0 0.0
  %1788 = vmatprep.subr.mxu0 0.0
  %1789 = vmatpush1.msra.mxu0 0.0
  %1790 = vmatprep.subr.mxu0 0.0
  %1791 = vmatpush1.msra.mxu0 0.0
  %1792 = vmatprep.subr.mxu0 0.0
  %1793 = vmatpush1.msra.mxu0 0.0
  %1794 = vmatprep.subr.mxu0 0.0
  %1795 = vmatpush1.msra.mxu0 0.0
  %1796 = vmatprep.subr.mxu0 0.0
  %1797 = vmatpush1.msra.mxu0 0.0
  %1798 = vmatprep.subr.mxu0 0.0
  %1799 = vmatpush1.msra.mxu0 0.0
  %1800 = vmatprep.mubr.f32.mxu0 0.0
  %1801 = vmatmul.mubr.f32.gmra.mrb[0].mxu0 %v1731
  %v1802 = vpop.f32.mrb[0].mxu0
  %v1803 = vadd.f32 0.0, %v1802
  %v1804 = vpop.f32.mrb[0].mxu0
  %1805 = vmatprep.mubr.f32.mxu0 0.0
  %1806 = vmatmul.mubr.f32.gmra.mrb[0].mxu0 %v1734
  %v1807 = vpop.f32.mrb[0].mxu0
  %v1808 = vadd.f32 0.0, %v1807
  %v1809 = vpop.f32.mrb[0].mxu0
  %1810 = vdwg.mxu0
  %v1811 = vadd.f32 %v1397, %v1803
  %v1812 = vadd.f32 %v1398, %v1808
  %v1813 = vld [vmem:[%s5] sm:$0x1]
  %v1815 = vlaneseq
  %v1816 = vshrl.u32 %v1815, 7
  %v1817 = vsub.s32 0, %v1816
  %v1818 = vrot.slane %v1813, %v1817
  %v1820 = vadd.f32 %v1811, %v1818
  %v1821 = vadd.f32 %v1812, %v1818
  %v1822 = vadd.f32 %v59, %v1820
  %v1823 = vadd.f32 %v60, %v1821
  %v1824 = vsel %vm76, %v1822, 0.0
  %1825 = vadd.xlane.f32.xlu0 %v1824
  %v1826 = vpop.xlane.xlu0 %1825
  %v1827 = vsel %vm76, %v1823, 0.0
  %1828 = vadd.xlane.f32.xlu0 %v1827
  %v1829 = vpop.xlane.xlu0 %1828
  %v1830 = vrcp.pop 32.0
  %v1831 = vmul.f32 %v1826, %v1830
  %v1832 = vmul.f32 %v1829, %v1830
  %v1833 = vsub.f32 %v1822, %v1831
  %v1834 = vsub.f32 %v1823, %v1832
  %v1835 = vmul.f32 %v1833, %v1833
  %v1836 = vmul.f32 %v1834, %v1834
  %v1837 = vsel %vm76, %v1835, 0.0
  %1838 = vadd.xlane.f32.xlu0 %v1837
  %v1839 = vpop.xlane.xlu0 %1838
  %v1840 = vsel %vm76, %v1836, 0.0
  %1841 = vadd.xlane.f32.xlu0 %v1840
  %v1842 = vpop.xlane.xlu0 %1841
  %v1843 = vmul.f32 %v1839, %v1830
  %v1844 = vmul.f32 %v1842, %v1830
  %v1845 = vadd.f32 %v1843, 1e-05
  %v1846 = vadd.f32 %v1844, 1e-05
  %v1847 = vrsqrt.pop %v1845
  %v1848 = vrsqrt.pop %v1846
  %v1849 = vmul.f32 %v1833, %v1847
  %v1850 = vmul.f32 %v1834, %v1848
  %v1851 = vld [vmem:[%s6] sm:$0x1]
  %v1853 = vlaneseq
  %v1854 = vshrl.u32 %v1853, 7
  %v1855 = vsub.s32 0, %v1854
  %v1856 = vrot.slane %v1851, %v1855
  %v1858 = vmul.f32 %v1849, %v1856
  %v1859 = vmul.f32 %v1850, %v1856
  %v1860 = vld [vmem:[%s7] sm:$0x1]
  %v1862 = vlaneseq
  %v1863 = vshrl.u32 %v1862, 7
  %v1864 = vsub.s32 0, %v1863
  %v1865 = vrot.slane %v1860, %v1864
  %v1867 = vadd.f32 %v1858, %v1865
  %v1868 = vadd.f32 %v1859, %v1865
  %v1869 = vld [vmem:[%s8] sm:$0xff]
  %v1870 = vld [vmem:[%s8 + $0x8] sm:$0xff]
  %v1871 = vld [vmem:[%s8 + $0x10] sm:$0xff]
  %v1872 = vld [vmem:[%s8 + $0x18] sm:$0xff]
  %v1873 = vld [vmem:[%s9] sm:$0x1]
  %v1875 = vlaneseq
  %v1876 = vshrl.u32 %v1875, 7
  %v1877 = vsub.s32 0, %v1876
  %v1878 = vrot.slane %v1873, %v1877
  %v1881 = vsel %vm76, %v1867, 0
  %v1884 = vsel %vm76, %v1868, 0
  %1886 = vmatprep.subr.mxu0 0.0
  %1887 = vmatpush1.msra.mxu0 %v1869
  %1888 = vmatprep.subr.mxu0 0.0
  %1889 = vmatpush1.msra.mxu0 %v1870
  %1890 = vmatprep.subr.mxu0 0.0
  %1891 = vmatpush1.msra.mxu0 %v1871
  %1892 = vmatprep.subr.mxu0 0.0
  %1893 = vmatpush1.msra.mxu0 %v1872
  %1894 = vmatprep.subr.mxu0 0.0
  %1895 = vmatpush1.msra.mxu0 0.0
  %1896 = vmatprep.subr.mxu0 0.0
  %1897 = vmatpush1.msra.mxu0 0.0
  %1898 = vmatprep.subr.mxu0 0.0
  %1899 = vmatpush1.msra.mxu0 0.0
  %1900 = vmatprep.subr.mxu0 0.0
  %1901 = vmatpush1.msra.mxu0 0.0
  %1902 = vmatprep.subr.mxu0 0.0
  %1903 = vmatpush1.msra.mxu0 0.0
  %1904 = vmatprep.subr.mxu0 0.0
  %1905 = vmatpush1.msra.mxu0 0.0
  %1906 = vmatprep.subr.mxu0 0.0
  %1907 = vmatpush1.msra.mxu0 0.0
  %1908 = vmatprep.subr.mxu0 0.0
  %1909 = vmatpush1.msra.mxu0 0.0
  %1910 = vmatprep.subr.mxu0 0.0
  %1911 = vmatpush1.msra.mxu0 0.0
  %1912 = vmatprep.subr.mxu0 0.0
  %1913 = vmatpush1.msra.mxu0 0.0
  %1914 = vmatprep.subr.mxu0 0.0
  %1915 = vmatpush1.msra.mxu0 0.0
  %1916 = vmatprep.subr.mxu0 0.0
  %1917 = vmatpush1.msra.mxu0 0.0
  %1918 = vmatprep.subr.mxu0 0.0
  %1919 = vmatpush1.msra.mxu0 0.0
  %1920 = vmatprep.subr.mxu0 0.0
  %1921 = vmatpush1.msra.mxu0 0.0
  %1922 = vmatprep.subr.mxu0 0.0
  %1923 = vmatpush1.msra.mxu0 0.0
  %1924 = vmatprep.subr.mxu0 0.0
  %1925 = vmatpush1.msra.mxu0 0.0
  %1926 = vmatprep.subr.mxu0 0.0
  %1927 = vmatpush1.msra.mxu0 0.0
  %1928 = vmatprep.subr.mxu0 0.0
  %1929 = vmatpush1.msra.mxu0 0.0
  %1930 = vmatprep.subr.mxu0 0.0
  %1931 = vmatpush1.msra.mxu0 0.0
  %1932 = vmatprep.subr.mxu0 0.0
  %1933 = vmatpush1.msra.mxu0 0.0
  %1934 = vmatprep.subr.mxu0 0.0
  %1935 = vmatpush1.msra.mxu0 0.0
  %1936 = vmatprep.subr.mxu0 0.0
  %1937 = vmatpush1.msra.mxu0 0.0
  %1938 = vmatprep.subr.mxu0 0.0
  %1939 = vmatpush1.msra.mxu0 0.0
  %1940 = vmatprep.subr.mxu0 0.0
  %1941 = vmatpush1.msra.mxu0 0.0
  %1942 = vmatprep.subr.mxu0 0.0
  %1943 = vmatpush1.msra.mxu0 0.0
  %1944 = vmatprep.subr.mxu0 0.0
  %1945 = vmatpush1.msra.mxu0 0.0
  %1946 = vmatprep.subr.mxu0 0.0
  %1947 = vmatpush1.msra.mxu0 0.0
  %1948 = vmatprep.subr.mxu0 0.0
  %1949 = vmatpush1.msra.mxu0 0.0
  %1950 = vmatprep.mubr.f32.mxu0 0.0
  %1951 = vmatmul.mubr.f32.gmra.mrb[0].mxu0 %v1881
  %v1952 = vpop.f32.mrb[0].mxu0
  %v1953 = vadd.f32 %v1878, %v1952
  %v1954 = vpop.f32.mrb[0].mxu0
  %1955 = vmatprep.mubr.f32.mxu0 0.0
  %1956 = vmatmul.mubr.f32.gmra.mrb[0].mxu0 %v1884
  %v1957 = vpop.f32.mrb[0].mxu0
  %v1958 = vadd.f32 %v1878, %v1957
  %v1959 = vpop.f32.mrb[0].mxu0
  %1960 = vdwg.mxu0
  %v1961 = vld [vmem:[%s10] sm:$0xff]
  %v1962 = vld [vmem:[%s10 + $0x8] sm:$0xff]
  %v1963 = vld [vmem:[%s10 + $0x10] sm:$0xff]
  %v1964 = vld [vmem:[%s10 + $0x18] sm:$0xff]
  %v1965 = vld [vmem:[%s11] sm:$0x1]
  %v1967 = vlaneseq
  %v1968 = vshrl.u32 %v1967, 7
  %v1969 = vsub.s32 0, %v1968
  %v1970 = vrot.slane %v1965, %v1969
  %v1973 = vsel %vm76, %v61, 0
  %v1976 = vsel %vm76, %v62, 0
  %v1979 = vsel %vm76, %v63, 0
  %v1982 = vsel %vm76, %v64, 0
  %1984 = vmatprep.subr.mxu0 0.0
  %1985 = vmatpush1.msra.mxu0 %v1961
  %1986 = vmatprep.subr.mxu0 0.0
  %1987 = vmatpush1.msra.mxu0 %v1962
  %1988 = vmatprep.subr.mxu0 0.0
  %1989 = vmatpush1.msra.mxu0 %v1963
  %1990 = vmatprep.subr.mxu0 0.0
  %1991 = vmatpush1.msra.mxu0 %v1964
  %1992 = vmatprep.subr.mxu0 0.0
  %1993 = vmatpush1.msra.mxu0 0.0
  %1994 = vmatprep.subr.mxu0 0.0
  %1995 = vmatpush1.msra.mxu0 0.0
  %1996 = vmatprep.subr.mxu0 0.0
  %1997 = vmatpush1.msra.mxu0 0.0
  %1998 = vmatprep.subr.mxu0 0.0
  %1999 = vmatpush1.msra.mxu0 0.0
  %2000 = vmatprep.subr.mxu0 0.0
  %2001 = vmatpush1.msra.mxu0 0.0
  %2002 = vmatprep.subr.mxu0 0.0
  %2003 = vmatpush1.msra.mxu0 0.0
  %2004 = vmatprep.subr.mxu0 0.0
  %2005 = vmatpush1.msra.mxu0 0.0
  %2006 = vmatprep.subr.mxu0 0.0
  %2007 = vmatpush1.msra.mxu0 0.0
  %2008 = vmatprep.subr.mxu0 0.0
  %2009 = vmatpush1.msra.mxu0 0.0
  %2010 = vmatprep.subr.mxu0 0.0
  %2011 = vmatpush1.msra.mxu0 0.0
  %2012 = vmatprep.subr.mxu0 0.0
  %2013 = vmatpush1.msra.mxu0 0.0
  %2014 = vmatprep.subr.mxu0 0.0
  %2015 = vmatpush1.msra.mxu0 0.0
  %2016 = vmatprep.subr.mxu0 0.0
  %2017 = vmatpush1.msra.mxu0 0.0
  %2018 = vmatprep.subr.mxu0 0.0
  %2019 = vmatpush1.msra.mxu0 0.0
  %2020 = vmatprep.subr.mxu0 0.0
  %2021 = vmatpush1.msra.mxu0 0.0
  %2022 = vmatprep.subr.mxu0 0.0
  %2023 = vmatpush1.msra.mxu0 0.0
  %2024 = vmatprep.subr.mxu0 0.0
  %2025 = vmatpush1.msra.mxu0 0.0
  %2026 = vmatprep.subr.mxu0 0.0
  %2027 = vmatpush1.msra.mxu0 0.0
  %2028 = vmatprep.subr.mxu0 0.0
  %2029 = vmatpush1.msra.mxu0 0.0
  %2030 = vmatprep.subr.mxu0 0.0
  %2031 = vmatpush1.msra.mxu0 0.0
  %2032 = vmatprep.subr.mxu0 0.0
  %2033 = vmatpush1.msra.mxu0 0.0
  %2034 = vmatprep.subr.mxu0 0.0
  %2035 = vmatpush1.msra.mxu0 0.0
  %2036 = vmatprep.subr.mxu0 0.0
  %2037 = vmatpush1.msra.mxu0 0.0
  %2038 = vmatprep.subr.mxu0 0.0
  %2039 = vmatpush1.msra.mxu0 0.0
  %2040 = vmatprep.subr.mxu0 0.0
  %2041 = vmatpush1.msra.mxu0 0.0
  %2042 = vmatprep.subr.mxu0 0.0
  %2043 = vmatpush1.msra.mxu0 0.0
  %2044 = vmatprep.subr.mxu0 0.0
  %2045 = vmatpush1.msra.mxu0 0.0
  %2046 = vmatprep.subr.mxu0 0.0
  %2047 = vmatpush1.msra.mxu0 0.0
  %2048 = vmatprep.mubr.f32.mxu0 0.0
  %2049 = vmatmul.mubr.f32.gmra.mrb[0].mxu0 %v1973
  %v2050 = vpop.f32.mrb[0].mxu0
  %v2051 = vadd.f32 %v1970, %v2050
  %v2052 = vpop.f32.mrb[0].mxu0
  %2053 = vmatprep.mubr.f32.mxu0 0.0
  %2054 = vmatmul.mubr.f32.gmra.mrb[0].mxu0 %v1976
  %v2055 = vpop.f32.mrb[0].mxu0
  %v2056 = vadd.f32 %v1970, %v2055
  %v2057 = vpop.f32.mrb[0].mxu0
  %2058 = vmatprep.mubr.f32.mxu0 0.0
  %2059 = vmatmul.mubr.f32.gmra.mrb[0].mxu0 %v1979
  %v2060 = vpop.f32.mrb[0].mxu0
  %v2061 = vadd.f32 %v1970, %v2060
  %v2062 = vpop.f32.mrb[0].mxu0
  %2063 = vmatprep.mubr.f32.mxu0 0.0
  %2064 = vmatmul.mubr.f32.gmra.mrb[0].mxu0 %v1982
  %v2065 = vpop.f32.mrb[0].mxu0
  %v2066 = vadd.f32 %v1970, %v2065
  %v2067 = vpop.f32.mrb[0].mxu0
  %2068 = vdwg.mxu0
  %v2069 = vmul.f32 %v1953, 0.35355338
  %v2070 = vmul.f32 %v1958, 0.35355338
  %v2072 = vsel %vm163, %v2069, 0
  %v2075 = vsel %vm163, %v2051, 0
  %v2078 = vsel %vm163, %v2056, 0
  %2080 = vmatprep.subr.mxu0 0.0
  %2081 = vmatpush1.xpose.msra.mxu0 %v2075
  %2082 = vmatprep.subr.mxu0 0.0
  %2083 = vmatpush1.xpose.msra.mxu0 %v2078
  %2084 = vmatprep.subr.mxu0 0.0
  %2085 = vmatpush1.xpose.msra.mxu0 0.0
  %2086 = vmatprep.subr.mxu0 0.0
  %2087 = vmatpush1.xpose.msra.mxu0 0.0
  %2088 = vmatprep.subr.mxu0 0.0
  %2089 = vmatpush1.xpose.msra.mxu0 0.0
  %2090 = vmatprep.subr.mxu0 0.0
  %2091 = vmatpush1.xpose.msra.mxu0 0.0
  %2092 = vmatprep.subr.mxu0 0.0
  %2093 = vmatpush1.xpose.msra.mxu0 0.0
  %2094 = vmatprep.subr.mxu0 0.0
  %2095 = vmatpush1.xpose.msra.mxu0 0.0
  %2096 = vmatprep.subr.mxu0 0.0
  %2097 = vmatpush1.xpose.msra.mxu0 0.0
  %2098 = vmatprep.subr.mxu0 0.0
  %2099 = vmatpush1.xpose.msra.mxu0 0.0
  %2100 = vmatprep.subr.mxu0 0.0
  %2101 = vmatpush1.xpose.msra.mxu0 0.0
  %2102 = vmatprep.subr.mxu0 0.0
  %2103 = vmatpush1.xpose.msra.mxu0 0.0
  %2104 = vmatprep.subr.mxu0 0.0
  %2105 = vmatpush1.xpose.msra.mxu0 0.0
  %2106 = vmatprep.subr.mxu0 0.0
  %2107 = vmatpush1.xpose.msra.mxu0 0.0
  %2108 = vmatprep.subr.mxu0 0.0
  %2109 = vmatpush1.xpose.msra.mxu0 0.0
  %2110 = vmatprep.subr.mxu0 0.0
  %2111 = vmatpush1.xpose.msra.mxu0 0.0
  %2112 = vmatprep.subr.mxu0 0.0
  %2113 = vmatpush1.xpose.msra.mxu0 0.0
  %2114 = vmatprep.subr.mxu0 0.0
  %2115 = vmatpush1.xpose.msra.mxu0 0.0
  %2116 = vmatprep.subr.mxu0 0.0
  %2117 = vmatpush1.xpose.msra.mxu0 0.0
  %2118 = vmatprep.subr.mxu0 0.0
  %2119 = vmatpush1.xpose.msra.mxu0 0.0
  %2120 = vmatprep.subr.mxu0 0.0
  %2121 = vmatpush1.xpose.msra.mxu0 0.0
  %2122 = vmatprep.subr.mxu0 0.0
  %2123 = vmatpush1.xpose.msra.mxu0 0.0
  %2124 = vmatprep.subr.mxu0 0.0
  %2125 = vmatpush1.xpose.msra.mxu0 0.0
  %2126 = vmatprep.subr.mxu0 0.0
  %2127 = vmatpush1.xpose.msra.mxu0 0.0
  %2128 = vmatprep.subr.mxu0 0.0
  %2129 = vmatpush1.xpose.msra.mxu0 0.0
  %2130 = vmatprep.subr.mxu0 0.0
  %2131 = vmatpush1.xpose.msra.mxu0 0.0
  %2132 = vmatprep.subr.mxu0 0.0
  %2133 = vmatpush1.xpose.msra.mxu0 0.0
  %2134 = vmatprep.subr.mxu0 0.0
  %2135 = vmatpush1.xpose.msra.mxu0 0.0
  %2136 = vmatprep.subr.mxu0 0.0
  %2137 = vmatpush1.xpose.msra.mxu0 0.0
  %2138 = vmatprep.subr.mxu0 0.0
  %2139 = vmatpush1.xpose.msra.mxu0 0.0
  %2140 = vmatprep.subr.mxu0 0.0
  %2141 = vmatpush1.xpose.msra.mxu0 0.0
  %2142 = vmatprep.subr.mxu0 0.0
  %2143 = vmatpush1.xpose.msra.mxu0 0.0
  %2144 = vmatprep.mubr.f32.mxu0 0.0
  %2145 = vmatmul.mubr.f32.gmra.mrb[0].mxu0 %v2072
  %v2146 = vpop.f32.mrb[0].mxu0
  %v2147 = vadd.f32 0.0, %v2146
  %v2148 = vpop.f32.mrb[0].mxu0
  %2149 = vdwg.mxu0
  %v2151 = vsel %vm163, %v2070, 0
  %v2154 = vsel %vm163, %v2061, 0
  %v2157 = vsel %vm163, %v2066, 0
  %2159 = vmatprep.subr.mxu0 0.0
  %2160 = vmatpush1.xpose.msra.mxu0 %v2154
  %2161 = vmatprep.subr.mxu0 0.0
  %2162 = vmatpush1.xpose.msra.mxu0 %v2157
  %2163 = vmatprep.subr.mxu0 0.0
  %2164 = vmatpush1.xpose.msra.mxu0 0.0
  %2165 = vmatprep.subr.mxu0 0.0
  %2166 = vmatpush1.xpose.msra.mxu0 0.0
  %2167 = vmatprep.subr.mxu0 0.0
  %2168 = vmatpush1.xpose.msra.mxu0 0.0
  %2169 = vmatprep.subr.mxu0 0.0
  %2170 = vmatpush1.xpose.msra.mxu0 0.0
  %2171 = vmatprep.subr.mxu0 0.0
  %2172 = vmatpush1.xpose.msra.mxu0 0.0
  %2173 = vmatprep.subr.mxu0 0.0
  %2174 = vmatpush1.xpose.msra.mxu0 0.0
  %2175 = vmatprep.subr.mxu0 0.0
  %2176 = vmatpush1.xpose.msra.mxu0 0.0
  %2177 = vmatprep.subr.mxu0 0.0
  %2178 = vmatpush1.xpose.msra.mxu0 0.0
  %2179 = vmatprep.subr.mxu0 0.0
  %2180 = vmatpush1.xpose.msra.mxu0 0.0
  %2181 = vmatprep.subr.mxu0 0.0
  %2182 = vmatpush1.xpose.msra.mxu0 0.0
  %2183 = vmatprep.subr.mxu0 0.0
  %2184 = vmatpush1.xpose.msra.mxu0 0.0
  %2185 = vmatprep.subr.mxu0 0.0
  %2186 = vmatpush1.xpose.msra.mxu0 0.0
  %2187 = vmatprep.subr.mxu0 0.0
  %2188 = vmatpush1.xpose.msra.mxu0 0.0
  %2189 = vmatprep.subr.mxu0 0.0
  %2190 = vmatpush1.xpose.msra.mxu0 0.0
  %2191 = vmatprep.subr.mxu0 0.0
  %2192 = vmatpush1.xpose.msra.mxu0 0.0
  %2193 = vmatprep.subr.mxu0 0.0
  %2194 = vmatpush1.xpose.msra.mxu0 0.0
  %2195 = vmatprep.subr.mxu0 0.0
  %2196 = vmatpush1.xpose.msra.mxu0 0.0
  %2197 = vmatprep.subr.mxu0 0.0
  %2198 = vmatpush1.xpose.msra.mxu0 0.0
  %2199 = vmatprep.subr.mxu0 0.0
  %2200 = vmatpush1.xpose.msra.mxu0 0.0
  %2201 = vmatprep.subr.mxu0 0.0
  %2202 = vmatpush1.xpose.msra.mxu0 0.0
  %2203 = vmatprep.subr.mxu0 0.0
  %2204 = vmatpush1.xpose.msra.mxu0 0.0
  %2205 = vmatprep.subr.mxu0 0.0
  %2206 = vmatpush1.xpose.msra.mxu0 0.0
  %2207 = vmatprep.subr.mxu0 0.0
  %2208 = vmatpush1.xpose.msra.mxu0 0.0
  %2209 = vmatprep.subr.mxu0 0.0
  %2210 = vmatpush1.xpose.msra.mxu0 0.0
  %2211 = vmatprep.subr.mxu0 0.0
  %2212 = vmatpush1.xpose.msra.mxu0 0.0
  %2213 = vmatprep.subr.mxu0 0.0
  %2214 = vmatpush1.xpose.msra.mxu0 0.0
  %2215 = vmatprep.subr.mxu0 0.0
  %2216 = vmatpush1.xpose.msra.mxu0 0.0
  %2217 = vmatprep.subr.mxu0 0.0
  %2218 = vmatpush1.xpose.msra.mxu0 0.0
  %2219 = vmatprep.subr.mxu0 0.0
  %2220 = vmatpush1.xpose.msra.mxu0 0.0
  %2221 = vmatprep.subr.mxu0 0.0
  %2222 = vmatpush1.xpose.msra.mxu0 0.0
  %2223 = vmatprep.mubr.f32.mxu0 0.0
  %2224 = vmatmul.mubr.f32.gmra.mrb[0].mxu0 %v2151
  %v2225 = vpop.f32.mrb[0].mxu0
  %v2226 = vadd.f32 0.0, %v2225
  %v2227 = vpop.f32.mrb[0].mxu0
  %2228 = vdwg.mxu0
  %vm2229 = vcmask 130048
  %v2230 = vsel %vm2229, %v2147, -inf
  %2231 = vmax.xlane.f32.xlu0 %v2230
  %v2232 = vpop.xlane.xlu0 %2231
  %v2233 = vsel %vm2229, %v2226, -inf
  %2234 = vmax.xlane.f32.xlu0 %v2233
  %v2235 = vpop.xlane.xlu0 %2234
  %v2236 = vsub.f32 %v2147, %v2232
  %v2237 = vsub.f32 %v2226, %v2235
  %v2238 = vmul.f32 %v2236, 1.442695
  %v2239 = vpow.pop %v2238
  %v2240 = vmul.f32 %v2237, 1.442695
  %v2241 = vpow.pop %v2240
  %v2242 = vsel %vm2229, %v2239, 0.0
  %2243 = vadd.xlane.f32.xlu0 %v2242
  %v2244 = vpop.xlane.xlu0 %2243
  %v2245 = vsel %vm2229, %v2241, 0.0
  %2246 = vadd.xlane.f32.xlu0 %v2245
  %v2247 = vpop.xlane.xlu0 %2246
  %v2248 = vrcp.pop %v2244
  %v2249 = vrcp.pop %v2247
  %v2250 = vmul.f32 %v2239, %v2248
  %v2251 = vmul.f32 %v2241, %v2249
  %2252 = vrot.lane.b32.xlu0 %v2051, 96
  %v2253 = vpop.permute.xlu0 %2252
  %2254 = vrot.lane.b32.xlu0 %v2056, 96
  %v2255 = vpop.permute.xlu0 %2254
  %v2259 = vsel %vm2229, %v2250, 0
  %2261 = vmatprep.subr.mxu0 0.0
  %2262 = vmatpush1.msra.mxu0 %v2253
  %2263 = vmatprep.subr.mxu0 0.0
  %2264 = vmatpush1.msra.mxu0 %v2255
  %2265 = vmatprep.subr.mxu0 0.0
  %2266 = vmatpush1.msra.mxu0 0.0
  %2267 = vmatprep.subr.mxu0 0.0
  %2268 = vmatpush1.msra.mxu0 0.0
  %2269 = vmatprep.subr.mxu0 0.0
  %2270 = vmatpush1.msra.mxu0 0.0
  %2271 = vmatprep.subr.mxu0 0.0
  %2272 = vmatpush1.msra.mxu0 0.0
  %2273 = vmatprep.subr.mxu0 0.0
  %2274 = vmatpush1.msra.mxu0 0.0
  %2275 = vmatprep.subr.mxu0 0.0
  %2276 = vmatpush1.msra.mxu0 0.0
  %2277 = vmatprep.subr.mxu0 0.0
  %2278 = vmatpush1.msra.mxu0 0.0
  %2279 = vmatprep.subr.mxu0 0.0
  %2280 = vmatpush1.msra.mxu0 0.0
  %2281 = vmatprep.subr.mxu0 0.0
  %2282 = vmatpush1.msra.mxu0 0.0
  %2283 = vmatprep.subr.mxu0 0.0
  %2284 = vmatpush1.msra.mxu0 0.0
  %2285 = vmatprep.subr.mxu0 0.0
  %2286 = vmatpush1.msra.mxu0 0.0
  %2287 = vmatprep.subr.mxu0 0.0
  %2288 = vmatpush1.msra.mxu0 0.0
  %2289 = vmatprep.subr.mxu0 0.0
  %2290 = vmatpush1.msra.mxu0 0.0
  %2291 = vmatprep.subr.mxu0 0.0
  %2292 = vmatpush1.msra.mxu0 0.0
  %2293 = vmatprep.subr.mxu0 0.0
  %2294 = vmatpush1.msra.mxu0 0.0
  %2295 = vmatprep.subr.mxu0 0.0
  %2296 = vmatpush1.msra.mxu0 0.0
  %2297 = vmatprep.subr.mxu0 0.0
  %2298 = vmatpush1.msra.mxu0 0.0
  %2299 = vmatprep.subr.mxu0 0.0
  %2300 = vmatpush1.msra.mxu0 0.0
  %2301 = vmatprep.subr.mxu0 0.0
  %2302 = vmatpush1.msra.mxu0 0.0
  %2303 = vmatprep.subr.mxu0 0.0
  %2304 = vmatpush1.msra.mxu0 0.0
  %2305 = vmatprep.subr.mxu0 0.0
  %2306 = vmatpush1.msra.mxu0 0.0
  %2307 = vmatprep.subr.mxu0 0.0
  %2308 = vmatpush1.msra.mxu0 0.0
  %2309 = vmatprep.subr.mxu0 0.0
  %2310 = vmatpush1.msra.mxu0 0.0
  %2311 = vmatprep.subr.mxu0 0.0
  %2312 = vmatpush1.msra.mxu0 0.0
  %2313 = vmatprep.subr.mxu0 0.0
  %2314 = vmatpush1.msra.mxu0 0.0
  %2315 = vmatprep.subr.mxu0 0.0
  %2316 = vmatpush1.msra.mxu0 0.0
  %2317 = vmatprep.subr.mxu0 0.0
  %2318 = vmatpush1.msra.mxu0 0.0
  %2319 = vmatprep.subr.mxu0 0.0
  %2320 = vmatpush1.msra.mxu0 0.0
  %2321 = vmatprep.subr.mxu0 0.0
  %2322 = vmatpush1.msra.mxu0 0.0
  %2323 = vmatprep.subr.mxu0 0.0
  %2324 = vmatpush1.msra.mxu0 0.0
  %2325 = vmatprep.mubr.f32.mxu0 0.0
  %2326 = vmatmul.mubr.f32.gmra.mrb[0].mxu0 %v2259
  %v2327 = vpop.f32.mrb[0].mxu0
  %v2328 = vadd.f32 0.0, %v2327
  %v2329 = vpop.f32.mrb[0].mxu0
  %2330 = vdwg.mxu0
  %2331 = vrot.lane.b32.xlu0 %v2061, 96
  %v2332 = vpop.permute.xlu0 %2331
  %2333 = vrot.lane.b32.xlu0 %v2066, 96
  %v2334 = vpop.permute.xlu0 %2333
  %v2338 = vsel %vm2229, %v2251, 0
  %2340 = vmatprep.subr.mxu0 0.0
  %2341 = vmatpush1.msra.mxu0 %v2332
  %2342 = vmatprep.subr.mxu0 0.0
  %2343 = vmatpush1.msra.mxu0 %v2334
  %2344 = vmatprep.subr.mxu0 0.0
  %2345 = vmatpush1.msra.mxu0 0.0
  %2346 = vmatprep.subr.mxu0 0.0
  %2347 = vmatpush1.msra.mxu0 0.0
  %2348 = vmatprep.subr.mxu0 0.0
  %2349 = vmatpush1.msra.mxu0 0.0
  %2350 = vmatprep.subr.mxu0 0.0
  %2351 = vmatpush1.msra.mxu0 0.0
  %2352 = vmatprep.subr.mxu0 0.0
  %2353 = vmatpush1.msra.mxu0 0.0
  %2354 = vmatprep.subr.mxu0 0.0
  %2355 = vmatpush1.msra.mxu0 0.0
  %2356 = vmatprep.subr.mxu0 0.0
  %2357 = vmatpush1.msra.mxu0 0.0
  %2358 = vmatprep.subr.mxu0 0.0
  %2359 = vmatpush1.msra.mxu0 0.0
  %2360 = vmatprep.subr.mxu0 0.0
  %2361 = vmatpush1.msra.mxu0 0.0
  %2362 = vmatprep.subr.mxu0 0.0
  %2363 = vmatpush1.msra.mxu0 0.0
  %2364 = vmatprep.subr.mxu0 0.0
  %2365 = vmatpush1.msra.mxu0 0.0
  %2366 = vmatprep.subr.mxu0 0.0
  %2367 = vmatpush1.msra.mxu0 0.0
  %2368 = vmatprep.subr.mxu0 0.0
  %2369 = vmatpush1.msra.mxu0 0.0
  %2370 = vmatprep.subr.mxu0 0.0
  %2371 = vmatpush1.msra.mxu0 0.0
  %2372 = vmatprep.subr.mxu0 0.0
  %2373 = vmatpush1.msra.mxu0 0.0
  %2374 = vmatprep.subr.mxu0 0.0
  %2375 = vmatpush1.msra.mxu0 0.0
  %2376 = vmatprep.subr.mxu0 0.0
  %2377 = vmatpush1.msra.mxu0 0.0
  %2378 = vmatprep.subr.mxu0 0.0
  %2379 = vmatpush1.msra.mxu0 0.0
  %2380 = vmatprep.subr.mxu0 0.0
  %2381 = vmatpush1.msra.mxu0 0.0
  %2382 = vmatprep.subr.mxu0 0.0
  %2383 = vmatpush1.msra.mxu0 0.0
  %2384 = vmatprep.subr.mxu0 0.0
  %2385 = vmatpush1.msra.mxu0 0.0
  %2386 = vmatprep.subr.mxu0 0.0
  %2387 = vmatpush1.msra.mxu0 0.0
  %2388 = vmatprep.subr.mxu0 0.0
  %2389 = vmatpush1.msra.mxu0 0.0
  %2390 = vmatprep.subr.mxu0 0.0
  %2391 = vmatpush1.msra.mxu0 0.0
  %2392 = vmatprep.subr.mxu0 0.0
  %2393 = vmatpush1.msra.mxu0 0.0
  %2394 = vmatprep.subr.mxu0 0.0
  %2395 = vmatpush1.msra.mxu0 0.0
  %2396 = vmatprep.subr.mxu0 0.0
  %2397 = vmatpush1.msra.mxu0 0.0
  %2398 = vmatprep.subr.mxu0 0.0
  %2399 = vmatpush1.msra.mxu0 0.0
  %2400 = vmatprep.subr.mxu0 0.0
  %2401 = vmatpush1.msra.mxu0 0.0
  %2402 = vmatprep.subr.mxu0 0.0
  %2403 = vmatpush1.msra.mxu0 0.0
  %2404 = vmatprep.mubr.f32.mxu0 0.0
  %2405 = vmatmul.mubr.f32.gmra.mrb[0].mxu0 %v2338
  %v2406 = vpop.f32.mrb[0].mxu0
  %v2407 = vadd.f32 0.0, %v2406
  %v2408 = vpop.f32.mrb[0].mxu0
  %2409 = vdwg.mxu0
  %v2410 = vld [vmem:[%s12] sm:$0xff]
  %2411 = vrot.lane.b32.xlu0 %v2069, 120
  %v2412 = vpop.permute.xlu0 %2411
  %2413 = vrot.lane.b32.xlu0 %v2051, 120
  %v2414 = vpop.permute.xlu0 %2413
  %2415 = vrot.lane.b32.xlu0 %v2056, 120
  %v2416 = vpop.permute.xlu0 %2415
  %v2417 = vsel %vm163, %v2412, 0
  %v2419 = vsel %vm163, %v2414, 0
  %v2421 = vsel %vm163, %v2416, 0
  %2423 = vmatprep.subr.mxu0 0.0
  %2424 = vmatpush1.xpose.msra.mxu0 %v2419
  %2425 = vmatprep.subr.mxu0 0.0
  %2426 = vmatpush1.xpose.msra.mxu0 %v2421
  %2427 = vmatprep.subr.mxu0 0.0
  %2428 = vmatpush1.xpose.msra.mxu0 0.0
  %2429 = vmatprep.subr.mxu0 0.0
  %2430 = vmatpush1.xpose.msra.mxu0 0.0
  %2431 = vmatprep.subr.mxu0 0.0
  %2432 = vmatpush1.xpose.msra.mxu0 0.0
  %2433 = vmatprep.subr.mxu0 0.0
  %2434 = vmatpush1.xpose.msra.mxu0 0.0
  %2435 = vmatprep.subr.mxu0 0.0
  %2436 = vmatpush1.xpose.msra.mxu0 0.0
  %2437 = vmatprep.subr.mxu0 0.0
  %2438 = vmatpush1.xpose.msra.mxu0 0.0
  %2439 = vmatprep.subr.mxu0 0.0
  %2440 = vmatpush1.xpose.msra.mxu0 0.0
  %2441 = vmatprep.subr.mxu0 0.0
  %2442 = vmatpush1.xpose.msra.mxu0 0.0
  %2443 = vmatprep.subr.mxu0 0.0
  %2444 = vmatpush1.xpose.msra.mxu0 0.0
  %2445 = vmatprep.subr.mxu0 0.0
  %2446 = vmatpush1.xpose.msra.mxu0 0.0
  %2447 = vmatprep.subr.mxu0 0.0
  %2448 = vmatpush1.xpose.msra.mxu0 0.0
  %2449 = vmatprep.subr.mxu0 0.0
  %2450 = vmatpush1.xpose.msra.mxu0 0.0
  %2451 = vmatprep.subr.mxu0 0.0
  %2452 = vmatpush1.xpose.msra.mxu0 0.0
  %2453 = vmatprep.subr.mxu0 0.0
  %2454 = vmatpush1.xpose.msra.mxu0 0.0
  %2455 = vmatprep.subr.mxu0 0.0
  %2456 = vmatpush1.xpose.msra.mxu0 0.0
  %2457 = vmatprep.subr.mxu0 0.0
  %2458 = vmatpush1.xpose.msra.mxu0 0.0
  %2459 = vmatprep.subr.mxu0 0.0
  %2460 = vmatpush1.xpose.msra.mxu0 0.0
  %2461 = vmatprep.subr.mxu0 0.0
  %2462 = vmatpush1.xpose.msra.mxu0 0.0
  %2463 = vmatprep.subr.mxu0 0.0
  %2464 = vmatpush1.xpose.msra.mxu0 0.0
  %2465 = vmatprep.subr.mxu0 0.0
  %2466 = vmatpush1.xpose.msra.mxu0 0.0
  %2467 = vmatprep.subr.mxu0 0.0
  %2468 = vmatpush1.xpose.msra.mxu0 0.0
  %2469 = vmatprep.subr.mxu0 0.0
  %2470 = vmatpush1.xpose.msra.mxu0 0.0
  %2471 = vmatprep.subr.mxu0 0.0
  %2472 = vmatpush1.xpose.msra.mxu0 0.0
  %2473 = vmatprep.subr.mxu0 0.0
  %2474 = vmatpush1.xpose.msra.mxu0 0.0
  %2475 = vmatprep.subr.mxu0 0.0
  %2476 = vmatpush1.xpose.msra.mxu0 0.0
  %2477 = vmatprep.subr.mxu0 0.0
  %2478 = vmatpush1.xpose.msra.mxu0 0.0
  %2479 = vmatprep.subr.mxu0 0.0
  %2480 = vmatpush1.xpose.msra.mxu0 0.0
  %2481 = vmatprep.subr.mxu0 0.0
  %2482 = vmatpush1.xpose.msra.mxu0 0.0
  %2483 = vmatprep.subr.mxu0 0.0
  %2484 = vmatpush1.xpose.msra.mxu0 0.0
  %2485 = vmatprep.subr.mxu0 0.0
  %2486 = vmatpush1.xpose.msra.mxu0 0.0
  %2487 = vmatprep.mubr.f32.mxu0 0.0
  %2488 = vmatmul.mubr.f32.gmra.mrb[0].mxu0 %v2417
  %v2489 = vpop.f32.mrb[0].mxu0
  %v2490 = vadd.f32 0.0, %v2489
  %v2491 = vpop.f32.mrb[0].mxu0
  %2492 = vdwg.mxu0
  %2493 = vrot.lane.b32.xlu0 %v2070, 120
  %v2494 = vpop.permute.xlu0 %2493
  %2495 = vrot.lane.b32.xlu0 %v2061, 120
  %v2496 = vpop.permute.xlu0 %2495
  %2497 = vrot.lane.b32.xlu0 %v2066, 120
  %v2498 = vpop.permute.xlu0 %2497
  %v2499 = vsel %vm163, %v2494, 0
  %v2501 = vsel %vm163, %v2496, 0
  %v2503 = vsel %vm163, %v2498, 0
  %2505 = vmatprep.subr.mxu0 0.0
  %2506 = vmatpush1.xpose.msra.mxu0 %v2501
  %2507 = vmatprep.subr.mxu0 0.0
  %2508 = vmatpush1.xpose.msra.mxu0 %v2503
  %2509 = vmatprep.subr.mxu0 0.0
  %2510 = vmatpush1.xpose.msra.mxu0 0.0
  %2511 = vmatprep.subr.mxu0 0.0
  %2512 = vmatpush1.xpose.msra.mxu0 0.0
  %2513 = vmatprep.subr.mxu0 0.0
  %2514 = vmatpush1.xpose.msra.mxu0 0.0
  %2515 = vmatprep.subr.mxu0 0.0
  %2516 = vmatpush1.xpose.msra.mxu0 0.0
  %2517 = vmatprep.subr.mxu0 0.0
  %2518 = vmatpush1.xpose.msra.mxu0 0.0
  %2519 = vmatprep.subr.mxu0 0.0
  %2520 = vmatpush1.xpose.msra.mxu0 0.0
  %2521 = vmatprep.subr.mxu0 0.0
  %2522 = vmatpush1.xpose.msra.mxu0 0.0
  %2523 = vmatprep.subr.mxu0 0.0
  %2524 = vmatpush1.xpose.msra.mxu0 0.0
  %2525 = vmatprep.subr.mxu0 0.0
  %2526 = vmatpush1.xpose.msra.mxu0 0.0
  %2527 = vmatprep.subr.mxu0 0.0
  %2528 = vmatpush1.xpose.msra.mxu0 0.0
  %2529 = vmatprep.subr.mxu0 0.0
  %2530 = vmatpush1.xpose.msra.mxu0 0.0
  %2531 = vmatprep.subr.mxu0 0.0
  %2532 = vmatpush1.xpose.msra.mxu0 0.0
  %2533 = vmatprep.subr.mxu0 0.0
  %2534 = vmatpush1.xpose.msra.mxu0 0.0
  %2535 = vmatprep.subr.mxu0 0.0
  %2536 = vmatpush1.xpose.msra.mxu0 0.0
  %2537 = vmatprep.subr.mxu0 0.0
  %2538 = vmatpush1.xpose.msra.mxu0 0.0
  %2539 = vmatprep.subr.mxu0 0.0
  %2540 = vmatpush1.xpose.msra.mxu0 0.0
  %2541 = vmatprep.subr.mxu0 0.0
  %2542 = vmatpush1.xpose.msra.mxu0 0.0
  %2543 = vmatprep.subr.mxu0 0.0
  %2544 = vmatpush1.xpose.msra.mxu0 0.0
  %2545 = vmatprep.subr.mxu0 0.0
  %2546 = vmatpush1.xpose.msra.mxu0 0.0
  %2547 = vmatprep.subr.mxu0 0.0
  %2548 = vmatpush1.xpose.msra.mxu0 0.0
  %2549 = vmatprep.subr.mxu0 0.0
  %2550 = vmatpush1.xpose.msra.mxu0 0.0
  %2551 = vmatprep.subr.mxu0 0.0
  %2552 = vmatpush1.xpose.msra.mxu0 0.0
  %2553 = vmatprep.subr.mxu0 0.0
  %2554 = vmatpush1.xpose.msra.mxu0 0.0
  %2555 = vmatprep.subr.mxu0 0.0
  %2556 = vmatpush1.xpose.msra.mxu0 0.0
  %2557 = vmatprep.subr.mxu0 0.0
  %2558 = vmatpush1.xpose.msra.mxu0 0.0
  %2559 = vmatprep.subr.mxu0 0.0
  %2560 = vmatpush1.xpose.msra.mxu0 0.0
  %2561 = vmatprep.subr.mxu0 0.0
  %2562 = vmatpush1.xpose.msra.mxu0 0.0
  %2563 = vmatprep.subr.mxu0 0.0
  %2564 = vmatpush1.xpose.msra.mxu0 0.0
  %2565 = vmatprep.subr.mxu0 0.0
  %2566 = vmatpush1.xpose.msra.mxu0 0.0
  %2567 = vmatprep.subr.mxu0 0.0
  %2568 = vmatpush1.xpose.msra.mxu0 0.0
  %2569 = vmatprep.mubr.f32.mxu0 0.0
  %2570 = vmatmul.mubr.f32.gmra.mrb[0].mxu0 %v2499
  %v2571 = vpop.f32.mrb[0].mxu0
  %v2572 = vadd.f32 0.0, %v2571
  %v2573 = vpop.f32.mrb[0].mxu0
  %2574 = vdwg.mxu0
  %v2575 = vsel %vm2229, %v2490, -inf
  %2576 = vmax.xlane.f32.xlu0 %v2575
  %v2577 = vpop.xlane.xlu0 %2576
  %v2578 = vsel %vm2229, %v2572, -inf
  %2579 = vmax.xlane.f32.xlu0 %v2578
  %v2580 = vpop.xlane.xlu0 %2579
  %v2581 = vsub.f32 %v2490, %v2577
  %v2582 = vsub.f32 %v2572, %v2580
  %v2583 = vmul.f32 %v2581, 1.442695
  %v2584 = vpow.pop %v2583
  %v2585 = vmul.f32 %v2582, 1.442695
  %v2586 = vpow.pop %v2585
  %v2587 = vsel %vm2229, %v2584, 0.0
  %2588 = vadd.xlane.f32.xlu0 %v2587
  %v2589 = vpop.xlane.xlu0 %2588
  %v2590 = vsel %vm2229, %v2586, 0.0
  %2591 = vadd.xlane.f32.xlu0 %v2590
  %v2592 = vpop.xlane.xlu0 %2591
  %v2593 = vrcp.pop %v2589
  %v2594 = vrcp.pop %v2592
  %v2595 = vmul.f32 %v2584, %v2593
  %v2596 = vmul.f32 %v2586, %v2594
  %2597 = vrot.lane.b32.xlu0 %v2051, 88
  %v2598 = vpop.permute.xlu0 %2597
  %2599 = vrot.lane.b32.xlu0 %v2056, 88
  %v2600 = vpop.permute.xlu0 %2599
  %v2604 = vsel %vm2229, %v2595, 0
  %2606 = vmatprep.subr.mxu0 0.0
  %2607 = vmatpush1.msra.mxu0 %v2598
  %2608 = vmatprep.subr.mxu0 0.0
  %2609 = vmatpush1.msra.mxu0 %v2600
  %2610 = vmatprep.subr.mxu0 0.0
  %2611 = vmatpush1.msra.mxu0 0.0
  %2612 = vmatprep.subr.mxu0 0.0
  %2613 = vmatpush1.msra.mxu0 0.0
  %2614 = vmatprep.subr.mxu0 0.0
  %2615 = vmatpush1.msra.mxu0 0.0
  %2616 = vmatprep.subr.mxu0 0.0
  %2617 = vmatpush1.msra.mxu0 0.0
  %2618 = vmatprep.subr.mxu0 0.0
  %2619 = vmatpush1.msra.mxu0 0.0
  %2620 = vmatprep.subr.mxu0 0.0
  %2621 = vmatpush1.msra.mxu0 0.0
  %2622 = vmatprep.subr.mxu0 0.0
  %2623 = vmatpush1.msra.mxu0 0.0
  %2624 = vmatprep.subr.mxu0 0.0
  %2625 = vmatpush1.msra.mxu0 0.0
  %2626 = vmatprep.subr.mxu0 0.0
  %2627 = vmatpush1.msra.mxu0 0.0
  %2628 = vmatprep.subr.mxu0 0.0
  %2629 = vmatpush1.msra.mxu0 0.0
  %2630 = vmatprep.subr.mxu0 0.0
  %2631 = vmatpush1.msra.mxu0 0.0
  %2632 = vmatprep.subr.mxu0 0.0
  %2633 = vmatpush1.msra.mxu0 0.0
  %2634 = vmatprep.subr.mxu0 0.0
  %2635 = vmatpush1.msra.mxu0 0.0
  %2636 = vmatprep.subr.mxu0 0.0
  %2637 = vmatpush1.msra.mxu0 0.0
  %2638 = vmatprep.subr.mxu0 0.0
  %2639 = vmatpush1.msra.mxu0 0.0
  %2640 = vmatprep.subr.mxu0 0.0
  %2641 = vmatpush1.msra.mxu0 0.0
  %2642 = vmatprep.subr.mxu0 0.0
  %2643 = vmatpush1.msra.mxu0 0.0
  %2644 = vmatprep.subr.mxu0 0.0
  %2645 = vmatpush1.msra.mxu0 0.0
  %2646 = vmatprep.subr.mxu0 0.0
  %2647 = vmatpush1.msra.mxu0 0.0
  %2648 = vmatprep.subr.mxu0 0.0
  %2649 = vmatpush1.msra.mxu0 0.0
  %2650 = vmatprep.subr.mxu0 0.0
  %2651 = vmatpush1.msra.mxu0 0.0
  %2652 = vmatprep.subr.mxu0 0.0
  %2653 = vmatpush1.msra.mxu0 0.0
  %2654 = vmatprep.subr.mxu0 0.0
  %2655 = vmatpush1.msra.mxu0 0.0
  %2656 = vmatprep.subr.mxu0 0.0
  %2657 = vmatpush1.msra.mxu0 0.0
  %2658 = vmatprep.subr.mxu0 0.0
  %2659 = vmatpush1.msra.mxu0 0.0
  %2660 = vmatprep.subr.mxu0 0.0
  %2661 = vmatpush1.msra.mxu0 0.0
  %2662 = vmatprep.subr.mxu0 0.0
  %2663 = vmatpush1.msra.mxu0 0.0
  %2664 = vmatprep.subr.mxu0 0.0
  %2665 = vmatpush1.msra.mxu0 0.0
  %2666 = vmatprep.subr.mxu0 0.0
  %2667 = vmatpush1.msra.mxu0 0.0
  %2668 = vmatprep.subr.mxu0 0.0
  %2669 = vmatpush1.msra.mxu0 0.0
  %2670 = vmatprep.mubr.f32.mxu0 0.0
  %2671 = vmatmul.mubr.f32.gmra.mrb[0].mxu0 %v2604
  %v2672 = vpop.f32.mrb[0].mxu0
  %v2673 = vadd.f32 0.0, %v2672
  %v2674 = vpop.f32.mrb[0].mxu0
  %2675 = vdwg.mxu0
  %2676 = vrot.lane.b32.xlu0 %v2061, 88
  %v2677 = vpop.permute.xlu0 %2676
  %2678 = vrot.lane.b32.xlu0 %v2066, 88
  %v2679 = vpop.permute.xlu0 %2678
  %v2683 = vsel %vm2229, %v2596, 0
  %2685 = vmatprep.subr.mxu0 0.0
  %2686 = vmatpush1.msra.mxu0 %v2677
  %2687 = vmatprep.subr.mxu0 0.0
  %2688 = vmatpush1.msra.mxu0 %v2679
  %2689 = vmatprep.subr.mxu0 0.0
  %2690 = vmatpush1.msra.mxu0 0.0
  %2691 = vmatprep.subr.mxu0 0.0
  %2692 = vmatpush1.msra.mxu0 0.0
  %2693 = vmatprep.subr.mxu0 0.0
  %2694 = vmatpush1.msra.mxu0 0.0
  %2695 = vmatprep.subr.mxu0 0.0
  %2696 = vmatpush1.msra.mxu0 0.0
  %2697 = vmatprep.subr.mxu0 0.0
  %2698 = vmatpush1.msra.mxu0 0.0
  %2699 = vmatprep.subr.mxu0 0.0
  %2700 = vmatpush1.msra.mxu0 0.0
  %2701 = vmatprep.subr.mxu0 0.0
  %2702 = vmatpush1.msra.mxu0 0.0
  %2703 = vmatprep.subr.mxu0 0.0
  %2704 = vmatpush1.msra.mxu0 0.0
  %2705 = vmatprep.subr.mxu0 0.0
  %2706 = vmatpush1.msra.mxu0 0.0
  %2707 = vmatprep.subr.mxu0 0.0
  %2708 = vmatpush1.msra.mxu0 0.0
  %2709 = vmatprep.subr.mxu0 0.0
  %2710 = vmatpush1.msra.mxu0 0.0
  %2711 = vmatprep.subr.mxu0 0.0
  %2712 = vmatpush1.msra.mxu0 0.0
  %2713 = vmatprep.subr.mxu0 0.0
  %2714 = vmatpush1.msra.mxu0 0.0
  %2715 = vmatprep.subr.mxu0 0.0
  %2716 = vmatpush1.msra.mxu0 0.0
  %2717 = vmatprep.subr.mxu0 0.0
  %2718 = vmatpush1.msra.mxu0 0.0
  %2719 = vmatprep.subr.mxu0 0.0
  %2720 = vmatpush1.msra.mxu0 0.0
  %2721 = vmatprep.subr.mxu0 0.0
  %2722 = vmatpush1.msra.mxu0 0.0
  %2723 = vmatprep.subr.mxu0 0.0
  %2724 = vmatpush1.msra.mxu0 0.0
  %2725 = vmatprep.subr.mxu0 0.0
  %2726 = vmatpush1.msra.mxu0 0.0
  %2727 = vmatprep.subr.mxu0 0.0
  %2728 = vmatpush1.msra.mxu0 0.0
  %2729 = vmatprep.subr.mxu0 0.0
  %2730 = vmatpush1.msra.mxu0 0.0
  %2731 = vmatprep.subr.mxu0 0.0
  %2732 = vmatpush1.msra.mxu0 0.0
  %2733 = vmatprep.subr.mxu0 0.0
  %2734 = vmatpush1.msra.mxu0 0.0
  %2735 = vmatprep.subr.mxu0 0.0
  %2736 = vmatpush1.msra.mxu0 0.0
  %2737 = vmatprep.subr.mxu0 0.0
  %2738 = vmatpush1.msra.mxu0 0.0
  %2739 = vmatprep.subr.mxu0 0.0
  %2740 = vmatpush1.msra.mxu0 0.0
  %2741 = vmatprep.subr.mxu0 0.0
  %2742 = vmatpush1.msra.mxu0 0.0
  %2743 = vmatprep.subr.mxu0 0.0
  %2744 = vmatpush1.msra.mxu0 0.0
  %2745 = vmatprep.subr.mxu0 0.0
  %2746 = vmatpush1.msra.mxu0 0.0
  %2747 = vmatprep.subr.mxu0 0.0
  %2748 = vmatpush1.msra.mxu0 0.0
  %2749 = vmatprep.mubr.f32.mxu0 0.0
  %2750 = vmatmul.mubr.f32.gmra.mrb[0].mxu0 %v2683
  %v2751 = vpop.f32.mrb[0].mxu0
  %v2752 = vadd.f32 0.0, %v2751
  %v2753 = vpop.f32.mrb[0].mxu0
  %2754 = vdwg.mxu0
  %v2755 = vld [vmem:[%s12 + $0x8] sm:$0xff]
  %v2757 = vsel %vm163, %v2673, 0
  %v2760 = vsel %vm163, %v2752, 0
  %2762 = vmatprep.subr.mxu0 0.0
  %2763 = vmatpush1.msra.mxu0 %v2755
  %2764 = vmatprep.subr.mxu0 0.0
  %2765 = vmatpush1.msra.mxu0 0.0
  %2766 = vmatprep.subr.mxu0 0.0
  %2767 = vmatpush1.msra.mxu0 0.0
  %2768 = vmatprep.subr.mxu0 0.0
  %2769 = vmatpush1.msra.mxu0 0.0
  %2770 = vmatprep.subr.mxu0 0.0
  %2771 = vmatpush1.msra.mxu0 0.0
  %2772 = vmatprep.subr.mxu0 0.0
  %2773 = vmatpush1.msra.mxu0 0.0
  %2774 = vmatprep.subr.mxu0 0.0
  %2775 = vmatpush1.msra.mxu0 0.0
  %2776 = vmatprep.subr.mxu0 0.0
  %2777 = vmatpush1.msra.mxu0 0.0
  %2778 = vmatprep.subr.mxu0 0.0
  %2779 = vmatpush1.msra.mxu0 0.0
  %2780 = vmatprep.subr.mxu0 0.0
  %2781 = vmatpush1.msra.mxu0 0.0
  %2782 = vmatprep.subr.mxu0 0.0
  %2783 = vmatpush1.msra.mxu0 0.0
  %2784 = vmatprep.subr.mxu0 0.0
  %2785 = vmatpush1.msra.mxu0 0.0
  %2786 = vmatprep.subr.mxu0 0.0
  %2787 = vmatpush1.msra.mxu0 0.0
  %2788 = vmatprep.subr.mxu0 0.0
  %2789 = vmatpush1.msra.mxu0 0.0
  %2790 = vmatprep.subr.mxu0 0.0
  %2791 = vmatpush1.msra.mxu0 0.0
  %2792 = vmatprep.subr.mxu0 0.0
  %2793 = vmatpush1.msra.mxu0 0.0
  %2794 = vmatprep.subr.mxu0 0.0
  %2795 = vmatpush1.msra.mxu0 0.0
  %2796 = vmatprep.subr.mxu0 0.0
  %2797 = vmatpush1.msra.mxu0 0.0
  %2798 = vmatprep.subr.mxu0 0.0
  %2799 = vmatpush1.msra.mxu0 0.0
  %2800 = vmatprep.subr.mxu0 0.0
  %2801 = vmatpush1.msra.mxu0 0.0
  %2802 = vmatprep.subr.mxu0 0.0
  %2803 = vmatpush1.msra.mxu0 0.0
  %2804 = vmatprep.subr.mxu0 0.0
  %2805 = vmatpush1.msra.mxu0 0.0
  %2806 = vmatprep.subr.mxu0 0.0
  %2807 = vmatpush1.msra.mxu0 0.0
  %2808 = vmatprep.subr.mxu0 0.0
  %2809 = vmatpush1.msra.mxu0 0.0
  %2810 = vmatprep.subr.mxu0 0.0
  %2811 = vmatpush1.msra.mxu0 0.0
  %2812 = vmatprep.subr.mxu0 0.0
  %2813 = vmatpush1.msra.mxu0 0.0
  %2814 = vmatprep.subr.mxu0 0.0
  %2815 = vmatpush1.msra.mxu0 0.0
  %2816 = vmatprep.subr.mxu0 0.0
  %2817 = vmatpush1.msra.mxu0 0.0
  %2818 = vmatprep.subr.mxu0 0.0
  %2819 = vmatpush1.msra.mxu0 0.0
  %2820 = vmatprep.subr.mxu0 0.0
  %2821 = vmatpush1.msra.mxu0 0.0
  %2822 = vmatprep.subr.mxu0 0.0
  %2823 = vmatpush1.msra.mxu0 0.0
  %2824 = vmatprep.subr.mxu0 0.0
  %2825 = vmatpush1.msra.mxu0 0.0
  %2826 = vmatprep.mubr.f32.mxu0 0.0
  %2827 = vmatmul.mubr.f32.gmra.mrb[0].mxu0 %v2757
  %v2828 = vpop.f32.mrb[0].mxu0
  %v2829 = vadd.f32 0.0, %v2828
  %v2830 = vpop.f32.mrb[0].mxu0
  %2831 = vmatprep.mubr.f32.mxu0 0.0
  %2832 = vmatmul.mubr.f32.gmra.mrb[0].mxu0 %v2760
  %v2833 = vpop.f32.mrb[0].mxu0
  %v2834 = vadd.f32 0.0, %v2833
  %v2835 = vpop.f32.mrb[0].mxu0
  %2836 = vdwg.mxu0
  %v2838 = vsel %vm163, %v2328, 0
  %v2841 = vsel %vm163, %v2407, 0
  %2843 = vmatprep.subr.mxu0 0.0
  %2844 = vmatpush1.msra.mxu0 %v2410
  %2845 = vmatprep.subr.mxu0 0.0
  %2846 = vmatpush1.msra.mxu0 0.0
  %2847 = vmatprep.subr.mxu0 0.0
  %2848 = vmatpush1.msra.mxu0 0.0
  %2849 = vmatprep.subr.mxu0 0.0
  %2850 = vmatpush1.msra.mxu0 0.0
  %2851 = vmatprep.subr.mxu0 0.0
  %2852 = vmatpush1.msra.mxu0 0.0
  %2853 = vmatprep.subr.mxu0 0.0
  %2854 = vmatpush1.msra.mxu0 0.0
  %2855 = vmatprep.subr.mxu0 0.0
  %2856 = vmatpush1.msra.mxu0 0.0
  %2857 = vmatprep.subr.mxu0 0.0
  %2858 = vmatpush1.msra.mxu0 0.0
  %2859 = vmatprep.subr.mxu0 0.0
  %2860 = vmatpush1.msra.mxu0 0.0
  %2861 = vmatprep.subr.mxu0 0.0
  %2862 = vmatpush1.msra.mxu0 0.0
  %2863 = vmatprep.subr.mxu0 0.0
  %2864 = vmatpush1.msra.mxu0 0.0
  %2865 = vmatprep.subr.mxu0 0.0
  %2866 = vmatpush1.msra.mxu0 0.0
  %2867 = vmatprep.subr.mxu0 0.0
  %2868 = vmatpush1.msra.mxu0 0.0
  %2869 = vmatprep.subr.mxu0 0.0
  %2870 = vmatpush1.msra.mxu0 0.0
  %2871 = vmatprep.subr.mxu0 0.0
  %2872 = vmatpush1.msra.mxu0 0.0
  %2873 = vmatprep.subr.mxu0 0.0
  %2874 = vmatpush1.msra.mxu0 0.0
  %2875 = vmatprep.subr.mxu0 0.0
  %2876 = vmatpush1.msra.mxu0 0.0
  %2877 = vmatprep.subr.mxu0 0.0
  %2878 = vmatpush1.msra.mxu0 0.0
  %2879 = vmatprep.subr.mxu0 0.0
  %2880 = vmatpush1.msra.mxu0 0.0
  %2881 = vmatprep.subr.mxu0 0.0
  %2882 = vmatpush1.msra.mxu0 0.0
  %2883 = vmatprep.subr.mxu0 0.0
  %2884 = vmatpush1.msra.mxu0 0.0
  %2885 = vmatprep.subr.mxu0 0.0
  %2886 = vmatpush1.msra.mxu0 0.0
  %2887 = vmatprep.subr.mxu0 0.0
  %2888 = vmatpush1.msra.mxu0 0.0
  %2889 = vmatprep.subr.mxu0 0.0
  %2890 = vmatpush1.msra.mxu0 0.0
  %2891 = vmatprep.subr.mxu0 0.0
  %2892 = vmatpush1.msra.mxu0 0.0
  %2893 = vmatprep.subr.mxu0 0.0
  %2894 = vmatpush1.msra.mxu0 0.0
  %2895 = vmatprep.subr.mxu0 0.0
  %2896 = vmatpush1.msra.mxu0 0.0
  %2897 = vmatprep.subr.mxu0 0.0
  %2898 = vmatpush1.msra.mxu0 0.0
  %2899 = vmatprep.subr.mxu0 0.0
  %2900 = vmatpush1.msra.mxu0 0.0
  %2901 = vmatprep.subr.mxu0 0.0
  %2902 = vmatpush1.msra.mxu0 0.0
  %2903 = vmatprep.subr.mxu0 0.0
  %2904 = vmatpush1.msra.mxu0 0.0
  %2905 = vmatprep.subr.mxu0 0.0
  %2906 = vmatpush1.msra.mxu0 0.0
  %2907 = vmatprep.mubr.f32.mxu0 0.0
  %2908 = vmatmul.mubr.f32.gmra.mrb[0].mxu0 %v2838
  %v2909 = vpop.f32.mrb[0].mxu0
  %v2910 = vadd.f32 %v2829, %v2909
  %v2911 = vpop.f32.mrb[0].mxu0
  %2912 = vmatprep.mubr.f32.mxu0 0.0
  %2913 = vmatmul.mubr.f32.gmra.mrb[0].mxu0 %v2841
  %v2914 = vpop.f32.mrb[0].mxu0
  %v2915 = vadd.f32 %v2834, %v2914
  %v2916 = vpop.f32.mrb[0].mxu0
  %2917 = vdwg.mxu0
  %2918 = vrot.lane.b32.xlu0 %v2069, 112
  %v2919 = vpop.permute.xlu0 %2918
  %2920 = vrot.lane.b32.xlu0 %v2051, 112
  %v2921 = vpop.permute.xlu0 %2920
  %2922 = vrot.lane.b32.xlu0 %v2056, 112
  %v2923 = vpop.permute.xlu0 %2922
  %v2924 = vsel %vm163, %v2919, 0
  %v2926 = vsel %vm163, %v2921, 0
  %v2928 = vsel %vm163, %v2923, 0
  %2930 = vmatprep.subr.mxu0 0.0
  %2931 = vmatpush1.xpose.msra.mxu0 %v2926
  %2932 = vmatprep.subr.mxu0 0.0
  %2933 = vmatpush1.xpose.msra.mxu0 %v2928
  %2934 = vmatprep.subr.mxu0 0.0
  %2935 = vmatpush1.xpose.msra.mxu0 0.0
  %2936 = vmatprep.subr.mxu0 0.0
  %2937 = vmatpush1.xpose.msra.mxu0 0.0
  %2938 = vmatprep.subr.mxu0 0.0
  %2939 = vmatpush1.xpose.msra.mxu0 0.0
  %2940 = vmatprep.subr.mxu0 0.0
  %2941 = vmatpush1.xpose.msra.mxu0 0.0
  %2942 = vmatprep.subr.mxu0 0.0
  %2943 = vmatpush1.xpose.msra.mxu0 0.0
  %2944 = vmatprep.subr.mxu0 0.0
  %2945 = vmatpush1.xpose.msra.mxu0 0.0
  %2946 = vmatprep.subr.mxu0 0.0
  %2947 = vmatpush1.xpose.msra.mxu0 0.0
  %2948 = vmatprep.subr.mxu0 0.0
  %2949 = vmatpush1.xpose.msra.mxu0 0.0
  %2950 = vmatprep.subr.mxu0 0.0
  %2951 = vmatpush1.xpose.msra.mxu0 0.0
  %2952 = vmatprep.subr.mxu0 0.0
  %2953 = vmatpush1.xpose.msra.mxu0 0.0
  %2954 = vmatprep.subr.mxu0 0.0
  %2955 = vmatpush1.xpose.msra.mxu0 0.0
  %2956 = vmatprep.subr.mxu0 0.0
  %2957 = vmatpush1.xpose.msra.mxu0 0.0
  %2958 = vmatprep.subr.mxu0 0.0
  %2959 = vmatpush1.xpose.msra.mxu0 0.0
  %2960 = vmatprep.subr.mxu0 0.0
  %2961 = vmatpush1.xpose.msra.mxu0 0.0
  %2962 = vmatprep.subr.mxu0 0.0
  %2963 = vmatpush1.xpose.msra.mxu0 0.0
  %2964 = vmatprep.subr.mxu0 0.0
  %2965 = vmatpush1.xpose.msra.mxu0 0.0
  %2966 = vmatprep.subr.mxu0 0.0
  %2967 = vmatpush1.xpose.msra.mxu0 0.0
  %2968 = vmatprep.subr.mxu0 0.0
  %2969 = vmatpush1.xpose.msra.mxu0 0.0
  %2970 = vmatprep.subr.mxu0 0.0
  %2971 = vmatpush1.xpose.msra.mxu0 0.0
  %2972 = vmatprep.subr.mxu0 0.0
  %2973 = vmatpush1.xpose.msra.mxu0 0.0
  %2974 = vmatprep.subr.mxu0 0.0
  %2975 = vmatpush1.xpose.msra.mxu0 0.0
  %2976 = vmatprep.subr.mxu0 0.0
  %2977 = vmatpush1.xpose.msra.mxu0 0.0
  %2978 = vmatprep.subr.mxu0 0.0
  %2979 = vmatpush1.xpose.msra.mxu0 0.0
  %2980 = vmatprep.subr.mxu0 0.0
  %2981 = vmatpush1.xpose.msra.mxu0 0.0
  %2982 = vmatprep.subr.mxu0 0.0
  %2983 = vmatpush1.xpose.msra.mxu0 0.0
  %2984 = vmatprep.subr.mxu0 0.0
  %2985 = vmatpush1.xpose.msra.mxu0 0.0
  %2986 = vmatprep.subr.mxu0 0.0
  %2987 = vmatpush1.xpose.msra.mxu0 0.0
  %2988 = vmatprep.subr.mxu0 0.0
  %2989 = vmatpush1.xpose.msra.mxu0 0.0
  %2990 = vmatprep.subr.mxu0 0.0
  %2991 = vmatpush1.xpose.msra.mxu0 0.0
  %2992 = vmatprep.subr.mxu0 0.0
  %2993 = vmatpush1.xpose.msra.mxu0 0.0
  %2994 = vmatprep.mubr.f32.mxu0 0.0
  %2995 = vmatmul.mubr.f32.gmra.mrb[0].mxu0 %v2924
  %v2996 = vpop.f32.mrb[0].mxu0
  %v2997 = vadd.f32 0.0, %v2996
  %v2998 = vpop.f32.mrb[0].mxu0
  %2999 = vdwg.mxu0
  %3000 = vrot.lane.b32.xlu0 %v2070, 112
  %v3001 = vpop.permute.xlu0 %3000
  %3002 = vrot.lane.b32.xlu0 %v2061, 112
  %v3003 = vpop.permute.xlu0 %3002
  %3004 = vrot.lane.b32.xlu0 %v2066, 112
  %v3005 = vpop.permute.xlu0 %3004
  %v3006 = vsel %vm163, %v3001, 0
  %v3008 = vsel %vm163, %v3003, 0
  %v3010 = vsel %vm163, %v3005, 0
  %3012 = vmatprep.subr.mxu0 0.0
  %3013 = vmatpush1.xpose.msra.mxu0 %v3008
  %3014 = vmatprep.subr.mxu0 0.0
  %3015 = vmatpush1.xpose.msra.mxu0 %v3010
  %3016 = vmatprep.subr.mxu0 0.0
  %3017 = vmatpush1.xpose.msra.mxu0 0.0
  %3018 = vmatprep.subr.mxu0 0.0
  %3019 = vmatpush1.xpose.msra.mxu0 0.0
  %3020 = vmatprep.subr.mxu0 0.0
  %3021 = vmatpush1.xpose.msra.mxu0 0.0
  %3022 = vmatprep.subr.mxu0 0.0
  %3023 = vmatpush1.xpose.msra.mxu0 0.0
  %3024 = vmatprep.subr.mxu0 0.0
  %3025 = vmatpush1.xpose.msra.mxu0 0.0
  %3026 = vmatprep.subr.mxu0 0.0
  %3027 = vmatpush1.xpose.msra.mxu0 0.0
  %3028 = vmatprep.subr.mxu0 0.0
  %3029 = vmatpush1.xpose.msra.mxu0 0.0
  %3030 = vmatprep.subr.mxu0 0.0
  %3031 = vmatpush1.xpose.msra.mxu0 0.0
  %3032 = vmatprep.subr.mxu0 0.0
  %3033 = vmatpush1.xpose.msra.mxu0 0.0
  %3034 = vmatprep.subr.mxu0 0.0
  %3035 = vmatpush1.xpose.msra.mxu0 0.0
  %3036 = vmatprep.subr.mxu0 0.0
  %3037 = vmatpush1.xpose.msra.mxu0 0.0
  %3038 = vmatprep.subr.mxu0 0.0
  %3039 = vmatpush1.xpose.msra.mxu0 0.0
  %3040 = vmatprep.subr.mxu0 0.0
  %3041 = vmatpush1.xpose.msra.mxu0 0.0
  %3042 = vmatprep.subr.mxu0 0.0
  %3043 = vmatpush1.xpose.msra.mxu0 0.0
  %3044 = vmatprep.subr.mxu0 0.0
  %3045 = vmatpush1.xpose.msra.mxu0 0.0
  %3046 = vmatprep.subr.mxu0 0.0
  %3047 = vmatpush1.xpose.msra.mxu0 0.0
  %3048 = vmatprep.subr.mxu0 0.0
  %3049 = vmatpush1.xpose.msra.mxu0 0.0
  %3050 = vmatprep.subr.mxu0 0.0
  %3051 = vmatpush1.xpose.msra.mxu0 0.0
  %3052 = vmatprep.subr.mxu0 0.0
  %3053 = vmatpush1.xpose.msra.mxu0 0.0
  %3054 = vmatprep.subr.mxu0 0.0
  %3055 = vmatpush1.xpose.msra.mxu0 0.0
  %3056 = vmatprep.subr.mxu0 0.0
  %3057 = vmatpush1.xpose.msra.mxu0 0.0
  %3058 = vmatprep.subr.mxu0 0.0
  %3059 = vmatpush1.xpose.msra.mxu0 0.0
  %3060 = vmatprep.subr.mxu0 0.0
  %3061 = vmatpush1.xpose.msra.mxu0 0.0
  %3062 = vmatprep.subr.mxu0 0.0
  %3063 = vmatpush1.xpose.msra.mxu0 0.0
  %3064 = vmatprep.subr.mxu0 0.0
  %3065 = vmatpush1.xpose.msra.mxu0 0.0
  %3066 = vmatprep.subr.mxu0 0.0
  %3067 = vmatpush1.xpose.msra.mxu0 0.0
  %3068 = vmatprep.subr.mxu0 0.0
  %3069 = vmatpush1.xpose.msra.mxu0 0.0
  %3070 = vmatprep.subr.mxu0 0.0
  %3071 = vmatpush1.xpose.msra.mxu0 0.0
  %3072 = vmatprep.subr.mxu0 0.0
  %3073 = vmatpush1.xpose.msra.mxu0 0.0
  %3074 = vmatprep.subr.mxu0 0.0
  %3075 = vmatpush1.xpose.msra.mxu0 0.0
  %3076 = vmatprep.mubr.f32.mxu0 0.0
  %3077 = vmatmul.mubr.f32.gmra.mrb[0].mxu0 %v3006
  %v3078 = vpop.f32.mrb[0].mxu0
  %v3079 = vadd.f32 0.0, %v3078
  %v3080 = vpop.f32.mrb[0].mxu0
  %3081 = vdwg.mxu0
  %v3082 = vsel %vm2229, %v2997, -inf
  %3083 = vmax.xlane.f32.xlu0 %v3082
  %v3084 = vpop.xlane.xlu0 %3083
  %v3085 = vsel %vm2229, %v3079, -inf
  %3086 = vmax.xlane.f32.xlu0 %v3085
  %v3087 = vpop.xlane.xlu0 %3086
  %v3088 = vsub.f32 %v2997, %v3084
  %v3089 = vsub.f32 %v3079, %v3087
  %v3090 = vmul.f32 %v3088, 1.442695
  %v3091 = vpow.pop %v3090
  %v3092 = vmul.f32 %v3089, 1.442695
  %v3093 = vpow.pop %v3092
  %v3094 = vsel %vm2229, %v3091, 0.0
  %3095 = vadd.xlane.f32.xlu0 %v3094
  %v3096 = vpop.xlane.xlu0 %3095
  %v3097 = vsel %vm2229, %v3093, 0.0
  %3098 = vadd.xlane.f32.xlu0 %v3097
  %v3099 = vpop.xlane.xlu0 %3098
  %v3100 = vrcp.pop %v3096
  %v3101 = vrcp.pop %v3099
  %v3102 = vmul.f32 %v3091, %v3100
  %v3103 = vmul.f32 %v3093, %v3101
  %3104 = vrot.lane.b32.xlu0 %v2051, 80
  %v3105 = vpop.permute.xlu0 %3104
  %3106 = vrot.lane.b32.xlu0 %v2056, 80
  %v3107 = vpop.permute.xlu0 %3106
  %v3111 = vsel %vm2229, %v3102, 0
  %3113 = vmatprep.subr.mxu0 0.0
  %3114 = vmatpush1.msra.mxu0 %v3105
  %3115 = vmatprep.subr.mxu0 0.0
  %3116 = vmatpush1.msra.mxu0 %v3107
  %3117 = vmatprep.subr.mxu0 0.0
  %3118 = vmatpush1.msra.mxu0 0.0
  %3119 = vmatprep.subr.mxu0 0.0
  %3120 = vmatpush1.msra.mxu0 0.0
  %3121 = vmatprep.subr.mxu0 0.0
  %3122 = vmatpush1.msra.mxu0 0.0
  %3123 = vmatprep.subr.mxu0 0.0
  %3124 = vmatpush1.msra.mxu0 0.0
  %3125 = vmatprep.subr.mxu0 0.0
  %3126 = vmatpush1.msra.mxu0 0.0
  %3127 = vmatprep.subr.mxu0 0.0
  %3128 = vmatpush1.msra.mxu0 0.0
  %3129 = vmatprep.subr.mxu0 0.0
  %3130 = vmatpush1.msra.mxu0 0.0
  %3131 = vmatprep.subr.mxu0 0.0
  %3132 = vmatpush1.msra.mxu0 0.0
  %3133 = vmatprep.subr.mxu0 0.0
  %3134 = vmatpush1.msra.mxu0 0.0
  %3135 = vmatprep.subr.mxu0 0.0
  %3136 = vmatpush1.msra.mxu0 0.0
  %3137 = vmatprep.subr.mxu0 0.0
  %3138 = vmatpush1.msra.mxu0 0.0
  %3139 = vmatprep.subr.mxu0 0.0
  %3140 = vmatpush1.msra.mxu0 0.0
  %3141 = vmatprep.subr.mxu0 0.0
  %3142 = vmatpush1.msra.mxu0 0.0
  %3143 = vmatprep.subr.mxu0 0.0
  %3144 = vmatpush1.msra.mxu0 0.0
  %3145 = vmatprep.subr.mxu0 0.0
  %3146 = vmatpush1.msra.mxu0 0.0
  %3147 = vmatprep.subr.mxu0 0.0
  %3148 = vmatpush1.msra.mxu0 0.0
  %3149 = vmatprep.subr.mxu0 0.0
  %3150 = vmatpush1.msra.mxu0 0.0
  %3151 = vmatprep.subr.mxu0 0.0
  %3152 = vmatpush1.msra.mxu0 0.0
  %3153 = vmatprep.subr.mxu0 0.0
  %3154 = vmatpush1.msra.mxu0 0.0
  %3155 = vmatprep.subr.mxu0 0.0
  %3156 = vmatpush1.msra.mxu0 0.0
  %3157 = vmatprep.subr.mxu0 0.0
  %3158 = vmatpush1.msra.mxu0 0.0
  %3159 = vmatprep.subr.mxu0 0.0
  %3160 = vmatpush1.msra.mxu0 0.0
  %3161 = vmatprep.subr.mxu0 0.0
  %3162 = vmatpush1.msra.mxu0 0.0
  %3163 = vmatprep.subr.mxu0 0.0
  %3164 = vmatpush1.msra.mxu0 0.0
  %3165 = vmatprep.subr.mxu0 0.0
  %3166 = vmatpush1.msra.mxu0 0.0
  %3167 = vmatprep.subr.mxu0 0.0
  %3168 = vmatpush1.msra.mxu0 0.0
  %3169 = vmatprep.subr.mxu0 0.0
  %3170 = vmatpush1.msra.mxu0 0.0
  %3171 = vmatprep.subr.mxu0 0.0
  %3172 = vmatpush1.msra.mxu0 0.0
  %3173 = vmatprep.subr.mxu0 0.0
  %3174 = vmatpush1.msra.mxu0 0.0
  %3175 = vmatprep.subr.mxu0 0.0
  %3176 = vmatpush1.msra.mxu0 0.0
  %3177 = vmatprep.mubr.f32.mxu0 0.0
  %3178 = vmatmul.mubr.f32.gmra.mrb[0].mxu0 %v3111
  %v3179 = vpop.f32.mrb[0].mxu0
  %v3180 = vadd.f32 0.0, %v3179
  %v3181 = vpop.f32.mrb[0].mxu0
  %3182 = vdwg.mxu0
  %3183 = vrot.lane.b32.xlu0 %v2061, 80
  %v3184 = vpop.permute.xlu0 %3183
  %3185 = vrot.lane.b32.xlu0 %v2066, 80
  %v3186 = vpop.permute.xlu0 %3185
  %v3190 = vsel %vm2229, %v3103, 0
  %3192 = vmatprep.subr.mxu0 0.0
  %3193 = vmatpush1.msra.mxu0 %v3184
  %3194 = vmatprep.subr.mxu0 0.0
  %3195 = vmatpush1.msra.mxu0 %v3186
  %3196 = vmatprep.subr.mxu0 0.0
  %3197 = vmatpush1.msra.mxu0 0.0
  %3198 = vmatprep.subr.mxu0 0.0
  %3199 = vmatpush1.msra.mxu0 0.0
  %3200 = vmatprep.subr.mxu0 0.0
  %3201 = vmatpush1.msra.mxu0 0.0
  %3202 = vmatprep.subr.mxu0 0.0
  %3203 = vmatpush1.msra.mxu0 0.0
  %3204 = vmatprep.subr.mxu0 0.0
  %3205 = vmatpush1.msra.mxu0 0.0
  %3206 = vmatprep.subr.mxu0 0.0
  %3207 = vmatpush1.msra.mxu0 0.0
  %3208 = vmatprep.subr.mxu0 0.0
  %3209 = vmatpush1.msra.mxu0 0.0
  %3210 = vmatprep.subr.mxu0 0.0
  %3211 = vmatpush1.msra.mxu0 0.0
  %3212 = vmatprep.subr.mxu0 0.0
  %3213 = vmatpush1.msra.mxu0 0.0
  %3214 = vmatprep.subr.mxu0 0.0
  %3215 = vmatpush1.msra.mxu0 0.0
  %3216 = vmatprep.subr.mxu0 0.0
  %3217 = vmatpush1.msra.mxu0 0.0
  %3218 = vmatprep.subr.mxu0 0.0
  %3219 = vmatpush1.msra.mxu0 0.0
  %3220 = vmatprep.subr.mxu0 0.0
  %3221 = vmatpush1.msra.mxu0 0.0
  %3222 = vmatprep.subr.mxu0 0.0
  %3223 = vmatpush1.msra.mxu0 0.0
  %3224 = vmatprep.subr.mxu0 0.0
  %3225 = vmatpush1.msra.mxu0 0.0
  %3226 = vmatprep.subr.mxu0 0.0
  %3227 = vmatpush1.msra.mxu0 0.0
  %3228 = vmatprep.subr.mxu0 0.0
  %3229 = vmatpush1.msra.mxu0 0.0
  %3230 = vmatprep.subr.mxu0 0.0
  %3231 = vmatpush1.msra.mxu0 0.0
  %3232 = vmatprep.subr.mxu0 0.0
  %3233 = vmatpush1.msra.mxu0 0.0
  %3234 = vmatprep.subr.mxu0 0.0
  %3235 = vmatpush1.msra.mxu0 0.0
  %3236 = vmatprep.subr.mxu0 0.0
  %3237 = vmatpush1.msra.mxu0 0.0
  %3238 = vmatprep.subr.mxu0 0.0
  %3239 = vmatpush1.msra.mxu0 0.0
  %3240 = vmatprep.subr.mxu0 0.0
  %3241 = vmatpush1.msra.mxu0 0.0
  %3242 = vmatprep.subr.mxu0 0.0
  %3243 = vmatpush1.msra.mxu0 0.0
  %3244 = vmatprep.subr.mxu0 0.0
  %3245 = vmatpush1.msra.mxu0 0.0
  %3246 = vmatprep.subr.mxu0 0.0
  %3247 = vmatpush1.msra.mxu0 0.0
  %3248 = vmatprep.subr.mxu0 0.0
  %3249 = vmatpush1.msra.mxu0 0.0
  %3250 = vmatprep.subr.mxu0 0.0
  %3251 = vmatpush1.msra.mxu0 0.0
  %3252 = vmatprep.subr.mxu0 0.0
  %3253 = vmatpush1.msra.mxu0 0.0
  %3254 = vmatprep.subr.mxu0 0.0
  %3255 = vmatpush1.msra.mxu0 0.0
  %3256 = vmatprep.mubr.f32.mxu0 0.0
  %3257 = vmatmul.mubr.f32.gmra.mrb[0].mxu0 %v3190
  %v3258 = vpop.f32.mrb[0].mxu0
  %v3259 = vadd.f32 0.0, %v3258
  %v3260 = vpop.f32.mrb[0].mxu0
  %3261 = vdwg.mxu0
  %v3262 = vld [vmem:[%s12 + $0x10] sm:$0xff]
  %v3264 = vsel %vm163, %v3180, 0
  %v3267 = vsel %vm163, %v3259, 0
  %3269 = vmatprep.subr.mxu0 0.0
  %3270 = vmatpush1.msra.mxu0 %v3262
  %3271 = vmatprep.subr.mxu0 0.0
  %3272 = vmatpush1.msra.mxu0 0.0
  %3273 = vmatprep.subr.mxu0 0.0
  %3274 = vmatpush1.msra.mxu0 0.0
  %3275 = vmatprep.subr.mxu0 0.0
  %3276 = vmatpush1.msra.mxu0 0.0
  %3277 = vmatprep.subr.mxu0 0.0
  %3278 = vmatpush1.msra.mxu0 0.0
  %3279 = vmatprep.subr.mxu0 0.0
  %3280 = vmatpush1.msra.mxu0 0.0
  %3281 = vmatprep.subr.mxu0 0.0
  %3282 = vmatpush1.msra.mxu0 0.0
  %3283 = vmatprep.subr.mxu0 0.0
  %3284 = vmatpush1.msra.mxu0 0.0
  %3285 = vmatprep.subr.mxu0 0.0
  %3286 = vmatpush1.msra.mxu0 0.0
  %3287 = vmatprep.subr.mxu0 0.0
  %3288 = vmatpush1.msra.mxu0 0.0
  %3289 = vmatprep.subr.mxu0 0.0
  %3290 = vmatpush1.msra.mxu0 0.0
  %3291 = vmatprep.subr.mxu0 0.0
  %3292 = vmatpush1.msra.mxu0 0.0
  %3293 = vmatprep.subr.mxu0 0.0
  %3294 = vmatpush1.msra.mxu0 0.0
  %3295 = vmatprep.subr.mxu0 0.0
  %3296 = vmatpush1.msra.mxu0 0.0
  %3297 = vmatprep.subr.mxu0 0.0
  %3298 = vmatpush1.msra.mxu0 0.0
  %3299 = vmatprep.subr.mxu0 0.0
  %3300 = vmatpush1.msra.mxu0 0.0
  %3301 = vmatprep.subr.mxu0 0.0
  %3302 = vmatpush1.msra.mxu0 0.0
  %3303 = vmatprep.subr.mxu0 0.0
  %3304 = vmatpush1.msra.mxu0 0.0
  %3305 = vmatprep.subr.mxu0 0.0
  %3306 = vmatpush1.msra.mxu0 0.0
  %3307 = vmatprep.subr.mxu0 0.0
  %3308 = vmatpush1.msra.mxu0 0.0
  %3309 = vmatprep.subr.mxu0 0.0
  %3310 = vmatpush1.msra.mxu0 0.0
  %3311 = vmatprep.subr.mxu0 0.0
  %3312 = vmatpush1.msra.mxu0 0.0
  %3313 = vmatprep.subr.mxu0 0.0
  %3314 = vmatpush1.msra.mxu0 0.0
  %3315 = vmatprep.subr.mxu0 0.0
  %3316 = vmatpush1.msra.mxu0 0.0
  %3317 = vmatprep.subr.mxu0 0.0
  %3318 = vmatpush1.msra.mxu0 0.0
  %3319 = vmatprep.subr.mxu0 0.0
  %3320 = vmatpush1.msra.mxu0 0.0
  %3321 = vmatprep.subr.mxu0 0.0
  %3322 = vmatpush1.msra.mxu0 0.0
  %3323 = vmatprep.subr.mxu0 0.0
  %3324 = vmatpush1.msra.mxu0 0.0
  %3325 = vmatprep.subr.mxu0 0.0
  %3326 = vmatpush1.msra.mxu0 0.0
  %3327 = vmatprep.subr.mxu0 0.0
  %3328 = vmatpush1.msra.mxu0 0.0
  %3329 = vmatprep.subr.mxu0 0.0
  %3330 = vmatpush1.msra.mxu0 0.0
  %3331 = vmatprep.subr.mxu0 0.0
  %3332 = vmatpush1.msra.mxu0 0.0
  %3333 = vmatprep.mubr.f32.mxu0 0.0
  %3334 = vmatmul.mubr.f32.gmra.mrb[0].mxu0 %v3264
  %v3335 = vpop.f32.mrb[0].mxu0
  %v3336 = vadd.f32 0.0, %v3335
  %v3337 = vpop.f32.mrb[0].mxu0
  %3338 = vmatprep.mubr.f32.mxu0 0.0
  %3339 = vmatmul.mubr.f32.gmra.mrb[0].mxu0 %v3267
  %v3340 = vpop.f32.mrb[0].mxu0
  %v3341 = vadd.f32 0.0, %v3340
  %v3342 = vpop.f32.mrb[0].mxu0
  %3343 = vdwg.mxu0
  %v3344 = vadd.f32 %v2910, %v3336
  %v3345 = vadd.f32 %v2915, %v3341
  %3346 = vrot.lane.b32.xlu0 %v2069, 104
  %v3347 = vpop.permute.xlu0 %3346
  %3348 = vrot.lane.b32.xlu0 %v2051, 104
  %v3349 = vpop.permute.xlu0 %3348
  %3350 = vrot.lane.b32.xlu0 %v2056, 104
  %v3351 = vpop.permute.xlu0 %3350
  %v3352 = vsel %vm163, %v3347, 0
  %v3354 = vsel %vm163, %v3349, 0
  %v3356 = vsel %vm163, %v3351, 0
  %3358 = vmatprep.subr.mxu0 0.0
  %3359 = vmatpush1.xpose.msra.mxu0 %v3354
  %3360 = vmatprep.subr.mxu0 0.0
  %3361 = vmatpush1.xpose.msra.mxu0 %v3356
  %3362 = vmatprep.subr.mxu0 0.0
  %3363 = vmatpush1.xpose.msra.mxu0 0.0
  %3364 = vmatprep.subr.mxu0 0.0
  %3365 = vmatpush1.xpose.msra.mxu0 0.0
  %3366 = vmatprep.subr.mxu0 0.0
  %3367 = vmatpush1.xpose.msra.mxu0 0.0
  %3368 = vmatprep.subr.mxu0 0.0
  %3369 = vmatpush1.xpose.msra.mxu0 0.0
  %3370 = vmatprep.subr.mxu0 0.0
  %3371 = vmatpush1.xpose.msra.mxu0 0.0
  %3372 = vmatprep.subr.mxu0 0.0
  %3373 = vmatpush1.xpose.msra.mxu0 0.0
  %3374 = vmatprep.subr.mxu0 0.0
  %3375 = vmatpush1.xpose.msra.mxu0 0.0
  %3376 = vmatprep.subr.mxu0 0.0
  %3377 = vmatpush1.xpose.msra.mxu0 0.0
  %3378 = vmatprep.subr.mxu0 0.0
  %3379 = vmatpush1.xpose.msra.mxu0 0.0
  %3380 = vmatprep.subr.mxu0 0.0
  %3381 = vmatpush1.xpose.msra.mxu0 0.0
  %3382 = vmatprep.subr.mxu0 0.0
  %3383 = vmatpush1.xpose.msra.mxu0 0.0
  %3384 = vmatprep.subr.mxu0 0.0
  %3385 = vmatpush1.xpose.msra.mxu0 0.0
  %3386 = vmatprep.subr.mxu0 0.0
  %3387 = vmatpush1.xpose.msra.mxu0 0.0
  %3388 = vmatprep.subr.mxu0 0.0
  %3389 = vmatpush1.xpose.msra.mxu0 0.0
  %3390 = vmatprep.subr.mxu0 0.0
  %3391 = vmatpush1.xpose.msra.mxu0 0.0
  %3392 = vmatprep.subr.mxu0 0.0
  %3393 = vmatpush1.xpose.msra.mxu0 0.0
  %3394 = vmatprep.subr.mxu0 0.0
  %3395 = vmatpush1.xpose.msra.mxu0 0.0
  %3396 = vmatprep.subr.mxu0 0.0
  %3397 = vmatpush1.xpose.msra.mxu0 0.0
  %3398 = vmatprep.subr.mxu0 0.0
  %3399 = vmatpush1.xpose.msra.mxu0 0.0
  %3400 = vmatprep.subr.mxu0 0.0
  %3401 = vmatpush1.xpose.msra.mxu0 0.0
  %3402 = vmatprep.subr.mxu0 0.0
  %3403 = vmatpush1.xpose.msra.mxu0 0.0
  %3404 = vmatprep.subr.mxu0 0.0
  %3405 = vmatpush1.xpose.msra.mxu0 0.0
  %3406 = vmatprep.subr.mxu0 0.0
  %3407 = vmatpush1.xpose.msra.mxu0 0.0
  %3408 = vmatprep.subr.mxu0 0.0
  %3409 = vmatpush1.xpose.msra.mxu0 0.0
  %3410 = vmatprep.subr.mxu0 0.0
  %3411 = vmatpush1.xpose.msra.mxu0 0.0
  %3412 = vmatprep.subr.mxu0 0.0
  %3413 = vmatpush1.xpose.msra.mxu0 0.0
  %3414 = vmatprep.subr.mxu0 0.0
  %3415 = vmatpush1.xpose.msra.mxu0 0.0
  %3416 = vmatprep.subr.mxu0 0.0
  %3417 = vmatpush1.xpose.msra.mxu0 0.0
  %3418 = vmatprep.subr.mxu0 0.0
  %3419 = vmatpush1.xpose.msra.mxu0 0.0
  %3420 = vmatprep.subr.mxu0 0.0
  %3421 = vmatpush1.xpose.msra.mxu0 0.0
  %3422 = vmatprep.mubr.f32.mxu0 0.0
  %3423 = vmatmul.mubr.f32.gmra.mrb[0].mxu0 %v3352
  %v3424 = vpop.f32.mrb[0].mxu0
  %v3425 = vadd.f32 0.0, %v3424
  %v3426 = vpop.f32.mrb[0].mxu0
  %3427 = vdwg.mxu0
  %3428 = vrot.lane.b32.xlu0 %v2070, 104
  %v3429 = vpop.permute.xlu0 %3428
  %3430 = vrot.lane.b32.xlu0 %v2061, 104
  %v3431 = vpop.permute.xlu0 %3430
  %3432 = vrot.lane.b32.xlu0 %v2066, 104
  %v3433 = vpop.permute.xlu0 %3432
  %v3434 = vsel %vm163, %v3429, 0
  %v3436 = vsel %vm163, %v3431, 0
  %v3438 = vsel %vm163, %v3433, 0
  %3440 = vmatprep.subr.mxu0 0.0
  %3441 = vmatpush1.xpose.msra.mxu0 %v3436
  %3442 = vmatprep.subr.mxu0 0.0
  %3443 = vmatpush1.xpose.msra.mxu0 %v3438
  %3444 = vmatprep.subr.mxu0 0.0
  %3445 = vmatpush1.xpose.msra.mxu0 0.0
  %3446 = vmatprep.subr.mxu0 0.0
  %3447 = vmatpush1.xpose.msra.mxu0 0.0
  %3448 = vmatprep.subr.mxu0 0.0
  %3449 = vmatpush1.xpose.msra.mxu0 0.0
  %3450 = vmatprep.subr.mxu0 0.0
  %3451 = vmatpush1.xpose.msra.mxu0 0.0
  %3452 = vmatprep.subr.mxu0 0.0
  %3453 = vmatpush1.xpose.msra.mxu0 0.0
  %3454 = vmatprep.subr.mxu0 0.0
  %3455 = vmatpush1.xpose.msra.mxu0 0.0
  %3456 = vmatprep.subr.mxu0 0.0
  %3457 = vmatpush1.xpose.msra.mxu0 0.0
  %3458 = vmatprep.subr.mxu0 0.0
  %3459 = vmatpush1.xpose.msra.mxu0 0.0
  %3460 = vmatprep.subr.mxu0 0.0
  %3461 = vmatpush1.xpose.msra.mxu0 0.0
  %3462 = vmatprep.subr.mxu0 0.0
  %3463 = vmatpush1.xpose.msra.mxu0 0.0
  %3464 = vmatprep.subr.mxu0 0.0
  %3465 = vmatpush1.xpose.msra.mxu0 0.0
  %3466 = vmatprep.subr.mxu0 0.0
  %3467 = vmatpush1.xpose.msra.mxu0 0.0
  %3468 = vmatprep.subr.mxu0 0.0
  %3469 = vmatpush1.xpose.msra.mxu0 0.0
  %3470 = vmatprep.subr.mxu0 0.0
  %3471 = vmatpush1.xpose.msra.mxu0 0.0
  %3472 = vmatprep.subr.mxu0 0.0
  %3473 = vmatpush1.xpose.msra.mxu0 0.0
  %3474 = vmatprep.subr.mxu0 0.0
  %3475 = vmatpush1.xpose.msra.mxu0 0.0
  %3476 = vmatprep.subr.mxu0 0.0
  %3477 = vmatpush1.xpose.msra.mxu0 0.0
  %3478 = vmatprep.subr.mxu0 0.0
  %3479 = vmatpush1.xpose.msra.mxu0 0.0
  %3480 = vmatprep.subr.mxu0 0.0
  %3481 = vmatpush1.xpose.msra.mxu0 0.0
  %3482 = vmatprep.subr.mxu0 0.0
  %3483 = vmatpush1.xpose.msra.mxu0 0.0
  %3484 = vmatprep.subr.mxu0 0.0
  %3485 = vmatpush1.xpose.msra.mxu0 0.0
  %3486 = vmatprep.subr.mxu0 0.0
  %3487 = vmatpush1.xpose.msra.mxu0 0.0
  %3488 = vmatprep.subr.mxu0 0.0
  %3489 = vmatpush1.xpose.msra.mxu0 0.0
  %3490 = vmatprep.subr.mxu0 0.0
  %3491 = vmatpush1.xpose.msra.mxu0 0.0
  %3492 = vmatprep.subr.mxu0 0.0
  %3493 = vmatpush1.xpose.msra.mxu0 0.0
  %3494 = vmatprep.subr.mxu0 0.0
  %3495 = vmatpush1.xpose.msra.mxu0 0.0
  %3496 = vmatprep.subr.mxu0 0.0
  %3497 = vmatpush1.xpose.msra.mxu0 0.0
  %3498 = vmatprep.subr.mxu0 0.0
  %3499 = vmatpush1.xpose.msra.mxu0 0.0
  %3500 = vmatprep.subr.mxu0 0.0
  %3501 = vmatpush1.xpose.msra.mxu0 0.0
  %3502 = vmatprep.subr.mxu0 0.0
  %3503 = vmatpush1.xpose.msra.mxu0 0.0
  %3504 = vmatprep.mubr.f32.mxu0 0.0
  %3505 = vmatmul.mubr.f32.gmra.mrb[0].mxu0 %v3434
  %v3506 = vpop.f32.mrb[0].mxu0
  %v3507 = vadd.f32 0.0, %v3506
  %v3508 = vpop.f32.mrb[0].mxu0
  %3509 = vdwg.mxu0
  %v3510 = vsel %vm2229, %v3425, -inf
  %3511 = vmax.xlane.f32.xlu0 %v3510
  %v3512 = vpop.xlane.xlu0 %3511
  %v3513 = vsel %vm2229, %v3507, -inf
  %3514 = vmax.xlane.f32.xlu0 %v3513
  %v3515 = vpop.xlane.xlu0 %3514
  %v3516 = vsub.f32 %v3425, %v3512
  %v3517 = vsub.f32 %v3507, %v3515
  %v3518 = vmul.f32 %v3516, 1.442695
  %v3519 = vpow.pop %v3518
  %v3520 = vmul.f32 %v3517, 1.442695
  %v3521 = vpow.pop %v3520
  %v3522 = vsel %vm2229, %v3519, 0.0
  %3523 = vadd.xlane.f32.xlu0 %v3522
  %v3524 = vpop.xlane.xlu0 %3523
  %v3525 = vsel %vm2229, %v3521, 0.0
  %3526 = vadd.xlane.f32.xlu0 %v3525
  %v3527 = vpop.xlane.xlu0 %3526
  %v3528 = vrcp.pop %v3524
  %v3529 = vrcp.pop %v3527
  %v3530 = vmul.f32 %v3519, %v3528
  %v3531 = vmul.f32 %v3521, %v3529
  %3532 = vrot.lane.b32.xlu0 %v2051, 72
  %v3533 = vpop.permute.xlu0 %3532
  %3534 = vrot.lane.b32.xlu0 %v2056, 72
  %v3535 = vpop.permute.xlu0 %3534
  %v3539 = vsel %vm2229, %v3530, 0
  %3541 = vmatprep.subr.mxu0 0.0
  %3542 = vmatpush1.msra.mxu0 %v3533
  %3543 = vmatprep.subr.mxu0 0.0
  %3544 = vmatpush1.msra.mxu0 %v3535
  %3545 = vmatprep.subr.mxu0 0.0
  %3546 = vmatpush1.msra.mxu0 0.0
  %3547 = vmatprep.subr.mxu0 0.0
  %3548 = vmatpush1.msra.mxu0 0.0
  %3549 = vmatprep.subr.mxu0 0.0
  %3550 = vmatpush1.msra.mxu0 0.0
  %3551 = vmatprep.subr.mxu0 0.0
  %3552 = vmatpush1.msra.mxu0 0.0
  %3553 = vmatprep.subr.mxu0 0.0
  %3554 = vmatpush1.msra.mxu0 0.0
  %3555 = vmatprep.subr.mxu0 0.0
  %3556 = vmatpush1.msra.mxu0 0.0
  %3557 = vmatprep.subr.mxu0 0.0
  %3558 = vmatpush1.msra.mxu0 0.0
  %3559 = vmatprep.subr.mxu0 0.0
  %3560 = vmatpush1.msra.mxu0 0.0
  %3561 = vmatprep.subr.mxu0 0.0
  %3562 = vmatpush1.msra.mxu0 0.0
  %3563 = vmatprep.subr.mxu0 0.0
  %3564 = vmatpush1.msra.mxu0 0.0
  %3565 = vmatprep.subr.mxu0 0.0
  %3566 = vmatpush1.msra.mxu0 0.0
  %3567 = vmatprep.subr.mxu0 0.0
  %3568 = vmatpush1.msra.mxu0 0.0
  %3569 = vmatprep.subr.mxu0 0.0
  %3570 = vmatpush1.msra.mxu0 0.0
  %3571 = vmatprep.subr.mxu0 0.0
  %3572 = vmatpush1.msra.mxu0 0.0
  %3573 = vmatprep.subr.mxu0 0.0
  %3574 = vmatpush1.msra.mxu0 0.0
  %3575 = vmatprep.subr.mxu0 0.0
  %3576 = vmatpush1.msra.mxu0 0.0
  %3577 = vmatprep.subr.mxu0 0.0
  %3578 = vmatpush1.msra.mxu0 0.0
  %3579 = vmatprep.subr.mxu0 0.0
  %3580 = vmatpush1.msra.mxu0 0.0
  %3581 = vmatprep.subr.mxu0 0.0
  %3582 = vmatpush1.msra.mxu0 0.0
  %3583 = vmatprep.subr.mxu0 0.0
  %3584 = vmatpush1.msra.mxu0 0.0
  %3585 = vmatprep.subr.mxu0 0.0
  %3586 = vmatpush1.msra.mxu0 0.0
  %3587 = vmatprep.subr.mxu0 0.0
  %3588 = vmatpush1.msra.mxu0 0.0
  %3589 = vmatprep.subr.mxu0 0.0
  %3590 = vmatpush1.msra.mxu0 0.0
  %3591 = vmatprep.subr.mxu0 0.0
  %3592 = vmatpush1.msra.mxu0 0.0
  %3593 = vmatprep.subr.mxu0 0.0
  %3594 = vmatpush1.msra.mxu0 0.0
  %3595 = vmatprep.subr.mxu0 0.0
  %3596 = vmatpush1.msra.mxu0 0.0
  %3597 = vmatprep.subr.mxu0 0.0
  %3598 = vmatpush1.msra.mxu0 0.0
  %3599 = vmatprep.subr.mxu0 0.0
  %3600 = vmatpush1.msra.mxu0 0.0
  %3601 = vmatprep.subr.mxu0 0.0
  %3602 = vmatpush1.msra.mxu0 0.0
  %3603 = vmatprep.subr.mxu0 0.0
  %3604 = vmatpush1.msra.mxu0 0.0
  %3605 = vmatprep.mubr.f32.mxu0 0.0
  %3606 = vmatmul.mubr.f32.gmra.mrb[0].mxu0 %v3539
  %v3607 = vpop.f32.mrb[0].mxu0
  %v3608 = vadd.f32 0.0, %v3607
  %v3609 = vpop.f32.mrb[0].mxu0
  %3610 = vdwg.mxu0
  %3611 = vrot.lane.b32.xlu0 %v2061, 72
  %v3612 = vpop.permute.xlu0 %3611
  %3613 = vrot.lane.b32.xlu0 %v2066, 72
  %v3614 = vpop.permute.xlu0 %3613
  %v3618 = vsel %vm2229, %v3531, 0
  %3620 = vmatprep.subr.mxu0 0.0
  %3621 = vmatpush1.msra.mxu0 %v3612
  %3622 = vmatprep.subr.mxu0 0.0
  %3623 = vmatpush1.msra.mxu0 %v3614
  %3624 = vmatprep.subr.mxu0 0.0
  %3625 = vmatpush1.msra.mxu0 0.0
  %3626 = vmatprep.subr.mxu0 0.0
  %3627 = vmatpush1.msra.mxu0 0.0
  %3628 = vmatprep.subr.mxu0 0.0
  %3629 = vmatpush1.msra.mxu0 0.0
  %3630 = vmatprep.subr.mxu0 0.0
  %3631 = vmatpush1.msra.mxu0 0.0
  %3632 = vmatprep.subr.mxu0 0.0
  %3633 = vmatpush1.msra.mxu0 0.0
  %3634 = vmatprep.subr.mxu0 0.0
  %3635 = vmatpush1.msra.mxu0 0.0
  %3636 = vmatprep.subr.mxu0 0.0
  %3637 = vmatpush1.msra.mxu0 0.0
  %3638 = vmatprep.subr.mxu0 0.0
  %3639 = vmatpush1.msra.mxu0 0.0
  %3640 = vmatprep.subr.mxu0 0.0
  %3641 = vmatpush1.msra.mxu0 0.0
  %3642 = vmatprep.subr.mxu0 0.0
  %3643 = vmatpush1.msra.mxu0 0.0
  %3644 = vmatprep.subr.mxu0 0.0
  %3645 = vmatpush1.msra.mxu0 0.0
  %3646 = vmatprep.subr.mxu0 0.0
  %3647 = vmatpush1.msra.mxu0 0.0
  %3648 = vmatprep.subr.mxu0 0.0
  %3649 = vmatpush1.msra.mxu0 0.0
  %3650 = vmatprep.subr.mxu0 0.0
  %3651 = vmatpush1.msra.mxu0 0.0
  %3652 = vmatprep.subr.mxu0 0.0
  %3653 = vmatpush1.msra.mxu0 0.0
  %3654 = vmatprep.subr.mxu0 0.0
  %3655 = vmatpush1.msra.mxu0 0.0
  %3656 = vmatprep.subr.mxu0 0.0
  %3657 = vmatpush1.msra.mxu0 0.0
  %3658 = vmatprep.subr.mxu0 0.0
  %3659 = vmatpush1.msra.mxu0 0.0
  %3660 = vmatprep.subr.mxu0 0.0
  %3661 = vmatpush1.msra.mxu0 0.0
  %3662 = vmatprep.subr.mxu0 0.0
  %3663 = vmatpush1.msra.mxu0 0.0
  %3664 = vmatprep.subr.mxu0 0.0
  %3665 = vmatpush1.msra.mxu0 0.0
  %3666 = vmatprep.subr.mxu0 0.0
  %3667 = vmatpush1.msra.mxu0 0.0
  %3668 = vmatprep.subr.mxu0 0.0
  %3669 = vmatpush1.msra.mxu0 0.0
  %3670 = vmatprep.subr.mxu0 0.0
  %3671 = vmatpush1.msra.mxu0 0.0
  %3672 = vmatprep.subr.mxu0 0.0
  %3673 = vmatpush1.msra.mxu0 0.0
  %3674 = vmatprep.subr.mxu0 0.0
  %3675 = vmatpush1.msra.mxu0 0.0
  %3676 = vmatprep.subr.mxu0 0.0
  %3677 = vmatpush1.msra.mxu0 0.0
  %3678 = vmatprep.subr.mxu0 0.0
  %3679 = vmatpush1.msra.mxu0 0.0
  %3680 = vmatprep.subr.mxu0 0.0
  %3681 = vmatpush1.msra.mxu0 0.0
  %3682 = vmatprep.subr.mxu0 0.0
  %3683 = vmatpush1.msra.mxu0 0.0
  %3684 = vmatprep.mubr.f32.mxu0 0.0
  %3685 = vmatmul.mubr.f32.gmra.mrb[0].mxu0 %v3618
  %v3686 = vpop.f32.mrb[0].mxu0
  %v3687 = vadd.f32 0.0, %v3686
  %v3688 = vpop.f32.mrb[0].mxu0
  %3689 = vdwg.mxu0
  %v3690 = vld [vmem:[%s12 + $0x18] sm:$0xff]
  %v3692 = vsel %vm163, %v3608, 0
  %v3695 = vsel %vm163, %v3687, 0
  %3697 = vmatprep.subr.mxu0 0.0
  %3698 = vmatpush1.msra.mxu0 %v3690
  %3699 = vmatprep.subr.mxu0 0.0
  %3700 = vmatpush1.msra.mxu0 0.0
  %3701 = vmatprep.subr.mxu0 0.0
  %3702 = vmatpush1.msra.mxu0 0.0
  %3703 = vmatprep.subr.mxu0 0.0
  %3704 = vmatpush1.msra.mxu0 0.0
  %3705 = vmatprep.subr.mxu0 0.0
  %3706 = vmatpush1.msra.mxu0 0.0
  %3707 = vmatprep.subr.mxu0 0.0
  %3708 = vmatpush1.msra.mxu0 0.0
  %3709 = vmatprep.subr.mxu0 0.0
  %3710 = vmatpush1.msra.mxu0 0.0
  %3711 = vmatprep.subr.mxu0 0.0
  %3712 = vmatpush1.msra.mxu0 0.0
  %3713 = vmatprep.subr.mxu0 0.0
  %3714 = vmatpush1.msra.mxu0 0.0
  %3715 = vmatprep.subr.mxu0 0.0
  %3716 = vmatpush1.msra.mxu0 0.0
  %3717 = vmatprep.subr.mxu0 0.0
  %3718 = vmatpush1.msra.mxu0 0.0
  %3719 = vmatprep.subr.mxu0 0.0
  %3720 = vmatpush1.msra.mxu0 0.0
  %3721 = vmatprep.subr.mxu0 0.0
  %3722 = vmatpush1.msra.mxu0 0.0
  %3723 = vmatprep.subr.mxu0 0.0
  %3724 = vmatpush1.msra.mxu0 0.0
  %3725 = vmatprep.subr.mxu0 0.0
  %3726 = vmatpush1.msra.mxu0 0.0
  %3727 = vmatprep.subr.mxu0 0.0
  %3728 = vmatpush1.msra.mxu0 0.0
  %3729 = vmatprep.subr.mxu0 0.0
  %3730 = vmatpush1.msra.mxu0 0.0
  %3731 = vmatprep.subr.mxu0 0.0
  %3732 = vmatpush1.msra.mxu0 0.0
  %3733 = vmatprep.subr.mxu0 0.0
  %3734 = vmatpush1.msra.mxu0 0.0
  %3735 = vmatprep.subr.mxu0 0.0
  %3736 = vmatpush1.msra.mxu0 0.0
  %3737 = vmatprep.subr.mxu0 0.0
  %3738 = vmatpush1.msra.mxu0 0.0
  %3739 = vmatprep.subr.mxu0 0.0
  %3740 = vmatpush1.msra.mxu0 0.0
  %3741 = vmatprep.subr.mxu0 0.0
  %3742 = vmatpush1.msra.mxu0 0.0
  %3743 = vmatprep.subr.mxu0 0.0
  %3744 = vmatpush1.msra.mxu0 0.0
  %3745 = vmatprep.subr.mxu0 0.0
  %3746 = vmatpush1.msra.mxu0 0.0
  %3747 = vmatprep.subr.mxu0 0.0
  %3748 = vmatpush1.msra.mxu0 0.0
  %3749 = vmatprep.subr.mxu0 0.0
  %3750 = vmatpush1.msra.mxu0 0.0
  %3751 = vmatprep.subr.mxu0 0.0
  %3752 = vmatpush1.msra.mxu0 0.0
  %3753 = vmatprep.subr.mxu0 0.0
  %3754 = vmatpush1.msra.mxu0 0.0
  %3755 = vmatprep.subr.mxu0 0.0
  %3756 = vmatpush1.msra.mxu0 0.0
  %3757 = vmatprep.subr.mxu0 0.0
  %3758 = vmatpush1.msra.mxu0 0.0
  %3759 = vmatprep.subr.mxu0 0.0
  %3760 = vmatpush1.msra.mxu0 0.0
  %3761 = vmatprep.mubr.f32.mxu0 0.0
  %3762 = vmatmul.mubr.f32.gmra.mrb[0].mxu0 %v3692
  %v3763 = vpop.f32.mrb[0].mxu0
  %v3764 = vadd.f32 0.0, %v3763
  %v3765 = vpop.f32.mrb[0].mxu0
  %3766 = vmatprep.mubr.f32.mxu0 0.0
  %3767 = vmatmul.mubr.f32.gmra.mrb[0].mxu0 %v3695
  %v3768 = vpop.f32.mrb[0].mxu0
  %v3769 = vadd.f32 0.0, %v3768
  %v3770 = vpop.f32.mrb[0].mxu0
  %3771 = vdwg.mxu0
  %v3772 = vadd.f32 %v3344, %v3764
  %v3773 = vadd.f32 %v3345, %v3769
  %v3774 = vld [vmem:[%s13] sm:$0x1]
  %v3776 = vlaneseq
  %v3777 = vshrl.u32 %v3776, 7
  %v3778 = vsub.s32 0, %v3777
  %v3779 = vrot.slane %v3774, %v3778
  %v3781 = vadd.f32 %v3772, %v3779
  %v3782 = vadd.f32 %v3773, %v3779
  %v3783 = vadd.f32 %v1867, %v3781
  %v3784 = vadd.f32 %v1868, %v3782
  %v3785 = vsel %vm76, %v3783, 0.0
  %3786 = vadd.xlane.f32.xlu0 %v3785
  %v3787 = vpop.xlane.xlu0 %3786
  %v3788 = vsel %vm76, %v3784, 0.0
  %3789 = vadd.xlane.f32.xlu0 %v3788
  %v3790 = vpop.xlane.xlu0 %3789
  %v3791 = vmul.f32 %v3787, %v1830
  %v3792 = vmul.f32 %v3790, %v1830
  %v3793 = vsub.f32 %v3783, %v3791
  %v3794 = vsub.f32 %v3784, %v3792
  %v3795 = vmul.f32 %v3793, %v3793
  %v3796 = vmul.f32 %v3794, %v3794
  %v3797 = vsel %vm76, %v3795, 0.0
  %3798 = vadd.xlane.f32.xlu0 %v3797
  %v3799 = vpop.xlane.xlu0 %3798
  %v3800 = vsel %vm76, %v3796, 0.0
  %3801 = vadd.xlane.f32.xlu0 %v3800
  %v3802 = vpop.xlane.xlu0 %3801
  %v3803 = vmul.f32 %v3799, %v1830
  %v3804 = vmul.f32 %v3802, %v1830
  %v3805 = vadd.f32 %v3803, 1e-05
  %v3806 = vadd.f32 %v3804, 1e-05
  %v3807 = vrsqrt.pop %v3805
  %v3808 = vrsqrt.pop %v3806
  %v3809 = vmul.f32 %v3793, %v3807
  %v3810 = vmul.f32 %v3794, %v3808
  %v3811 = vld [vmem:[%s14] sm:$0x1]
  %v3813 = vlaneseq
  %v3814 = vshrl.u32 %v3813, 7
  %v3815 = vsub.s32 0, %v3814
  %v3816 = vrot.slane %v3811, %v3815
  %v3818 = vmul.f32 %v3809, %v3816
  %v3819 = vmul.f32 %v3810, %v3816
  %v3820 = vld [vmem:[%s15] sm:$0x1]
  %v3822 = vlaneseq
  %v3823 = vshrl.u32 %v3822, 7
  %v3824 = vsub.s32 0, %v3823
  %v3825 = vrot.slane %v3820, %v3824
  %v3827 = vadd.f32 %v3818, %v3825
  %v3828 = vadd.f32 %v3819, %v3825
  %v3829 = vld [vmem:[%s16] sm:$0xff]
  %v3830 = vld [vmem:[%s16 + $0x8] sm:$0xff]
  %v3831 = vld [vmem:[%s16 + $0x10] sm:$0xff]
  %v3832 = vld [vmem:[%s16 + $0x18] sm:$0xff]
  %v3833 = vld [vmem:[%s17] sm:$0x1]
  %v3835 = vlaneseq
  %v3836 = vshrl.u32 %v3835, 7
  %v3837 = vsub.s32 0, %v3836
  %v3838 = vrot.slane %v3833, %v3837
  %v3841 = vsel %vm76, %v3827, 0
  %v3844 = vsel %vm76, %v3828, 0
  %3846 = vmatprep.subr.mxu0 0.0
  %3847 = vmatpush1.msra.mxu0 %v3829
  %3848 = vmatprep.subr.mxu0 0.0
  %3849 = vmatpush1.msra.mxu0 %v3830
  %3850 = vmatprep.subr.mxu0 0.0
  %3851 = vmatpush1.msra.mxu0 %v3831
  %3852 = vmatprep.subr.mxu0 0.0
  %3853 = vmatpush1.msra.mxu0 %v3832
  %3854 = vmatprep.subr.mxu0 0.0
  %3855 = vmatpush1.msra.mxu0 0.0
  %3856 = vmatprep.subr.mxu0 0.0
  %3857 = vmatpush1.msra.mxu0 0.0
  %3858 = vmatprep.subr.mxu0 0.0
  %3859 = vmatpush1.msra.mxu0 0.0
  %3860 = vmatprep.subr.mxu0 0.0
  %3861 = vmatpush1.msra.mxu0 0.0
  %3862 = vmatprep.subr.mxu0 0.0
  %3863 = vmatpush1.msra.mxu0 0.0
  %3864 = vmatprep.subr.mxu0 0.0
  %3865 = vmatpush1.msra.mxu0 0.0
  %3866 = vmatprep.subr.mxu0 0.0
  %3867 = vmatpush1.msra.mxu0 0.0
  %3868 = vmatprep.subr.mxu0 0.0
  %3869 = vmatpush1.msra.mxu0 0.0
  %3870 = vmatprep.subr.mxu0 0.0
  %3871 = vmatpush1.msra.mxu0 0.0
  %3872 = vmatprep.subr.mxu0 0.0
  %3873 = vmatpush1.msra.mxu0 0.0
  %3874 = vmatprep.subr.mxu0 0.0
  %3875 = vmatpush1.msra.mxu0 0.0
  %3876 = vmatprep.subr.mxu0 0.0
  %3877 = vmatpush1.msra.mxu0 0.0
  %3878 = vmatprep.subr.mxu0 0.0
  %3879 = vmatpush1.msra.mxu0 0.0
  %3880 = vmatprep.subr.mxu0 0.0
  %3881 = vmatpush1.msra.mxu0 0.0
  %3882 = vmatprep.subr.mxu0 0.0
  %3883 = vmatpush1.msra.mxu0 0.0
  %3884 = vmatprep.subr.mxu0 0.0
  %3885 = vmatpush1.msra.mxu0 0.0
  %3886 = vmatprep.subr.mxu0 0.0
  %3887 = vmatpush1.msra.mxu0 0.0
  %3888 = vmatprep.subr.mxu0 0.0
  %3889 = vmatpush1.msra.mxu0 0.0
  %3890 = vmatprep.subr.mxu0 0.0
  %3891 = vmatpush1.msra.mxu0 0.0
  %3892 = vmatprep.subr.mxu0 0.0
  %3893 = vmatpush1.msra.mxu0 0.0
  %3894 = vmatprep.subr.mxu0 0.0
  %3895 = vmatpush1.msra.mxu0 0.0
  %3896 = vmatprep.subr.mxu0 0.0
  %3897 = vmatpush1.msra.mxu0 0.0
  %3898 = vmatprep.subr.mxu0 0.0
  %3899 = vmatpush1.msra.mxu0 0.0
  %3900 = vmatprep.subr.mxu0 0.0
  %3901 = vmatpush1.msra.mxu0 0.0
  %3902 = vmatprep.subr.mxu0 0.0
  %3903 = vmatpush1.msra.mxu0 0.0
  %3904 = vmatprep.subr.mxu0 0.0
  %3905 = vmatpush1.msra.mxu0 0.0
  %3906 = vmatprep.subr.mxu0 0.0
  %3907 = vmatpush1.msra.mxu0 0.0
  %3908 = vmatprep.subr.mxu0 0.0
  %3909 = vmatpush1.msra.mxu0 0.0
  %3910 = vmatprep.mubr.f32.mxu0 0.0
  %3911 = vmatmul.mubr.f32.gmra.mrb[0].mxu0 %v3841
  %v3912 = vpop.f32.mrb[0].mxu0
  %v3913 = vadd.f32 %v3838, %v3912
  %v3914 = vpop.f32.mrb[0].mxu0
  %3915 = vmatprep.mubr.f32.mxu0 0.0
  %3916 = vmatmul.mubr.f32.gmra.mrb[0].mxu0 %v3844
  %v3917 = vpop.f32.mrb[0].mxu0
  %v3918 = vadd.f32 %v3838, %v3917
  %v3919 = vpop.f32.mrb[0].mxu0
  %3920 = vdwg.mxu0
  %3921 = vst.msk [vmem:[%s18] sm:$0xff] %vm76, %v3913
  %3922 = vst.msk [vmem:[%s18 + $0x8] sm:$0xff] %vm76, %v3918
  // Predicated region
  $region74: #{cross_layer_forward.1} parent=0 // pred_check
    _
  $region75: #{cross_layer_forward.1} parent=0 // pred_check_branch
    %3924 = sbr.rel (0) target = $region77
  $region76: #{cross_layer_forward.1} parent=0 // pred_region
    _
  $region77: #{cross_layer_forward.1} parent=0 // pred_fallthru
    _
  // Predicated region
  $region78: #{cross_layer_forward.1} parent=0 // pred_check
    _
  $region79: #{cross_layer_forward.1} parent=0 // pred_check_branch
    %3926 = sbr.rel (0) target = $region81
  $region80: #{cross_layer_forward.1} parent=0 // pred_region
    _
  $region81: #{cross_layer_forward.1} parent=0 // pred_fallthru
    _

</llo_original>
